<compile_context>
chip_gen: v7x
topology: tpu7x:2x2x1
jax: 0.10.0
libtpu: 0.0.40
codegen_flags: <defaults>
</compile_context>

<pallas_src>
import functools

import jax
import jax.numpy as jnp
from jax.experimental import pallas as pl
from jax.experimental.pallas import tpu as pltpu


NUM_GCN_LAYERS = 3
OUT_PAD = 128  # lane-dense padded output width; true dim_out sliced off in wrapper


def _round_up(x, m):
    return (x + m - 1) // m * m


def _vmem_budget_bytes():
    """Generation-aware VMEM budget (~96 MiB on v5e/v6e, ~48 MiB on v7x)."""
    try:
        info = pltpu.get_tpu_info()
        cap = int(getattr(info, "vmem_capacity_bytes", 0) or 0)
        if cap > 0:
            return min(cap * 3 // 4, 100 << 20)
    except Exception:
        pass
    return 48 << 20


# ----------------------------- fused Pallas kernel ----------------------------- #

def _fused_gcn_kernel(c1, c2, c3, tk,
                      x_ref, a_ref,
                      w1_ref, b1_ref, w2_ref, b2_ref, w3_ref, b3_ref,
                      w4_ref, b4_ref,
                      out_ref,
                      h_ref, acc_ref):
    """grid = (layer l in [0,3), contraction tile k).

    Per step: z = rows_k(prev_act) @ W_l  (feature transform, bf16 MXU)
              acc[:, :c_l] (= or +=) A_hat[:, k-tile] @ z  (aggregation, f32 accum)
    On the last k of each layer: bias + relu (f32 epilogue) into bf16 scratch h;
    after layer 2, the Linear head is applied and the padded output is stored.
    On the fast path tk == n_pad, so k == 0 always and A_hat is fetched once.
    """
    l = pl.program_id(0)
    k = pl.program_id(1)
    nk = pl.num_programs(1)

    row0 = pl.multiple_of(k * tk, tk)
    a_blk = a_ref[...]                       # (n_pad, tk) bf16 column tile of A_hat

    def aggregate(z, c):
        # NOTE: z is rounded to bf16 for the aggregation MXU pass; error stays well
        # inside the 2e-2 tolerance at this depth (keep f32 RHS if it ever tightens).
        upd = jnp.dot(a_blk, z.astype(jnp.bfloat16),
                      preferred_element_type=jnp.float32)

        @pl.when(k == 0)
        def _():                              # first k-tile: direct store, no zero-fill
            acc_ref[:, :c] = upd

        @pl.when(k > 0)
        def _():
            acc_ref[:, :c] = acc_ref[:, :c] + upd

    # ---- layer 0: X[k-tile] @ W1 ----
    @pl.when(l == 0)
    def _layer0():
        z = jnp.dot(x_ref[...], w1_ref[...], preferred_element_type=jnp.float32)
        aggregate(z, c1)

    # ---- layer 1: h1[k-tile] @ W2 ----
    @pl.when(l == 1)
    def _layer1():
        hrows = h_ref[pl.ds(row0, tk), :c1]
        z = jnp.dot(hrows, w2_ref[...], preferred_element_type=jnp.float32)
        aggregate(z, c2)

    # ---- layer 2: h2[k-tile] @ W3 ----
    @pl.when(l == 2)
    def _layer2():
        hrows = h_ref[pl.ds(row0, tk), :c2]
        z = jnp.dot(hrows, w3_ref[...], preferred_element_type=jnp.float32)
        aggregate(z, c3)

    # ---- per-layer finalize: bias + relu (f32), plus fused linear head ----
    @pl.when(k == nk - 1)
    def _finalize():
        @pl.when(l == 0)
        def _():
            h_ref[:, :c1] = jnp.maximum(
                acc_ref[:, :c1] + b1_ref[...], 0.0).astype(h_ref.dtype)

        @pl.when(l == 1)
        def _():
            h_ref[:, :c2] = jnp.maximum(
                acc_ref[:, :c2] + b2_ref[...], 0.0).astype(h_ref.dtype)

        @pl.when(l == 2)
        def _():
            h3 = jnp.maximum(acc_ref[:, :c3] + b3_ref[...], 0.0)
            # Fused Linear(dim_h, dim_out) head, padded to 128 lanes.
            y = jnp.dot(h3.astype(jnp.bfloat16), w4_ref[...],
                        preferred_element_type=jnp.float32) + b4_ref[...]
            out_ref[...] = y.astype(out_ref.dtype)


# --------------------------------- wrapper ------------------------------------ #

def gcn_regressor_forward(params, x, a_hat, dim_out):
    """Fused 3x GCNConv + Linear head. x: [N, F] f32, a_hat: [N, N] f32."""
    n, f = x.shape
    c1 = params["w1"].shape[1]
    c2 = params["w2"].shape[1]
    c3 = params["w3"].shape[1]

    # All last dims lane-dense multiples of 128 (128 matches the v5e MXU; widening
    # further would only burn VMEM — the kernel is A-bandwidth-bound, not MXU-bound).
    f_pad = _round_up(f, 128)
    c1p, c2p, c3p = (_round_up(c, 128) for c in (c1, c2, c3))
    cmax = max(c1p, c2p, c3p)

    w_elems = f_pad * c1p + c1p * c2p + c2p * c3p + c3p * OUT_PAD
    b_elems = c1p + c2p + c3p + OUT_PAD

    budget = _vmem_budget_bytes()

    def est_vmem(n_pad_, tk_):
        return (2 * (n_pad_ * tk_ + tk_ * f_pad) * 2     # double-buffered bf16 A / X tiles
                + 2 * w_elems * 2 + 2 * b_elems * 4      # resident weights / biases (buffer-pair safe)
                + n_pad_ * cmax * (4 + 2)                # f32 accumulator + bf16 activations
                + 2 * n_pad_ * OUT_PAD * 4)              # f32 output block

    # Tile selection: prefer tk == n_pad (A_hat fully VMEM-resident, read from HBM
    # once, grid (3,1)); otherwise stream A in progressively smaller column tiles.
    n128 = _round_up(n, 128)
    tk = 128
    for cand in (n128, 512, 256, 128):
        if cand > n128:
            continue
        if est_vmem(_round_up(n, cand), cand) <= budget:
            tk = cand
            break
    # TODO(synk): if even tk=128 exceeds the budget (huge N), a row-tiled
    # aggregation axis is needed; current config keeps O(N) rows resident.
    n_pad = _round_up(n, tk)
    nk = n_pad // tk

    def pad2(a, r, c):
        return jnp.pad(a, ((0, r - a.shape[0]), (0, c - a.shape[1])))

    bf16 = jnp.bfloat16
    # Correctness of padded rows relies on A_hat's padded rows/columns being exactly
    # zero (jnp.pad guarantees this): padded h rows become relu(b_l) != 0 but are
    # multiplied by zero A columns and never leave the kernel.
    x_p = pad2(x, n_pad, f_pad).astype(bf16)
    a_p = pad2(a_hat, n_pad, n_pad).astype(bf16)
    w1 = pad2(params["w1"], f_pad, c1p).astype(bf16)
    w2 = pad2(params["w2"], c1p, c2p).astype(bf16)
    w3 = pad2(params["w3"], c2p, c3p).astype(bf16)
    w4 = pad2(params["w4"], c3p, OUT_PAD).astype(bf16)
    b1 = pad2(params["b1"], 1, c1p)            # biases stay f32 (VPU epilogue)
    b2 = pad2(params["b2"], 1, c2p)
    b3 = pad2(params["b3"], 1, c3p)
    b4 = pad2(params["b4"], 1, OUT_PAD)

    grid = (NUM_GCN_LAYERS, nk)

    def const_spec(shape):
        return pl.BlockSpec(shape, lambda l, k: (0, 0))

    in_specs = [
        # X row tile is only consumed at layer 0; keep its block index constant
        # for l > 0 so the pipeline does not keep re-fetching it.
        pl.BlockSpec((tk, f_pad), lambda l, k: (jnp.where(l == 0, k, 0), 0)),
        # A_hat column tile (n_pad, tk). On the fast path tk == n_pad: block index
        # is constant so A_hat is DMA'd from HBM exactly once for all 3 layers.
        # Pipeline depth stays at the default 2 (deeper buffers only waste VMEM).
        pl.BlockSpec((n_pad, tk), lambda l, k: (0, k)),
        const_spec(w1.shape), const_spec(b1.shape),
        const_spec(w2.shape), const_spec(b2.shape),
        const_spec(w3.shape), const_spec(b3.shape),
        const_spec(w4.shape), const_spec(b4.shape),
    ]
    out_spec = const_spec((n_pad, OUT_PAD))

    est = est_vmem(n_pad, tk)
    vmem_limit = int(min(budget, max(2 * est, 32 << 20)))

    a_reads = 1 if nk == 1 else NUM_GCN_LAYERS
    flops = (2 * n_pad * w_elems + 2 * n_pad * n_pad * (c1p + c2p + c3p))
    bytes_accessed = (a_reads * n_pad * n_pad * 2
                      + n_pad * f_pad * 2
                      + w_elems * 2 + b_elems * 4
                      + n_pad * OUT_PAD * 4)

    kernel = functools.partial(_fused_gcn_kernel, c1p, c2p, c3p, tk)
    y_pad = pl.pallas_call(
        kernel,
        out_shape=jax.ShapeDtypeStruct((n_pad, OUT_PAD), jnp.float32),
        grid_spec=pltpu.PrefetchScalarGridSpec(
            num_scalar_prefetch=0,
            grid=grid,
            in_specs=in_specs,
            out_specs=out_spec,
            scratch_shapes=[
                pltpu.VMEM((n_pad, cmax), bf16),         # previous-layer activations
                pltpu.VMEM((n_pad, cmax), jnp.float32),  # f32 aggregation accumulator
            ]),
        compiler_params=pltpu.CompilerParams(
            # Both axes carry VMEM-scratch state across steps -> sequential.
            # TODO(synk): v7x dual-TC row split (core_map + VMEM_SHARED) not done.
            dimension_semantics=("arbitrary", "arbitrary"),
            vmem_limit_bytes=vmem_limit),
        cost_estimate=pl.CostEstimate(
            flops=flops, transcendentals=0, bytes_accessed=bytes_accessed),
    )(x_p, a_p, w1, b1, w2, b2, w3, b3, w4, b4)

    return y_pad[:n, :dim_out]


# ------------------------------- model glue ------------------------------------ #

def build_norm_adjacency(edge_index, num_nodes):
    """Dense D^{-1/2}(A+I)D^{-1/2} matching PyG GCNConv aggregation.

    A[dst, src] accumulates one unit per edge (duplicate edges counted, like
    PyG's scatter-add). edge_index is assumed to already contain both
    directions for undirected graphs (PyG convention).
    """
    # TODO(synk): for large sparse graphs a block-sparse A_hat path (per-tile
    # block lists via PrefetchScalarGridSpec) would avoid the dense O(N^2) stream.
    src, dst = edge_index[0], edge_index[1]
    a = jnp.zeros((num_nodes, num_nodes), jnp.float32)
    a = a.at[dst, src].add(1.0)
    a = a + jnp.eye(num_nodes, dtype=jnp.float32)
    deg = a.sum(axis=1)
    d_inv_sqrt = jnp.where(deg > 0, 1.0 / jnp.sqrt(deg), 0.0)
    return d_inv_sqrt[:, None] * a * d_inv_sqrt[None, :]


def init_params(key, dim_in, dim_h, dim_out):
    dims = [dim_in, 4 * dim_h, 2 * dim_h, dim_h, dim_out]
    keys = jax.random.split(key, 8)
    params = {}
    for i, (d0, d1) in enumerate(zip(dims[:-1], dims[1:])):
        lim = float(jnp.sqrt(6.0 / (d0 + d1)))     # glorot-uniform
        params[f"w{i + 1}"] = jax.random.uniform(
            keys[2 * i], (d0, d1), jnp.float32, -lim, lim)
        params[f"b{i + 1}"] = 0.1 * jax.random.normal(
            keys[2 * i + 1], (1, d1), jnp.float32)
    return params


def reference_forward(params, x, a_hat):
    h = jnp.maximum(a_hat @ (x @ params["w1"]) + params["b1"], 0.0)
    h = jnp.maximum(a_hat @ (h @ params["w2"]) + params["b2"], 0.0)
    h = jnp.maximum(a_hat @ (h @ params["w3"]) + params["b3"], 0.0)
    return h @ params["w4"] + params["b4"]


# ---------------------------------- driver -------------------------------------- #

if __name__ == "__main__":
    key = jax.random.PRNGKey(0)
    k_feat, k_edge, k_param = jax.random.split(key, 3)

    # Small synthetic graph (exercises N-padding, channel padding and the
    # A-resident fast path: n_pad=256 -> tk=256 -> grid (3, 1)).
    num_nodes = 200
    num_edges = 800
    dim_in = 48       # pads to 128
    dim_h = 32        # layer widths 128 / 64 / 32 -> each padded to 128 lanes
    dim_out = 1

    x = jax.random.normal(k_feat, (num_nodes, dim_in), jnp.float32)
    e = jax.random.randint(k_edge, (2, num_edges), 0, num_nodes, jnp.int32)
    edge_index = jnp.concatenate([e, e[::-1]], axis=1)  # symmetrize (undirected)

    a_hat = build_norm_adjacency(edge_index, num_nodes)
    params = init_params(k_param, dim_in, dim_h, dim_out)

    # TODO(synk): dropout(p=0.5) is identity in eval mode; not emitted.
    out = gcn_regressor_forward(params, x, a_hat, dim_out)
    out = jax.block_until_ready(out)
    assert out.shape == (num_nodes, dim_out)

    # Reference in f32, built from the same bf16-rounded operands the kernel sees
    # (only intermediate-rounding differences remain -> tight tolerance is safe).
    rt = lambda a: a.astype(jnp.bfloat16).astype(jnp.float32)
    params_rt = {k_: (rt(v) if k_.startswith("w") else v) for k_, v in params.items()}
    ref = reference_forward(params_rt, rt(x), rt(a_hat))
    max_err = float(jnp.max(jnp.abs(out - ref)))
    assert jnp.allclose(out, ref, atol=2e-2, rtol=2e-2), (
        f"mismatch vs reference (max_abs_err={max_err})")

    print("KERNEL_OK")
</pallas_src>

<mosaic_0001>
module attributes {stable_mosaic.version = 11 : i64} {
  func.func @_fused_gcn_kernel(%arg0: i32, %arg1: i32, %arg2: memref<256x128xbf16, #tpu.memory_space<vmem>>, %arg3: memref<256x256xbf16, #tpu.memory_space<vmem>>, %arg4: memref<128x128xbf16, #tpu.memory_space<vmem>>, %arg5: memref<1x128xf32, #tpu.memory_space<vmem>>, %arg6: memref<128x128xbf16, #tpu.memory_space<vmem>>, %arg7: memref<1x128xf32, #tpu.memory_space<vmem>>, %arg8: memref<128x128xbf16, #tpu.memory_space<vmem>>, %arg9: memref<1x128xf32, #tpu.memory_space<vmem>>, %arg10: memref<128x128xbf16, #tpu.memory_space<vmem>>, %arg11: memref<1x128xf32, #tpu.memory_space<vmem>>, %arg12: memref<256x128xf32, #tpu.memory_space<vmem>>, %arg13: memref<256x128xbf16, #tpu.memory_space<vmem>>, %arg14: memref<256x128xf32, #tpu.memory_space<vmem>>) attributes {dimension_semantics = [#tpu.dimension_semantics<arbitrary>, #tpu.dimension_semantics<arbitrary>], iteration_bounds = array<i64: 3, 1>, scalar_prefetch = 0 : i64, scratch_operands = 2 : i64, tpu.core_type = #tpu.core_type<tc>, window_params = [{transform_indices = @transform_0, window_bounds = array<i64: 256, 128>}, {transform_indices = @transform_1, window_bounds = array<i64: 256, 256>}, {pipeline_mode = #tpu.pipeline_mode<synchronous>, transform_indices = @transform_2, window_bounds = array<i64: 128, 128>}, {pipeline_mode = #tpu.pipeline_mode<synchronous>, transform_indices = @transform_3, window_bounds = array<i64: 1, 128>}, {pipeline_mode = #tpu.pipeline_mode<synchronous>, transform_indices = @transform_4, window_bounds = array<i64: 128, 128>}, {pipeline_mode = #tpu.pipeline_mode<synchronous>, transform_indices = @transform_5, window_bounds = array<i64: 1, 128>}, {pipeline_mode = #tpu.pipeline_mode<synchronous>, transform_indices = @transform_6, window_bounds = array<i64: 128, 128>}, {pipeline_mode = #tpu.pipeline_mode<synchronous>, transform_indices = @transform_7, window_bounds = array<i64: 1, 128>}, {pipeline_mode = #tpu.pipeline_mode<synchronous>, transform_indices = @transform_8, window_bounds = array<i64: 128, 128>}, {pipeline_mode = #tpu.pipeline_mode<synchronous>, transform_indices = @transform_9, window_bounds = array<i64: 1, 128>}, {pipeline_mode = #tpu.pipeline_mode<synchronous>, transform_indices = @transform_10, window_bounds = array<i64: 256, 128>}]} {
    %c256_i32 = arith.constant 256 : i32
    %0 = arith.muli %arg1, %c256_i32 : i32
    %1 = tpu.assume_multiple %0, 256 : i32
    %c0 = arith.constant 0 : index
    %c0_0 = arith.constant 0 : index
    %2 = vector.load %arg3[%c0, %c0_0] : memref<256x256xbf16, #tpu.memory_space<vmem>>, vector<256x256xbf16>
    %c0_i32 = arith.constant 0 : i32
    %3 = arith.cmpi eq, %arg0, %c0_i32 : i32
    %4 = arith.extui %3 : i1 to i32
    %c0_i32_1 = arith.constant 0 : i32
    %5 = arith.cmpi ne, %4, %c0_i32_1 : i32
    scf.if %5 {
      %c0_6 = arith.constant 0 : index
      %c0_7 = arith.constant 0 : index
      %15 = vector.load %arg2[%c0_6, %c0_7] : memref<256x128xbf16, #tpu.memory_space<vmem>>, vector<256x128xbf16>
      %c0_8 = arith.constant 0 : index
      %c0_9 = arith.constant 0 : index
      %16 = vector.load %arg4[%c0_8, %c0_9] : memref<128x128xbf16, #tpu.memory_space<vmem>>, vector<128x128xbf16>
      %cst = arith.constant dense<0.000000e+00> : vector<256x128xf32>
      %17 = tpu.matmul %15, %16, %cst {dimension_numbers = #tpu.dot_dimension_numbers<[1], [0], [0], [1], [0, 0, 1, 1], [], []>} : vector<256x128xbf16>, vector<128x128xbf16>, vector<256x128xf32> -> vector<256x128xf32>
      %18 = arith.truncf %17 : vector<256x128xf32> to vector<256x128xbf16>
      %cst_10 = arith.constant dense<0.000000e+00> : vector<256x128xf32>
      %19 = tpu.matmul %2, %18, %cst_10 {dimension_numbers = #tpu.dot_dimension_numbers<[1], [0], [0], [1], [0, 0, 1, 1], [], []>} : vector<256x256xbf16>, vector<256x128xbf16>, vector<256x128xf32> -> vector<256x128xf32>
      %c0_i32_11 = arith.constant 0 : i32
      %20 = arith.cmpi eq, %arg1, %c0_i32_11 : i32
      %21 = arith.extui %20 : i1 to i32
      %c0_i32_12 = arith.constant 0 : i32
      %22 = arith.cmpi ne, %21, %c0_i32_12 : i32
      scf.if %22 {
        %c0_15 = arith.constant 0 : index
        %c0_16 = arith.constant 0 : index
        %26 = vector.load %arg14[%c0_15, %c0_16] : memref<256x128xf32, #tpu.memory_space<vmem>>, vector<256x128xf32>
        tpu.vector_store %arg14[%c0_15, %c0_16], %19 {strides = array<i32>} : memref<256x128xf32, #tpu.memory_space<vmem>>, vector<256x128xf32>,
      } else {
      }
      %c0_i32_13 = arith.constant 0 : i32
      %23 = arith.cmpi sgt, %arg1, %c0_i32_13 : i32
      %24 = arith.extui %23 : i1 to i32
      %c0_i32_14 = arith.constant 0 : i32
      %25 = arith.cmpi ne, %24, %c0_i32_14 : i32
      scf.if %25 {
        %c0_15 = arith.constant 0 : index
        %c0_16 = arith.constant 0 : index
        %26 = vector.load %arg14[%c0_15, %c0_16] : memref<256x128xf32, #tpu.memory_space<vmem>>, vector<256x128xf32>
        %27 = arith.addf %26, %19 : vector<256x128xf32>
        %c0_17 = arith.constant 0 : index
        %c0_18 = arith.constant 0 : index
        %28 = vector.load %arg14[%c0_17, %c0_18] : memref<256x128xf32, #tpu.memory_space<vmem>>, vector<256x128xf32>
        tpu.vector_store %arg14[%c0_17, %c0_18], %27 {strides = array<i32>} : memref<256x128xf32, #tpu.memory_space<vmem>>, vector<256x128xf32>,
      } else {
      }
    } else {
    }
    %c1_i32 = arith.constant 1 : i32
    %6 = arith.cmpi eq, %arg0, %c1_i32 : i32
    %7 = arith.extui %6 : i1 to i32
    %c0_i32_2 = arith.constant 0 : i32
    %8 = arith.cmpi ne, %7, %c0_i32_2 : i32
    scf.if %8 {
      %15 = arith.index_cast %1 : i32 to index
      %c0_6 = arith.constant 0 : index
      %16 = vector.load %arg13[%15, %c0_6] : memref<256x128xbf16, #tpu.memory_space<vmem>>, vector<256x128xbf16>
      %c0_7 = arith.constant 0 : index
      %c0_8 = arith.constant 0 : index
      %17 = vector.load %arg6[%c0_7, %c0_8] : memref<128x128xbf16, #tpu.memory_space<vmem>>, vector<128x128xbf16>
      %cst = arith.constant dense<0.000000e+00> : vector<256x128xf32>
      %18 = tpu.matmul %16, %17, %cst {dimension_numbers = #tpu.dot_dimension_numbers<[1], [0], [0], [1], [0, 0, 1, 1], [], []>} : vector<256x128xbf16>, vector<128x128xbf16>, vector<256x128xf32> -> vector<256x128xf32>
      %19 = arith.truncf %18 : vector<256x128xf32> to vector<256x128xbf16>
      %cst_9 = arith.constant dense<0.000000e+00> : vector<256x128xf32>
      %20 = tpu.matmul %2, %19, %cst_9 {dimension_numbers = #tpu.dot_dimension_numbers<[1], [0], [0], [1], [0, 0, 1, 1], [], []>} : vector<256x256xbf16>, vector<256x128xbf16>, vector<256x128xf32> -> vector<256x128xf32>
      %c0_i32_10 = arith.constant 0 : i32
      %21 = arith.cmpi eq, %arg1, %c0_i32_10 : i32
      %22 = arith.extui %21 : i1 to i32
      %c0_i32_11 = arith.constant 0 : i32
      %23 = arith.cmpi ne, %22, %c0_i32_11 : i32
      scf.if %23 {
        %c0_14 = arith.constant 0 : index
        %c0_15 = arith.constant 0 : index
        %27 = vector.load %arg14[%c0_14, %c0_15] : memref<256x128xf32, #tpu.memory_space<vmem>>, vector<256x128xf32>
        tpu.vector_store %arg14[%c0_14, %c0_15], %20 {strides = array<i32>} : memref<256x128xf32, #tpu.memory_space<vmem>>, vector<256x128xf32>,
      } else {
      }
      %c0_i32_12 = arith.constant 0 : i32
      %24 = arith.cmpi sgt, %arg1, %c0_i32_12 : i32
      %25 = arith.extui %24 : i1 to i32
      %c0_i32_13 = arith.constant 0 : i32
      %26 = arith.cmpi ne, %25, %c0_i32_13 : i32
      scf.if %26 {
        %c0_14 = arith.constant 0 : index
        %c0_15 = arith.constant 0 : index
        %27 = vector.load %arg14[%c0_14, %c0_15] : memref<256x128xf32, #tpu.memory_space<vmem>>, vector<256x128xf32>
        %28 = arith.addf %27, %20 : vector<256x128xf32>
        %c0_16 = arith.constant 0 : index
        %c0_17 = arith.constant 0 : index
        %29 = vector.load %arg14[%c0_16, %c0_17] : memref<256x128xf32, #tpu.memory_space<vmem>>, vector<256x128xf32>
        tpu.vector_store %arg14[%c0_16, %c0_17], %28 {strides = array<i32>} : memref<256x128xf32, #tpu.memory_space<vmem>>, vector<256x128xf32>,
      } else {
      }
    } else {
    }
    %c2_i32 = arith.constant 2 : i32
    %9 = arith.cmpi eq, %arg0, %c2_i32 : i32
    %10 = arith.extui %9 : i1 to i32
    %c0_i32_3 = arith.constant 0 : i32
    %11 = arith.cmpi ne, %10, %c0_i32_3 : i32
    scf.if %11 {
      %15 = arith.index_cast %1 : i32 to index
      %c0_6 = arith.constant 0 : index
      %16 = vector.load %arg13[%15, %c0_6] : memref<256x128xbf16, #tpu.memory_space<vmem>>, vector<256x128xbf16>
      %c0_7 = arith.constant 0 : index
      %c0_8 = arith.constant 0 : index
      %17 = vector.load %arg8[%c0_7, %c0_8] : memref<128x128xbf16, #tpu.memory_space<vmem>>, vector<128x128xbf16>
      %cst = arith.constant dense<0.000000e+00> : vector<256x128xf32>
      %18 = tpu.matmul %16, %17, %cst {dimension_numbers = #tpu.dot_dimension_numbers<[1], [0], [0], [1], [0, 0, 1, 1], [], []>} : vector<256x128xbf16>, vector<128x128xbf16>, vector<256x128xf32> -> vector<256x128xf32>
      %19 = arith.truncf %18 : vector<256x128xf32> to vector<256x128xbf16>
      %cst_9 = arith.constant dense<0.000000e+00> : vector<256x128xf32>
      %20 = tpu.matmul %2, %19, %cst_9 {dimension_numbers = #tpu.dot_dimension_numbers<[1], [0], [0], [1], [0, 0, 1, 1], [], []>} : vector<256x256xbf16>, vector<256x128xbf16>, vector<256x128xf32> -> vector<256x128xf32>
      %c0_i32_10 = arith.constant 0 : i32
      %21 = arith.cmpi eq, %arg1, %c0_i32_10 : i32
      %22 = arith.extui %21 : i1 to i32
      %c0_i32_11 = arith.constant 0 : i32
      %23 = arith.cmpi ne, %22, %c0_i32_11 : i32
      scf.if %23 {
        %c0_14 = arith.constant 0 : index
        %c0_15 = arith.constant 0 : index
        %27 = vector.load %arg14[%c0_14, %c0_15] : memref<256x128xf32, #tpu.memory_space<vmem>>, vector<256x128xf32>
        tpu.vector_store %arg14[%c0_14, %c0_15], %20 {strides = array<i32>} : memref<256x128xf32, #tpu.memory_space<vmem>>, vector<256x128xf32>,
      } else {
      }
      %c0_i32_12 = arith.constant 0 : i32
      %24 = arith.cmpi sgt, %arg1, %c0_i32_12 : i32
      %25 = arith.extui %24 : i1 to i32
      %c0_i32_13 = arith.constant 0 : i32
      %26 = arith.cmpi ne, %25, %c0_i32_13 : i32
      scf.if %26 {
        %c0_14 = arith.constant 0 : index
        %c0_15 = arith.constant 0 : index
        %27 = vector.load %arg14[%c0_14, %c0_15] : memref<256x128xf32, #tpu.memory_space<vmem>>, vector<256x128xf32>
        %28 = arith.addf %27, %20 : vector<256x128xf32>
        %c0_16 = arith.constant 0 : index
        %c0_17 = arith.constant 0 : index
        %29 = vector.load %arg14[%c0_16, %c0_17] : memref<256x128xf32, #tpu.memory_space<vmem>>, vector<256x128xf32>
        tpu.vector_store %arg14[%c0_16, %c0_17], %28 {strides = array<i32>} : memref<256x128xf32, #tpu.memory_space<vmem>>, vector<256x128xf32>,
      } else {
      }
    } else {
    }
    %c0_i32_4 = arith.constant 0 : i32
    %12 = arith.cmpi eq, %arg1, %c0_i32_4 : i32
    %13 = arith.extui %12 : i1 to i32
    %c0_i32_5 = arith.constant 0 : i32
    %14 = arith.cmpi ne, %13, %c0_i32_5 : i32
    scf.if %14 {
      %c0_i32_6 = arith.constant 0 : i32
      %15 = arith.cmpi eq, %arg0, %c0_i32_6 : i32
      %16 = arith.extui %15 : i1 to i32
      %c0_i32_7 = arith.constant 0 : i32
      %17 = arith.cmpi ne, %16, %c0_i32_7 : i32
      scf.if %17 {
        %c0_12 = arith.constant 0 : index
        %c0_13 = arith.constant 0 : index
        %24 = vector.load %arg14[%c0_12, %c0_13] : memref<256x128xf32, #tpu.memory_space<vmem>>, vector<256x128xf32>
        %c0_14 = arith.constant 0 : index
        %c0_15 = arith.constant 0 : index
        %25 = vector.load %arg5[%c0_14, %c0_15] : memref<1x128xf32, #tpu.memory_space<vmem>>, vector<1x128xf32>
        %26 = vector.broadcast %25 : vector<1x128xf32> to vector<256x128xf32>
        %27 = arith.addf %24, %26 : vector<256x128xf32>
        %cst = arith.constant 0.000000e+00 : f32
        %28 = vector.broadcast %cst : f32 to vector<256x128xf32>
        %29 = arith.maximumf %27, %28 : vector<256x128xf32>
        %30 = arith.truncf %29 : vector<256x128xf32> to vector<256x128xbf16>
        %c0_16 = arith.constant 0 : index
        %c0_17 = arith.constant 0 : index
        %31 = vector.load %arg13[%c0_16, %c0_17] : memref<256x128xbf16, #tpu.memory_space<vmem>>, vector<256x128xbf16>
        tpu.vector_store %arg13[%c0_16, %c0_17], %30 {strides = array<i32>} : memref<256x128xbf16, #tpu.memory_space<vmem>>, vector<256x128xbf16>,
      } else {
      }
      %c1_i32_8 = arith.constant 1 : i32
      %18 = arith.cmpi eq, %arg0, %c1_i32_8 : i32
      %19 = arith.extui %18 : i1 to i32
      %c0_i32_9 = arith.constant 0 : i32
      %20 = arith.cmpi ne, %19, %c0_i32_9 : i32
      scf.if %20 {
        %c0_12 = arith.constant 0 : index
        %c0_13 = arith.constant 0 : index
        %24 = vector.load %arg14[%c0_12, %c0_13] : memref<256x128xf32, #tpu.memory_space<vmem>>, vector<256x128xf32>
        %c0_14 = arith.constant 0 : index
        %c0_15 = arith.constant 0 : index
        %25 = vector.load %arg7[%c0_14, %c0_15] : memref<1x128xf32, #tpu.memory_space<vmem>>, vector<1x128xf32>
        %26 = vector.broadcast %25 : vector<1x128xf32> to vector<256x128xf32>
        %27 = arith.addf %24, %26 : vector<256x128xf32>
        %cst = arith.constant 0.000000e+00 : f32
        %28 = vector.broadcast %cst : f32 to vector<256x128xf32>
        %29 = arith.maximumf %27, %28 : vector<256x128xf32>
        %30 = arith.truncf %29 : vector<256x128xf32> to vector<256x128xbf16>
        %c0_16 = arith.constant 0 : index
        %c0_17 = arith.constant 0 : index
        %31 = vector.load %arg13[%c0_16, %c0_17] : memref<256x128xbf16, #tpu.memory_space<vmem>>, vector<256x128xbf16>
        tpu.vector_store %arg13[%c0_16, %c0_17], %30 {strides = array<i32>} : memref<256x128xbf16, #tpu.memory_space<vmem>>, vector<256x128xbf16>,
      } else {
      }
      %c2_i32_10 = arith.constant 2 : i32
      %21 = arith.cmpi eq, %arg0, %c2_i32_10 : i32
      %22 = arith.extui %21 : i1 to i32
      %c0_i32_11 = arith.constant 0 : i32
      %23 = arith.cmpi ne, %22, %c0_i32_11 : i32
      scf.if %23 {
        %c0_12 = arith.constant 0 : index
        %c0_13 = arith.constant 0 : index
        %24 = vector.load %arg14[%c0_12, %c0_13] : memref<256x128xf32, #tpu.memory_space<vmem>>, vector<256x128xf32>
        %c0_14 = arith.constant 0 : index
        %c0_15 = arith.constant 0 : index
        %25 = vector.load %arg9[%c0_14, %c0_15] : memref<1x128xf32, #tpu.memory_space<vmem>>, vector<1x128xf32>
        %26 = vector.broadcast %25 : vector<1x128xf32> to vector<256x128xf32>
        %27 = arith.addf %24, %26 : vector<256x128xf32>
        %cst = arith.constant 0.000000e+00 : f32
        %28 = vector.broadcast %cst : f32 to vector<256x128xf32>
        %29 = arith.maximumf %27, %28 : vector<256x128xf32>
        %30 = arith.truncf %29 : vector<256x128xf32> to vector<256x128xbf16>
        %c0_16 = arith.constant 0 : index
        %c0_17 = arith.constant 0 : index
        %31 = vector.load %arg10[%c0_16, %c0_17] : memref<128x128xbf16, #tpu.memory_space<vmem>>, vector<128x128xbf16>
        %cst_18 = arith.constant dense<0.000000e+00> : vector<256x128xf32>
        %32 = tpu.matmul %30, %31, %cst_18 {dimension_numbers = #tpu.dot_dimension_numbers<[1], [0], [0], [1], [0, 0, 1, 1], [], []>} : vector<256x128xbf16>, vector<128x128xbf16>, vector<256x128xf32> -> vector<256x128xf32>
        %c0_19 = arith.constant 0 : index
        %c0_20 = arith.constant 0 : index
        %33 = vector.load %arg11[%c0_19, %c0_20] : memref<1x128xf32, #tpu.memory_space<vmem>>, vector<1x128xf32>
        %34 = vector.broadcast %33 : vector<1x128xf32> to vector<256x128xf32>
        %35 = arith.addf %32, %34 : vector<256x128xf32>
        %c0_21 = arith.constant 0 : index
        %c0_22 = arith.constant 0 : index
        %36 = vector.load %arg12[%c0_21, %c0_22] : memref<256x128xf32, #tpu.memory_space<vmem>>, vector<256x128xf32>
        tpu.vector_store %arg12[%c0_21, %c0_22], %35 {strides = array<i32>} : memref<256x128xf32, #tpu.memory_space<vmem>>, vector<256x128xf32>,
      } else {
      }
    } else {
    }
    return
  }
  func.func @transform_0(%arg0: i32, %arg1: i32) -> (i32, i32) {
    %c0_i32 = arith.constant 0 : i32
    %0 = arith.cmpi eq, %arg0, %c0_i32 : i32
    %c0_i32_0 = arith.constant 0 : i32
    %1 = arith.select %0, %arg1, %c0_i32_0 : i32
    %c0_i32_1 = arith.constant 0 : i32
    %c0_i32_2 = arith.constant 0 : i32
    return %1, %c0_i32_1 : i32, i32
  }
  func.func @transform_1(%arg0: i32, %arg1: i32) -> (i32, i32) {
    %c0_i32 = arith.constant 0 : i32
    %c0_i32_0 = arith.constant 0 : i32
    return %c0_i32, %arg1 : i32, i32
  }
  func.func @transform_2(%arg0: i32, %arg1: i32) -> (i32, i32) {
    %c0_i32 = arith.constant 0 : i32
    %c0_i32_0 = arith.constant 0 : i32
    %c0_i32_1 = arith.constant 0 : i32
    return %c0_i32, %c0_i32_0 : i32, i32
  }
  func.func @transform_3(%arg0: i32, %arg1: i32) -> (i32, i32) {
    %c0_i32 = arith.constant 0 : i32
    %c0_i32_0 = arith.constant 0 : i32
    %c0_i32_1 = arith.constant 0 : i32
    return %c0_i32, %c0_i32_0 : i32, i32
  }
  func.func @transform_4(%arg0: i32, %arg1: i32) -> (i32, i32) {
    %c0_i32 = arith.constant 0 : i32
    %c0_i32_0 = arith.constant 0 : i32
    %c0_i32_1 = arith.constant 0 : i32
    return %c0_i32, %c0_i32_0 : i32, i32
  }
  func.func @transform_5(%arg0: i32, %arg1: i32) -> (i32, i32) {
    %c0_i32 = arith.constant 0 : i32
    %c0_i32_0 = arith.constant 0 : i32
    %c0_i32_1 = arith.constant 0 : i32
    return %c0_i32, %c0_i32_0 : i32, i32
  }
  func.func @transform_6(%arg0: i32, %arg1: i32) -> (i32, i32) {
    %c0_i32 = arith.constant 0 : i32
    %c0_i32_0 = arith.constant 0 : i32
    %c0_i32_1 = arith.constant 0 : i32
    return %c0_i32, %c0_i32_0 : i32, i32
  }
  func.func @transform_7(%arg0: i32, %arg1: i32) -> (i32, i32) {
    %c0_i32 = arith.constant 0 : i32
    %c0_i32_0 = arith.constant 0 : i32
    %c0_i32_1 = arith.constant 0 : i32
    return %c0_i32, %c0_i32_0 : i32, i32
  }
  func.func @transform_8(%arg0: i32, %arg1: i32) -> (i32, i32) {
    %c0_i32 = arith.constant 0 : i32
    %c0_i32_0 = arith.constant 0 : i32
    %c0_i32_1 = arith.constant 0 : i32
    return %c0_i32, %c0_i32_0 : i32, i32
  }
  func.func @transform_9(%arg0: i32, %arg1: i32) -> (i32, i32) {
    %c0_i32 = arith.constant 0 : i32
    %c0_i32_0 = arith.constant 0 : i32
    %c0_i32_1 = arith.constant 0 : i32
    return %c0_i32, %c0_i32_0 : i32, i32
  }
  func.func @transform_10(%arg0: i32, %arg1: i32) -> (i32, i32) {
    %c0_i32 = arith.constant 0 : i32
    %c0_i32_0 = arith.constant 0 : i32
    %c0_i32_1 = arith.constant 0 : i32
    return %c0_i32, %c0_i32_0 : i32, i32
  }
}

</mosaic_0001>

<llo_original>
// kernel: tpu_custom_call.1
$region0: #{tpu_custom_call.1}
  #allocation0 [shape = 'u32[]', space=smem, size = 0x4, offset = 0x4, fixed_abs, tag = 'smem constant byte address 0x4 - core index']
  #allocation1 [shape = 'u32[144,128]{1,0:T(1,128)}', space=vmem, size = 0x12000, scoped, tag = 'internal scratch']
  #allocation2 [shape = 'bf16[256,128]{1,0:T(16,128)(2,1)}', space=vmem, size = 0x10000, scoped, tag = 'scratch operand']
  #allocation3 [shape = 'f32[256,128]{1,0:T(8,128)}', space=vmem, size = 0x20000, scoped, tag = 'scratch operand']
  %s0 = inlined_call_operand.hbm [shape: bf16[256,128], index: 0, kind: input, shape index: {}]
  %s1 = inlined_call_operand.hbm [shape: bf16[256,256], index: 1, kind: input, shape index: {}]
  %s2 = inlined_call_operand.hbm [shape: bf16[128,128], index: 2, kind: input, shape index: {}]
  %s3 = inlined_call_operand.vmem [shape: f32[1,128], index: 3, kind: input, shape index: {}]
  %s4 = inlined_call_operand.hbm [shape: bf16[128,128], index: 4, kind: input, shape index: {}]
  %s5 = inlined_call_operand.vmem [shape: f32[1,128], index: 5, kind: input, shape index: {}]
  %s6 = inlined_call_operand.hbm [shape: bf16[128,128], index: 6, kind: input, shape index: {}]
  %s7 = inlined_call_operand.vmem [shape: f32[1,128], index: 7, kind: input, shape index: {}]
  %s8 = inlined_call_operand.hbm [shape: bf16[128,128], index: 8, kind: input, shape index: {}]
  %s9 = inlined_call_operand.vmem [shape: f32[1,128], index: 9, kind: input, shape index: {}]
  %s10 = inlined_call_operand.hbm [shape: f32[256,128], index: 10, kind: output, shape index: {}]
  %s11 = sld [smem:[#allocation0]]
  $region149: #{tpu_custom_call.1} parent=0
    _
  %s13 = ssub.s32 1, %s11
  %s14 = scalar_select 0, %s13, %s11
  $region1: #{tpu_custom_call.1} parent=0
    #allocation4 [shape = 'u8[131072]{0}', space=vmem, size = 0x20000, scoped, tag = 'input window, operand 0']
    #allocation5 [shape = 's32[2]{0}', space=sflag, size = 0x8, scoped, tag = 'scoped memory for tpu_custom_call.1']
    #allocation6 [shape = 's32[2]{0}', space=sflag, size = 0x8, scoped, tag = 'scoped memory for tpu_custom_call.1']
    #allocation7 [shape = 'u8[131072]{0}', space=vmem, size = 0x20000, scoped, tag = 'input window, operand 1, single buffered']
    #allocation8 [shape = 's32[1]{0}', space=sflag, size = 0x4, scoped, tag = 'scoped memory for tpu_custom_call.1']
    #allocation9 [shape = 'u8[32768]{0}', space=vmem, size = 0x8000, scoped, tag = 'input window, operand 2, single buffered']
    #allocation10 [shape = 'u8[32768]{0}', space=vmem, size = 0x8000, scoped, tag = 'input window, operand 4, single buffered']
    #allocation11 [shape = 's32[1]{0}', space=sflag, size = 0x4, scoped, tag = 'scoped memory for tpu_custom_call.1']
    #allocation12 [shape = 'u8[32768]{0}', space=vmem, size = 0x8000, scoped, tag = 'input window, operand 6, single buffered']
    #allocation13 [shape = 'u8[32768]{0}', space=vmem, size = 0x8000, scoped, tag = 'input window, operand 8, single buffered']
    #allocation14 [shape = 's32[1]{0}', space=sflag, size = 0x4, scoped, tag = 'scoped memory for tpu_custom_call.1']
    #allocation15 [shape = 'u8[131072]{0}', space=vmem, size = 0x20000, scoped, tag = 'output window, operand 0, single buffered']
    %15 = vsyncpa [#allocation5], 0
    %s16 = scalar_lea.sflag [#allocation5], 1
    %17 = vsyncpa %s16, 0
    %18 = vsyncpa [#allocation8], 0
    %19 = vsyncpa [#allocation11], 0
    %20 = vsyncpa [#allocation14], 0
    %21 = vsyncpa [#allocation6], 0
    loop: start=0, step=1, limit=5
    $region2: #{tpu_custom_call.1} parent=1 // loop_pre_header
      _
    $region3: #{tpu_custom_call.1} parent=1 // loop_header
      %s23 = sphi 0, %s27
      %p24 = scmp.ge.s32.totalorder %s23, 5
      %s30 = sphi 0, %s42
      %s31 = sphi 0, %s38
      %s32 = sphi 0, %s30
      %s33 = sphi 0, %s31
      %s34 = sphi 0, %s32
      %s35 = sphi 0, %s33
      %s49 = sphi 0, %s51
      %s52 = sphi 0, %s49
      %s53 = sphi 0, %s52
      %s69 = sphi 0, %s53
      %s75 = sphi 0, %s77
      %s78 = sphi 0, %s75
      %s79 = sphi 0, %s78
      %s95 = sphi 0, %s79
      %s99 = sphi 0, %s99
      %s101 = sphi 0, %s99
      %s102 = sphi 0, %s101
      %s116 = sphi 0, %s102
      %s120 = sphi 0, %s120
      %s122 = sphi 0, %s120
      %s123 = sphi 0, %s122
      %s137 = sphi 0, %s123
      %s141 = sphi 0, %s141
      %s143 = sphi 0, %s141
      %s144 = sphi 0, %s143
      %s158 = sphi 0, %s144
      %s162 = sphi 0, %s162
      %s164 = sphi 0, %s162
      %s165 = sphi 0, %s164
      %s179 = sphi 0, %s165
      %s183 = sphi 0, %s183
      %s185 = sphi 0, %s183
      %s186 = sphi 0, %s185
      %s200 = sphi 0, %s186
      %s204 = sphi 0, %s204
      %s206 = sphi 0, %s204
      %s207 = sphi 0, %s206
      %s221 = sphi 0, %s207
      %s225 = sphi 0, %s225
      %s227 = sphi 0, %s225
      %s228 = sphi 0, %s227
      %s242 = sphi 0, %s228
      %s246 = sphi 0, %s246
      %s248 = sphi 0, %s246
      %s249 = sphi 0, %s248
      %s263 = sphi 0, %s249
      %s267 = sphi 0, %s267
      %s269 = sphi 0, %s267
      %s270 = sphi 0, %s269
      %s284 = sphi 0, %s270
    $region4: #{tpu_custom_call.1} parent=1 // loop_header_branch
      %26 = sbr.rel (%p24) target = $region8
    $region5: #{tpu_custom_call.1} parent=1 // loop_body
      %s28 = ssub.s32 %s23, 1
      %s29 = ssub.s32 %s23, 2
      %s36 = sadd.s32 1, %s31
      %p37 = scmp.ge.s32.totalorder %s36, 1
      %s38 = scalar_select %p37, 0, %s36
      %s39 = sadd.s32 1, %s30
      %s40 = scalar_select %p37, %s39, %s30
      %p41 = scmp.ge.s32.totalorder %s40, 3
      %s42 = scalar_select %p41, 0, %s40
      %p43 = scmp.eq.s32.totalorder %s30, 0
      %s44 = scalar_select %p43, %s31, 0
      %p45 = scmp.eq.s32.totalorder %s42, 0
      %s46 = scalar_select %p45, %s38, 0
      %s47 = ssub.s32 %s44, %s46
      %p48 = scmp.eq.s32.totalorder %s47, 0
      %s50 = sadd.s32 %s49, 1
      %s51 = scalar_select %p48, %s49, %s50
      %p54 = pneg %p48
      %p55 = scmp.eq.s32.totalorder %s23, 2
      %p56 = por %p54, %p55
      %p57 = scmp.ne.s32.totalorder %s49, %s52
      %p58 = scmp.eq.s32.totalorder %s23, 0
      %p59 = por %p57, %p58
      %p60 = scmp.ne.s32.totalorder %s49, %s52
      %p61 = scmp.eq.s32.totalorder %s28, 2
      %p62 = por %p60, %p61
      %p63 = scmp.ne.s32.totalorder %s52, %s53
      %p64 = scmp.eq.s32.totalorder %s28, 0
      %p65 = por %p63, %p64
      %p66 = scmp.ne.s32.totalorder %s52, %s53
      %p67 = scmp.eq.s32.totalorder %s29, 2
      %p68 = por %p66, %p67
      %p70 = scmp.ne.s32.totalorder %s53, %s69
      %p71 = scmp.eq.s32.totalorder %s29, 0
      %p72 = por %p70, %p71
      %s73 = ssub.s32 %s31, %s38
      %p74 = scmp.eq.s32.totalorder %s73, 0
      %s76 = sadd.s32 %s75, 1
      %s77 = scalar_select %p74, %s75, %s76
      %p80 = pneg %p74
      %p81 = scmp.eq.s32.totalorder %s23, 2
      %p82 = por %p80, %p81
      %p83 = scmp.ne.s32.totalorder %s75, %s78
      %p84 = scmp.eq.s32.totalorder %s23, 0
      %p85 = por %p83, %p84
      %p86 = scmp.ne.s32.totalorder %s75, %s78
      %p87 = scmp.eq.s32.totalorder %s28, 2
      %p88 = por %p86, %p87
      %p89 = scmp.ne.s32.totalorder %s78, %s79
      %p90 = scmp.eq.s32.totalorder %s28, 0
      %p91 = por %p89, %p90
      %p92 = scmp.ne.s32.totalorder %s78, %s79
      %p93 = scmp.eq.s32.totalorder %s29, 2
      %p94 = por %p92, %p93
      %p96 = scmp.ne.s32.totalorder %s79, %s95
      %p97 = scmp.eq.s32.totalorder %s29, 0
      %p98 = por %p96, %p97
      %s100 = sadd.s32 %s99, 1
      %p103 = scmp.eq.s32.totalorder %s23, 2
      %p104 = scmp.ne.s32.totalorder %s99, %s101
      %p105 = scmp.eq.s32.totalorder %s23, 0
      %p106 = por %p104, %p105
      %p107 = scmp.ne.s32.totalorder %s99, %s101
      %p108 = scmp.eq.s32.totalorder %s28, 2
      %p109 = por %p107, %p108
      %p110 = scmp.ne.s32.totalorder %s101, %s102
      %p111 = scmp.eq.s32.totalorder %s28, 0
      %p112 = por %p110, %p111
      %p113 = scmp.ne.s32.totalorder %s101, %s102
      %p114 = scmp.eq.s32.totalorder %s29, 2
      %p115 = por %p113, %p114
      %p117 = scmp.ne.s32.totalorder %s102, %s116
      %p118 = scmp.eq.s32.totalorder %s29, 0
      %p119 = por %p117, %p118
      %s121 = sadd.s32 %s120, 1
      %p124 = scmp.eq.s32.totalorder %s23, 2
      %p125 = scmp.ne.s32.totalorder %s120, %s122
      %p126 = scmp.eq.s32.totalorder %s23, 0
      %p127 = por %p125, %p126
      %p128 = scmp.ne.s32.totalorder %s120, %s122
      %p129 = scmp.eq.s32.totalorder %s28, 2
      %p130 = por %p128, %p129
      %p131 = scmp.ne.s32.totalorder %s122, %s123
      %p132 = scmp.eq.s32.totalorder %s28, 0
      %p133 = por %p131, %p132
      %p134 = scmp.ne.s32.totalorder %s122, %s123
      %p135 = scmp.eq.s32.totalorder %s29, 2
      %p136 = por %p134, %p135
      %p138 = scmp.ne.s32.totalorder %s123, %s137
      %p139 = scmp.eq.s32.totalorder %s29, 0
      %p140 = por %p138, %p139
      %s142 = sadd.s32 %s141, 1
      %p145 = scmp.eq.s32.totalorder %s23, 2
      %p146 = scmp.ne.s32.totalorder %s141, %s143
      %p147 = scmp.eq.s32.totalorder %s23, 0
      %p148 = por %p146, %p147
      %p149 = scmp.ne.s32.totalorder %s141, %s143
      %p150 = scmp.eq.s32.totalorder %s28, 2
      %p151 = por %p149, %p150
      %p152 = scmp.ne.s32.totalorder %s143, %s144
      %p153 = scmp.eq.s32.totalorder %s28, 0
      %p154 = por %p152, %p153
      %p155 = scmp.ne.s32.totalorder %s143, %s144
      %p156 = scmp.eq.s32.totalorder %s29, 2
      %p157 = por %p155, %p156
      %p159 = scmp.ne.s32.totalorder %s144, %s158
      %p160 = scmp.eq.s32.totalorder %s29, 0
      %p161 = por %p159, %p160
      %s163 = sadd.s32 %s162, 1
      %p166 = scmp.eq.s32.totalorder %s23, 2
      %p167 = scmp.ne.s32.totalorder %s162, %s164
      %p168 = scmp.eq.s32.totalorder %s23, 0
      %p169 = por %p167, %p168
      %p170 = scmp.ne.s32.totalorder %s162, %s164
      %p171 = scmp.eq.s32.totalorder %s28, 2
      %p172 = por %p170, %p171
      %p173 = scmp.ne.s32.totalorder %s164, %s165
      %p174 = scmp.eq.s32.totalorder %s28, 0
      %p175 = por %p173, %p174
      %p176 = scmp.ne.s32.totalorder %s164, %s165
      %p177 = scmp.eq.s32.totalorder %s29, 2
      %p178 = por %p176, %p177
      %p180 = scmp.ne.s32.totalorder %s165, %s179
      %p181 = scmp.eq.s32.totalorder %s29, 0
      %p182 = por %p180, %p181
      %s184 = sadd.s32 %s183, 1
      %p187 = scmp.eq.s32.totalorder %s23, 2
      %p188 = scmp.ne.s32.totalorder %s183, %s185
      %p189 = scmp.eq.s32.totalorder %s23, 0
      %p190 = por %p188, %p189
      %p191 = scmp.ne.s32.totalorder %s183, %s185
      %p192 = scmp.eq.s32.totalorder %s28, 2
      %p193 = por %p191, %p192
      %p194 = scmp.ne.s32.totalorder %s185, %s186
      %p195 = scmp.eq.s32.totalorder %s28, 0
      %p196 = por %p194, %p195
      %p197 = scmp.ne.s32.totalorder %s185, %s186
      %p198 = scmp.eq.s32.totalorder %s29, 2
      %p199 = por %p197, %p198
      %p201 = scmp.ne.s32.totalorder %s186, %s200
      %p202 = scmp.eq.s32.totalorder %s29, 0
      %p203 = por %p201, %p202
      %s205 = sadd.s32 %s204, 1
      %p208 = scmp.eq.s32.totalorder %s23, 2
      %p209 = scmp.ne.s32.totalorder %s204, %s206
      %p210 = scmp.eq.s32.totalorder %s23, 0
      %p211 = por %p209, %p210
      %p212 = scmp.ne.s32.totalorder %s204, %s206
      %p213 = scmp.eq.s32.totalorder %s28, 2
      %p214 = por %p212, %p213
      %p215 = scmp.ne.s32.totalorder %s206, %s207
      %p216 = scmp.eq.s32.totalorder %s28, 0
      %p217 = por %p215, %p216
      %p218 = scmp.ne.s32.totalorder %s206, %s207
      %p219 = scmp.eq.s32.totalorder %s29, 2
      %p220 = por %p218, %p219
      %p222 = scmp.ne.s32.totalorder %s207, %s221
      %p223 = scmp.eq.s32.totalorder %s29, 0
      %p224 = por %p222, %p223
      %s226 = sadd.s32 %s225, 1
      %p229 = scmp.eq.s32.totalorder %s23, 2
      %p230 = scmp.ne.s32.totalorder %s225, %s227
      %p231 = scmp.eq.s32.totalorder %s23, 0
      %p232 = por %p230, %p231
      %p233 = scmp.ne.s32.totalorder %s225, %s227
      %p234 = scmp.eq.s32.totalorder %s28, 2
      %p235 = por %p233, %p234
      %p236 = scmp.ne.s32.totalorder %s227, %s228
      %p237 = scmp.eq.s32.totalorder %s28, 0
      %p238 = por %p236, %p237
      %p239 = scmp.ne.s32.totalorder %s227, %s228
      %p240 = scmp.eq.s32.totalorder %s29, 2
      %p241 = por %p239, %p240
      %p243 = scmp.ne.s32.totalorder %s228, %s242
      %p244 = scmp.eq.s32.totalorder %s29, 0
      %p245 = por %p243, %p244
      %s247 = sadd.s32 %s246, 1
      %p250 = scmp.eq.s32.totalorder %s23, 2
      %p251 = scmp.ne.s32.totalorder %s246, %s248
      %p252 = scmp.eq.s32.totalorder %s23, 0
      %p253 = por %p251, %p252
      %p254 = scmp.ne.s32.totalorder %s246, %s248
      %p255 = scmp.eq.s32.totalorder %s28, 2
      %p256 = por %p254, %p255
      %p257 = scmp.ne.s32.totalorder %s248, %s249
      %p258 = scmp.eq.s32.totalorder %s28, 0
      %p259 = por %p257, %p258
      %p260 = scmp.ne.s32.totalorder %s248, %s249
      %p261 = scmp.eq.s32.totalorder %s29, 2
      %p262 = por %p260, %p261
      %p264 = scmp.ne.s32.totalorder %s249, %s263
      %p265 = scmp.eq.s32.totalorder %s29, 0
      %p266 = por %p264, %p265
      %s268 = sadd.s32 %s267, 1
      %p271 = scmp.eq.s32.totalorder %s23, 2
      %p272 = scmp.ne.s32.totalorder %s267, %s269
      %p273 = scmp.eq.s32.totalorder %s23, 0
      %p274 = por %p272, %p273
      %p275 = scmp.ne.s32.totalorder %s267, %s269
      %p276 = scmp.eq.s32.totalorder %s28, 2
      %p277 = por %p275, %p276
      %p278 = scmp.ne.s32.totalorder %s269, %s270
      %p279 = scmp.eq.s32.totalorder %s28, 0
      %p280 = por %p278, %p279
      %p281 = scmp.ne.s32.totalorder %s269, %s270
      %p282 = scmp.eq.s32.totalorder %s29, 2
      %p283 = por %p281, %p282
      %p285 = scmp.ne.s32.totalorder %s270, %s284
      %p286 = scmp.eq.s32.totalorder %s29, 0
      %p287 = por %p285, %p286
      %p288 = scmp.le.s32.totalorder 1, %s23
      %p289 = scmp.lt.s32.totalorder %s23, 4
      %p290 = pnand %p288, %p289
      %p291 = pneg %p290
      // Predicated region
      $region9: #{tpu_custom_call.1} parent=5 // pred_check
        _
      $region10: #{tpu_custom_call.1} parent=5 // pred_check_branch
        %293 = sbr.rel (%p290) target = $region12
      $region11: #{tpu_custom_call.1} parent=5 // pred_region
        %s294 = ssub.s32 %s23, 1
        // Predicated region
        $region13: #{tpu_custom_call.1} parent=11 // pred_check
          %p295 = pneg %p91
        $region14: #{tpu_custom_call.1} parent=11 // pred_check_branch
          %297 = sbr.rel (%p295) target = $region16
        $region15: #{tpu_custom_call.1} parent=11 // pred_region
          %s298 = smul.u32 2, %s33
          %s300 = ssub.s32 4096, 4096
          %301 = vsyncadd [#allocation8], %s300
          %s302 = smul.addr %s298, 64
          %s303 = scalar_lea.hbm %s1, %s302
          %s304 = sshll.u32 [#allocation7], 4
          %s305 = int_to_ptr.vmem [resolvable:$true] %s304
          %310 = dma.hbm_to_vmem [thread:$0]  %s303, 4096, %s305, [#allocation8], 128, 128, 8
        $region16: #{tpu_custom_call.1} parent=11 // pred_fallthru
          _
        // Predicated region
        $region17: #{tpu_custom_call.1} parent=11 // pred_check
          %p311 = pneg %p112
        $region18: #{tpu_custom_call.1} parent=11 // pred_check_branch
          %313 = sbr.rel (%p311) target = $region20
        $region19: #{tpu_custom_call.1} parent=11 // pred_region
          %s315 = ssub.s32 1024, 1024
          %316 = vsyncadd [#allocation8], %s315
          %s317 = sshll.u32 [#allocation9], 4
          %s318 = int_to_ptr.vmem [resolvable:$true] %s317
          %323 = dma.hbm_to_vmem [thread:$0]  %s2, 1024, %s318, [#allocation8], 64, 64, 4
        $region20: #{tpu_custom_call.1} parent=11 // pred_fallthru
          _
        // Predicated region
        $region21: #{tpu_custom_call.1} parent=11 // pred_check
          %p324 = pneg %p133
        $region22: #{tpu_custom_call.1} parent=11 // pred_check_branch
          %326 = sbr.rel (%p324) target = $region24
        $region23: #{tpu_custom_call.1} parent=11 // pred_region
          _
        $region24: #{tpu_custom_call.1} parent=11 // pred_fallthru
          _
        // Predicated region
        $region25: #{tpu_custom_call.1} parent=11 // pred_check
          %p327 = pneg %p154
        $region26: #{tpu_custom_call.1} parent=11 // pred_check_branch
          %329 = sbr.rel (%p327) target = $region28
        $region27: #{tpu_custom_call.1} parent=11 // pred_region
          %s331 = ssub.s32 1024, 1024
          %332 = vsyncadd [#allocation11], %s331
          %s333 = sshll.u32 [#allocation10], 4
          %s334 = int_to_ptr.vmem [resolvable:$true] %s333
          %339 = dma.hbm_to_vmem [thread:$0]  %s4, 1024, %s334, [#allocation11], 64, 64, 4
        $region28: #{tpu_custom_call.1} parent=11 // pred_fallthru
          _
        // Predicated region
        $region29: #{tpu_custom_call.1} parent=11 // pred_check
          %p340 = pneg %p175
        $region30: #{tpu_custom_call.1} parent=11 // pred_check_branch
          %342 = sbr.rel (%p340) target = $region32
        $region31: #{tpu_custom_call.1} parent=11 // pred_region
          _
        $region32: #{tpu_custom_call.1} parent=11 // pred_fallthru
          _
        // Predicated region
        $region33: #{tpu_custom_call.1} parent=11 // pred_check
          %p343 = pneg %p196
        $region34: #{tpu_custom_call.1} parent=11 // pred_check_branch
          %345 = sbr.rel (%p343) target = $region36
        $region35: #{tpu_custom_call.1} parent=11 // pred_region
          %s347 = ssub.s32 1024, 1024
          %348 = vsyncadd [#allocation11], %s347
          %s349 = sshll.u32 [#allocation12], 4
          %s350 = int_to_ptr.vmem [resolvable:$true] %s349
          %355 = dma.hbm_to_vmem [thread:$0]  %s6, 1024, %s350, [#allocation11], 64, 64, 4
        $region36: #{tpu_custom_call.1} parent=11 // pred_fallthru
          _
        // Predicated region
        $region37: #{tpu_custom_call.1} parent=11 // pred_check
          %p356 = pneg %p217
        $region38: #{tpu_custom_call.1} parent=11 // pred_check_branch
          %358 = sbr.rel (%p356) target = $region40
        $region39: #{tpu_custom_call.1} parent=11 // pred_region
          _
        $region40: #{tpu_custom_call.1} parent=11 // pred_fallthru
          _
        // Predicated region
        $region41: #{tpu_custom_call.1} parent=11 // pred_check
          %p359 = pneg %p238
        $region42: #{tpu_custom_call.1} parent=11 // pred_check_branch
          %361 = sbr.rel (%p359) target = $region44
        $region43: #{tpu_custom_call.1} parent=11 // pred_region
          %s363 = ssub.s32 1024, 1024
          %364 = vsyncadd [#allocation14], %s363
          %s365 = sshll.u32 [#allocation13], 4
          %s366 = int_to_ptr.vmem [resolvable:$true] %s365
          %371 = dma.hbm_to_vmem [thread:$0]  %s8, 1024, %s366, [#allocation14], 64, 64, 4
        $region44: #{tpu_custom_call.1} parent=11 // pred_fallthru
          _
        // Predicated region
        $region45: #{tpu_custom_call.1} parent=11 // pred_check
          %p372 = pneg %p259
        $region46: #{tpu_custom_call.1} parent=11 // pred_check_branch
          %374 = sbr.rel (%p372) target = $region48
        $region47: #{tpu_custom_call.1} parent=11 // pred_region
          _
        $region48: #{tpu_custom_call.1} parent=11 // pred_fallthru
          _
      $region12: #{tpu_custom_call.1} parent=5 // pred_fallthru
        _
      %p375 = scmp.lt.s32.totalorder %s23, 3
      // Predicated region
      $region49: #{tpu_custom_call.1} parent=5 // pred_check
        %p376 = pneg %p375
      $region50: #{tpu_custom_call.1} parent=5 // pred_check_branch
        %378 = sbr.rel (%p376) target = $region52
      $region51: #{tpu_custom_call.1} parent=5 // pred_region
        // Predicated region
        $region53: #{tpu_custom_call.1} parent=51 // pred_check
          %p379 = pneg %p59
        $region54: #{tpu_custom_call.1} parent=51 // pred_check_branch
          %381 = sbr.rel (%p379) target = $region56
        $region55: #{tpu_custom_call.1} parent=51 // pred_region
          %s382 = sand.u32 %s49, 1
          %s383 = scalar_lea.sflag [#allocation5], %s382
          %s384 = sand.u32 %s49, 1
          %s385 = smul.addr %s384, 128
          %s386 = scalar_lea.vmem [#allocation4], %s385
          %p387 = scmp.eq.s32.totalorder %s30, 0
          %s388 = scalar_select %p387, %s31, 0
          %s389 = smul.u32 32, %s388
          %s391 = ssub.s32 2048, 2048
          %392 = vsyncadd %s383, %s391
          %s393 = smul.addr %s389, 64
          %s394 = scalar_lea.hbm %s0, %s393
          %s395 = sshll.u32 %s386, 4
          %s396 = int_to_ptr.vmem [resolvable:$true] %s395
          %401 = dma.hbm_to_vmem [thread:$0]  %s394, 2048, %s396, %s383, 64, 64, 4
        $region56: #{tpu_custom_call.1} parent=51 // pred_fallthru
          _
      $region52: #{tpu_custom_call.1} parent=5 // pred_fallthru
        _
      %p402 = scmp.le.s32.totalorder 1, %s23
      %p403 = scmp.lt.s32.totalorder %s23, 4
      %p404 = pnand %p402, %p403
      %p405 = pneg %p404
      // Predicated region
      $region57: #{tpu_custom_call.1} parent=5 // pred_check
        _
      $region58: #{tpu_custom_call.1} parent=5 // pred_check_branch
        %407 = sbr.rel (%p404) target = $region60
      $region59: #{tpu_custom_call.1} parent=5 // pred_region
        %s408 = ssub.s32 %s23, 1
        %s409 = sand.u32 %s52, 1
        %s410 = scalar_lea.sflag [#allocation5], %s409
        %s411 = sand.u32 %s52, 1
        %s412 = smul.addr %s411, 128
        %s413 = scalar_lea.vmem [#allocation4], %s412
        // Predicated region
        $region61: #{tpu_custom_call.1} parent=59 // pred_check
          %p414 = pneg %p65
        $region62: #{tpu_custom_call.1} parent=59 // pred_check_branch
          %416 = sbr.rel (%p414) target = $region64
        $region63: #{tpu_custom_call.1} parent=59 // pred_region
          %417 = dma.done %s410, 2048
        $region64: #{tpu_custom_call.1} parent=59 // pred_fallthru
          _
        // Predicated region
        $region65: #{tpu_custom_call.1} parent=59 // pred_check
          %p418 = pneg %p91
        $region66: #{tpu_custom_call.1} parent=59 // pred_check_branch
          %420 = sbr.rel (%p418) target = $region68
        $region67: #{tpu_custom_call.1} parent=59 // pred_region
          %421 = dma.done [#allocation8], 4096
        $region68: #{tpu_custom_call.1} parent=59 // pred_fallthru
          _
        // Predicated region
        $region69: #{tpu_custom_call.1} parent=59 // pred_check
          %p422 = pneg %p112
        $region70: #{tpu_custom_call.1} parent=59 // pred_check_branch
          %424 = sbr.rel (%p422) target = $region72
        $region71: #{tpu_custom_call.1} parent=59 // pred_region
          %425 = dma.done [#allocation8], 1024
        $region72: #{tpu_custom_call.1} parent=59 // pred_fallthru
          _
        // Predicated region
        $region73: #{tpu_custom_call.1} parent=59 // pred_check
          %p426 = pneg %p154
        $region74: #{tpu_custom_call.1} parent=59 // pred_check_branch
          %428 = sbr.rel (%p426) target = $region76
        $region75: #{tpu_custom_call.1} parent=59 // pred_region
          %429 = dma.done [#allocation11], 1024
        $region76: #{tpu_custom_call.1} parent=59 // pred_fallthru
          _
        // Predicated region
        $region77: #{tpu_custom_call.1} parent=59 // pred_check
          %p430 = pneg %p196
        $region78: #{tpu_custom_call.1} parent=59 // pred_check_branch
          %432 = sbr.rel (%p430) target = $region80
        $region79: #{tpu_custom_call.1} parent=59 // pred_region
          %433 = dma.done [#allocation11], 1024
        $region80: #{tpu_custom_call.1} parent=59 // pred_fallthru
          _
        // Predicated region
        $region81: #{tpu_custom_call.1} parent=59 // pred_check
          %p434 = pneg %p238
        $region82: #{tpu_custom_call.1} parent=59 // pred_check_branch
          %436 = sbr.rel (%p434) target = $region84
        $region83: #{tpu_custom_call.1} parent=59 // pred_region
          %437 = dma.done [#allocation14], 1024
        $region84: #{tpu_custom_call.1} parent=59 // pred_fallthru
          _
        %s438 = sand.u32 %s52, 1
        %s439 = scalar_lea.sflag [#allocation5], %s438
        %s440 = sand.u32 %s52, 1
        %s441 = smul.addr %s440, 128
        %s442 = scalar_lea.vmem [#allocation4], %s441
        %p443 = pneg %p65
        %p444 = pneg %p62
        %p445 = pneg %p91
        %p446 = pneg %p88
        %p447 = pneg %p112
        %p448 = pneg %p109
        %p449 = pneg %p133
        %p450 = pneg %p130
        %p451 = pneg %p154
        %p452 = pneg %p151
        %p453 = pneg %p175
        %p454 = pneg %p172
        %p455 = pneg %p196
        %p456 = pneg %p193
        %p457 = pneg %p217
        %p458 = pneg %p214
        %p459 = pneg %p238
        %p460 = pneg %p235
        %p461 = pneg %p259
        %p462 = pneg %p256
        %p463 = pneg %p280
        %p464 = pneg %p277
        %p465 = scmp.eq.s32.totalorder %s32, 0
        %s466 = scalar_select %p465, %s33, 0
        %s467 = smul.u32 32, %s466
        %s468 = smul.u32 2, %s33
        %s470 = smul.u32 %s33, 256
        %v471 = vld [vmem:[#allocation7] sm:$0xff]
        %v472 = vld [vmem:[#allocation7 + $0x8] sm:$0xff]
        %v473 = vld [vmem:[#allocation7 + $0x10] sm:$0xff]
        %v474 = vld [vmem:[#allocation7 + $0x18] sm:$0xff]
        %v475 = vld [vmem:[#allocation7 + $0x20] sm:$0xff]
        %v476 = vld [vmem:[#allocation7 + $0x28] sm:$0xff]
        %v477 = vld [vmem:[#allocation7 + $0x30] sm:$0xff]
        %v478 = vld [vmem:[#allocation7 + $0x38] sm:$0xff]
        %v479 = vld [vmem:[#allocation7 + $0x40] sm:$0xff]
        %v480 = vld [vmem:[#allocation7 + $0x48] sm:$0xff]
        %v481 = vld [vmem:[#allocation7 + $0x50] sm:$0xff]
        %v482 = vld [vmem:[#allocation7 + $0x58] sm:$0xff]
        %v483 = vld [vmem:[#allocation7 + $0x60] sm:$0xff]
        %v484 = vld [vmem:[#allocation7 + $0x68] sm:$0xff]
        %v485 = vld [vmem:[#allocation7 + $0x70] sm:$0xff]
        %v486 = vld [vmem:[#allocation7 + $0x78] sm:$0xff]
        %v487 = vld [vmem:[#allocation7 + $0x80] sm:$0xff]
        %v488 = vld [vmem:[#allocation7 + $0x88] sm:$0xff]
        %v489 = vld [vmem:[#allocation7 + $0x90] sm:$0xff]
        %v490 = vld [vmem:[#allocation7 + $0x98] sm:$0xff]
        %v491 = vld [vmem:[#allocation7 + $0xa0] sm:$0xff]
        %v492 = vld [vmem:[#allocation7 + $0xa8] sm:$0xff]
        %v493 = vld [vmem:[#allocation7 + $0xb0] sm:$0xff]
        %v494 = vld [vmem:[#allocation7 + $0xb8] sm:$0xff]
        %v495 = vld [vmem:[#allocation7 + $0xc0] sm:$0xff]
        %v496 = vld [vmem:[#allocation7 + $0xc8] sm:$0xff]
        %v497 = vld [vmem:[#allocation7 + $0xd0] sm:$0xff]
        %v498 = vld [vmem:[#allocation7 + $0xd8] sm:$0xff]
        %v499 = vld [vmem:[#allocation7 + $0xe0] sm:$0xff]
        %v500 = vld [vmem:[#allocation7 + $0xe8] sm:$0xff]
        %v501 = vld [vmem:[#allocation7 + $0xf0] sm:$0xff]
        %v502 = vld [vmem:[#allocation7 + $0xf8] sm:$0xff]
        %p503 = scmp.eq.s32.totalorder %s32, 0
        // Predicated region
        $region85: #{tpu_custom_call.1} parent=59 // pred_check
          %p504 = pneg %p503
        $region86: #{tpu_custom_call.1} parent=59 // pred_check_branch
          %506 = sbr.rel (%p504) target = $region88
        $region87: #{tpu_custom_call.1} parent=59 // pred_region
          %v507 = vld [vmem:[%s413] sm:$0xf]
          %v508 = vld [vmem:[%s413 + $0x4] sm:$0xf]
          %v509 = vld [vmem:[%s413 + $0x8] sm:$0xf]
          %v510 = vld [vmem:[%s413 + $0xc] sm:$0xf]
          %v511 = vld [vmem:[%s413 + $0x10] sm:$0xf]
          %v512 = vld [vmem:[%s413 + $0x14] sm:$0xf]
          %v513 = vld [vmem:[%s413 + $0x18] sm:$0xf]
          %v514 = vld [vmem:[%s413 + $0x1c] sm:$0xf]
          %v515 = vld [vmem:[%s413 + $0x20] sm:$0xf]
          %v516 = vld [vmem:[%s413 + $0x24] sm:$0xf]
          %v517 = vld [vmem:[%s413 + $0x28] sm:$0xf]
          %v518 = vld [vmem:[%s413 + $0x2c] sm:$0xf]
          %v519 = vld [vmem:[%s413 + $0x30] sm:$0xf]
          %v520 = vld [vmem:[%s413 + $0x34] sm:$0xf]
          %v521 = vld [vmem:[%s413 + $0x38] sm:$0xf]
          %v522 = vld [vmem:[%s413 + $0x3c] sm:$0xf]
          %v523 = vld [vmem:[%s413 + $0x40] sm:$0xf]
          %v524 = vld [vmem:[%s413 + $0x44] sm:$0xf]
          %v525 = vld [vmem:[%s413 + $0x48] sm:$0xf]
          %v526 = vld [vmem:[%s413 + $0x4c] sm:$0xf]
          %v527 = vld [vmem:[%s413 + $0x50] sm:$0xf]
          %v528 = vld [vmem:[%s413 + $0x54] sm:$0xf]
          %v529 = vld [vmem:[%s413 + $0x58] sm:$0xf]
          %v530 = vld [vmem:[%s413 + $0x5c] sm:$0xf]
          %v531 = vld [vmem:[%s413 + $0x60] sm:$0xf]
          %v532 = vld [vmem:[%s413 + $0x64] sm:$0xf]
          %v533 = vld [vmem:[%s413 + $0x68] sm:$0xf]
          %v534 = vld [vmem:[%s413 + $0x6c] sm:$0xf]
          %v535 = vld [vmem:[%s413 + $0x70] sm:$0xf]
          %v536 = vld [vmem:[%s413 + $0x74] sm:$0xf]
          %v537 = vld [vmem:[%s413 + $0x78] sm:$0xf]
          %v538 = vld [vmem:[%s413 + $0x7c] sm:$0xf]
          %v539 = vld [vmem:[#allocation9] sm:$0xf]
          %v540 = vld [vmem:[#allocation9 + $0x4] sm:$0xf]
          %v541 = vld [vmem:[#allocation9 + $0x8] sm:$0xf]
          %v542 = vld [vmem:[#allocation9 + $0xc] sm:$0xf]
          %v543 = vld [vmem:[#allocation9 + $0x10] sm:$0xf]
          %v544 = vld [vmem:[#allocation9 + $0x14] sm:$0xf]
          %v545 = vld [vmem:[#allocation9 + $0x18] sm:$0xf]
          %v546 = vld [vmem:[#allocation9 + $0x1c] sm:$0xf]
          %v547 = vld [vmem:[#allocation9 + $0x20] sm:$0xf]
          %v548 = vld [vmem:[#allocation9 + $0x24] sm:$0xf]
          %v549 = vld [vmem:[#allocation9 + $0x28] sm:$0xf]
          %v550 = vld [vmem:[#allocation9 + $0x2c] sm:$0xf]
          %v551 = vld [vmem:[#allocation9 + $0x30] sm:$0xf]
          %v552 = vld [vmem:[#allocation9 + $0x34] sm:$0xf]
          %v553 = vld [vmem:[#allocation9 + $0x38] sm:$0xf]
          %v554 = vld [vmem:[#allocation9 + $0x3c] sm:$0xf]
          %v587 = vunpack.c.l.b16 %v507
          %v588 = vunpack.c.l.b16 %v508
          %v589 = vunpack.c.l.b16 %v509
          %v590 = vunpack.c.l.b16 %v510
          %v591 = vunpack.c.l.b16 %v511
          %v592 = vunpack.c.l.b16 %v512
          %v593 = vunpack.c.l.b16 %v513
          %v594 = vunpack.c.l.b16 %v514
          %v595 = vunpack.c.l.b16 %v515
          %v596 = vunpack.c.l.b16 %v516
          %v597 = vunpack.c.l.b16 %v517
          %v598 = vunpack.c.l.b16 %v518
          %v599 = vunpack.c.l.b16 %v519
          %v600 = vunpack.c.l.b16 %v520
          %v601 = vunpack.c.l.b16 %v521
          %v602 = vunpack.c.l.b16 %v522
          %v603 = vunpack.c.l.b16 %v523
          %v604 = vunpack.c.l.b16 %v524
          %v605 = vunpack.c.l.b16 %v525
          %v606 = vunpack.c.l.b16 %v526
          %v607 = vunpack.c.l.b16 %v527
          %v608 = vunpack.c.l.b16 %v528
          %v609 = vunpack.c.l.b16 %v529
          %v610 = vunpack.c.l.b16 %v530
          %v611 = vunpack.c.l.b16 %v531
          %v612 = vunpack.c.l.b16 %v532
          %v613 = vunpack.c.l.b16 %v533
          %v614 = vunpack.c.l.b16 %v534
          %v615 = vunpack.c.l.b16 %v535
          %v616 = vunpack.c.l.b16 %v536
          %v617 = vunpack.c.l.b16 %v537
          %v618 = vunpack.c.l.b16 %v538
          %v619 = vpack.c.b16 %v588, %v587
          %v620 = vpack.c.b16 %v590, %v589
          %v621 = vpack.c.b16 %v592, %v591
          %v622 = vpack.c.b16 %v594, %v593
          %v623 = vpack.c.b16 %v596, %v595
          %v624 = vpack.c.b16 %v598, %v597
          %v625 = vpack.c.b16 %v600, %v599
          %v626 = vpack.c.b16 %v602, %v601
          %v627 = vpack.c.b16 %v604, %v603
          %v628 = vpack.c.b16 %v606, %v605
          %v629 = vpack.c.b16 %v608, %v607
          %v630 = vpack.c.b16 %v610, %v609
          %v631 = vpack.c.b16 %v612, %v611
          %v632 = vpack.c.b16 %v614, %v613
          %v633 = vpack.c.b16 %v616, %v615
          %v634 = vpack.c.b16 %v618, %v617
          %v667 = vunpack.c.l.b16 %v539
          %v668 = vunpack.c.l.b16 %v540
          %v669 = vunpack.c.l.b16 %v541
          %v670 = vunpack.c.l.b16 %v542
          %v671 = vunpack.c.l.b16 %v543
          %v672 = vunpack.c.l.b16 %v544
          %v673 = vunpack.c.l.b16 %v545
          %v674 = vunpack.c.l.b16 %v546
          %v675 = vunpack.c.l.b16 %v547
          %v676 = vunpack.c.l.b16 %v548
          %v677 = vunpack.c.l.b16 %v549
          %v678 = vunpack.c.l.b16 %v550
          %v679 = vunpack.c.l.b16 %v551
          %v680 = vunpack.c.l.b16 %v552
          %v681 = vunpack.c.l.b16 %v553
          %v682 = vunpack.c.l.b16 %v554
          %v683 = vpack.c.b16 %v668, %v667
          %v684 = vpack.c.b16 %v670, %v669
          %v685 = vpack.c.b16 %v672, %v671
          %v686 = vpack.c.b16 %v674, %v673
          %v687 = vpack.c.b16 %v676, %v675
          %v688 = vpack.c.b16 %v678, %v677
          %v689 = vpack.c.b16 %v680, %v679
          %v690 = vpack.c.b16 %v682, %v681
          %699 = vmatprep.subr.bf16.mxu0 0
          %700 = vmatpush1.bf16.msra.mxu0 %v683
          %701 = vmatprep.subr.bf16.mxu0 0
          %702 = vmatpush1.bf16.msra.mxu0 %v684
          %703 = vmatprep.subr.bf16.mxu0 0
          %704 = vmatpush1.bf16.msra.mxu0 %v685
          %705 = vmatprep.subr.bf16.mxu0 0
          %706 = vmatpush1.bf16.msra.mxu0 %v686
          %707 = vmatprep.subr.bf16.mxu0 0
          %708 = vmatpush1.bf16.msra.mxu0 %v687
          %709 = vmatprep.subr.bf16.mxu0 0
          %710 = vmatpush1.bf16.msra.mxu0 %v688
          %711 = vmatprep.subr.bf16.mxu0 0
          %712 = vmatpush1.bf16.msra.mxu0 %v689
          %713 = vmatprep.subr.bf16.mxu0 0
          %714 = vmatpush1.bf16.msra.mxu0 %v690
          %715 = vmatprep.subr.bf16.mxu0 0
          %716 = vmatpush1.bf16.msra.mxu0 0
          %717 = vmatprep.subr.bf16.mxu0 0
          %718 = vmatpush1.bf16.msra.mxu0 0
          %719 = vmatprep.subr.bf16.mxu0 0
          %720 = vmatpush1.bf16.msra.mxu0 0
          %721 = vmatprep.subr.bf16.mxu0 0
          %722 = vmatpush1.bf16.msra.mxu0 0
          %723 = vmatprep.subr.bf16.mxu0 0
          %724 = vmatpush1.bf16.msra.mxu0 0
          %725 = vmatprep.subr.bf16.mxu0 0
          %726 = vmatpush1.bf16.msra.mxu0 0
          %727 = vmatprep.subr.bf16.mxu0 0
          %728 = vmatpush1.bf16.msra.mxu0 0
          %729 = vmatprep.subr.bf16.mxu0 0
          %730 = vmatpush1.bf16.msra.mxu0 0
          %731 = vmatprep.mubr.bf16.mxu0 0
          %732 = vmatmul.mubr.bf16.gmra.mrb[0].mxu0 %v619
          %v733 = vpop.f32.mrb[0].mxu0
          %v734 = vadd.f32 0.0, %v733
          %v735 = vpop.f32.mrb[0].mxu0
          %v736 = vpop.f32.mrb[0].mxu0
          %v737 = vadd.f32 0.0, %v736
          %v738 = vpop.f32.mrb[0].mxu0
          %739 = vmatprep.mubr.bf16.mxu0 0
          %740 = vmatmul.mubr.bf16.gmra.mrb[0].mxu0 %v620
          %v741 = vpop.f32.mrb[0].mxu0
          %v742 = vadd.f32 0.0, %v741
          %v743 = vpop.f32.mrb[0].mxu0
          %v744 = vpop.f32.mrb[0].mxu0
          %v745 = vadd.f32 0.0, %v744
          %v746 = vpop.f32.mrb[0].mxu0
          %747 = vmatprep.mubr.bf16.mxu0 0
          %748 = vmatmul.mubr.bf16.gmra.mrb[0].mxu0 %v621
          %v749 = vpop.f32.mrb[0].mxu0
          %v750 = vadd.f32 0.0, %v749
          %v751 = vpop.f32.mrb[0].mxu0
          %v752 = vpop.f32.mrb[0].mxu0
          %v753 = vadd.f32 0.0, %v752
          %v754 = vpop.f32.mrb[0].mxu0
          %755 = vmatprep.mubr.bf16.mxu0 0
          %756 = vmatmul.mubr.bf16.gmra.mrb[0].mxu0 %v622
          %v757 = vpop.f32.mrb[0].mxu0
          %v758 = vadd.f32 0.0, %v757
          %v759 = vpop.f32.mrb[0].mxu0
          %v760 = vpop.f32.mrb[0].mxu0
          %v761 = vadd.f32 0.0, %v760
          %v762 = vpop.f32.mrb[0].mxu0
          %763 = vmatprep.mubr.bf16.mxu0 0
          %764 = vmatmul.mubr.bf16.gmra.mrb[0].mxu0 %v623
          %v765 = vpop.f32.mrb[0].mxu0
          %v766 = vadd.f32 0.0, %v765
          %v767 = vpop.f32.mrb[0].mxu0
          %v768 = vpop.f32.mrb[0].mxu0
          %v769 = vadd.f32 0.0, %v768
          %v770 = vpop.f32.mrb[0].mxu0
          %771 = vmatprep.mubr.bf16.mxu0 0
          %772 = vmatmul.mubr.bf16.gmra.mrb[0].mxu0 %v624
          %v773 = vpop.f32.mrb[0].mxu0
          %v774 = vadd.f32 0.0, %v773
          %v775 = vpop.f32.mrb[0].mxu0
          %v776 = vpop.f32.mrb[0].mxu0
          %v777 = vadd.f32 0.0, %v776
          %v778 = vpop.f32.mrb[0].mxu0
          %779 = vmatprep.mubr.bf16.mxu0 0
          %780 = vmatmul.mubr.bf16.gmra.mrb[0].mxu0 %v625
          %v781 = vpop.f32.mrb[0].mxu0
          %v782 = vadd.f32 0.0, %v781
          %v783 = vpop.f32.mrb[0].mxu0
          %v784 = vpop.f32.mrb[0].mxu0
          %v785 = vadd.f32 0.0, %v784
          %v786 = vpop.f32.mrb[0].mxu0
          %787 = vmatprep.mubr.bf16.mxu0 0
          %788 = vmatmul.mubr.bf16.gmra.mrb[0].mxu0 %v626
          %v789 = vpop.f32.mrb[0].mxu0
          %v790 = vadd.f32 0.0, %v789
          %v791 = vpop.f32.mrb[0].mxu0
          %v792 = vpop.f32.mrb[0].mxu0
          %v793 = vadd.f32 0.0, %v792
          %v794 = vpop.f32.mrb[0].mxu0
          %795 = vmatprep.mubr.bf16.mxu0 0
          %796 = vmatmul.mubr.bf16.gmra.mrb[0].mxu0 %v627
          %v797 = vpop.f32.mrb[0].mxu0
          %v798 = vadd.f32 0.0, %v797
          %v799 = vpop.f32.mrb[0].mxu0
          %v800 = vpop.f32.mrb[0].mxu0
          %v801 = vadd.f32 0.0, %v800
          %v802 = vpop.f32.mrb[0].mxu0
          %803 = vmatprep.mubr.bf16.mxu0 0
          %804 = vmatmul.mubr.bf16.gmra.mrb[0].mxu0 %v628
          %v805 = vpop.f32.mrb[0].mxu0
          %v806 = vadd.f32 0.0, %v805
          %v807 = vpop.f32.mrb[0].mxu0
          %v808 = vpop.f32.mrb[0].mxu0
          %v809 = vadd.f32 0.0, %v808
          %v810 = vpop.f32.mrb[0].mxu0
          %811 = vmatprep.mubr.bf16.mxu0 0
          %812 = vmatmul.mubr.bf16.gmra.mrb[0].mxu0 %v629
          %v813 = vpop.f32.mrb[0].mxu0
          %v814 = vadd.f32 0.0, %v813
          %v815 = vpop.f32.mrb[0].mxu0
          %v816 = vpop.f32.mrb[0].mxu0
          %v817 = vadd.f32 0.0, %v816
          %v818 = vpop.f32.mrb[0].mxu0
          %819 = vmatprep.mubr.bf16.mxu0 0
          %820 = vmatmul.mubr.bf16.gmra.mrb[0].mxu0 %v630
          %v821 = vpop.f32.mrb[0].mxu0
          %v822 = vadd.f32 0.0, %v821
          %v823 = vpop.f32.mrb[0].mxu0
          %v824 = vpop.f32.mrb[0].mxu0
          %v825 = vadd.f32 0.0, %v824
          %v826 = vpop.f32.mrb[0].mxu0
          %827 = vmatprep.mubr.bf16.mxu0 0
          %828 = vmatmul.mubr.bf16.gmra.mrb[0].mxu0 %v631
          %v829 = vpop.f32.mrb[0].mxu0
          %v830 = vadd.f32 0.0, %v829
          %v831 = vpop.f32.mrb[0].mxu0
          %v832 = vpop.f32.mrb[0].mxu0
          %v833 = vadd.f32 0.0, %v832
          %v834 = vpop.f32.mrb[0].mxu0
          %835 = vmatprep.mubr.bf16.mxu0 0
          %836 = vmatmul.mubr.bf16.gmra.mrb[0].mxu0 %v632
          %v837 = vpop.f32.mrb[0].mxu0
          %v838 = vadd.f32 0.0, %v837
          %v839 = vpop.f32.mrb[0].mxu0
          %v840 = vpop.f32.mrb[0].mxu0
          %v841 = vadd.f32 0.0, %v840
          %v842 = vpop.f32.mrb[0].mxu0
          %843 = vmatprep.mubr.bf16.mxu0 0
          %844 = vmatmul.mubr.bf16.gmra.mrb[0].mxu0 %v633
          %v845 = vpop.f32.mrb[0].mxu0
          %v846 = vadd.f32 0.0, %v845
          %v847 = vpop.f32.mrb[0].mxu0
          %v848 = vpop.f32.mrb[0].mxu0
          %v849 = vadd.f32 0.0, %v848
          %v850 = vpop.f32.mrb[0].mxu0
          %851 = vmatprep.mubr.bf16.mxu0 0
          %852 = vmatmul.mubr.bf16.gmra.mrb[0].mxu0 %v634
          %v853 = vpop.f32.mrb[0].mxu0
          %v854 = vadd.f32 0.0, %v853
          %v855 = vpop.f32.mrb[0].mxu0
          %v856 = vpop.f32.mrb[0].mxu0
          %v857 = vadd.f32 0.0, %v856
          %v858 = vpop.f32.mrb[0].mxu0
          %859 = vdwg.mxu0
          %v860 = vpack.c.bf16 %v737, %v734
          %v861 = vpack.c.bf16 %v745, %v742
          %v862 = vpack.c.bf16 %v753, %v750
          %v863 = vpack.c.bf16 %v761, %v758
          %v864 = vpack.c.bf16 %v769, %v766
          %v865 = vpack.c.bf16 %v777, %v774
          %v866 = vpack.c.bf16 %v785, %v782
          %v867 = vpack.c.bf16 %v793, %v790
          %v868 = vpack.c.bf16 %v801, %v798
          %v869 = vpack.c.bf16 %v809, %v806
          %v870 = vpack.c.bf16 %v817, %v814
          %v871 = vpack.c.bf16 %v825, %v822
          %v872 = vpack.c.bf16 %v833, %v830
          %v873 = vpack.c.bf16 %v841, %v838
          %v874 = vpack.c.bf16 %v849, %v846
          %v875 = vpack.c.bf16 %v857, %v854
          %v908 = vunpack.c.l.b16 %v471
          %v909 = vunpack.c.h.b16 %v471
          %v910 = vunpack.c.l.b16 %v472
          %v911 = vunpack.c.h.b16 %v472
          %v912 = vunpack.c.l.b16 %v473
          %v913 = vunpack.c.h.b16 %v473
          %v914 = vunpack.c.l.b16 %v474
          %v915 = vunpack.c.h.b16 %v474
          %v916 = vunpack.c.l.b16 %v475
          %v917 = vunpack.c.h.b16 %v475
          %v918 = vunpack.c.l.b16 %v476
          %v919 = vunpack.c.h.b16 %v476
          %v920 = vunpack.c.l.b16 %v477
          %v921 = vunpack.c.h.b16 %v477
          %v922 = vunpack.c.l.b16 %v478
          %v923 = vunpack.c.h.b16 %v478
          %v924 = vunpack.c.l.b16 %v479
          %v925 = vunpack.c.h.b16 %v479
          %v926 = vunpack.c.l.b16 %v480
          %v927 = vunpack.c.h.b16 %v480
          %v928 = vunpack.c.l.b16 %v481
          %v929 = vunpack.c.h.b16 %v481
          %v930 = vunpack.c.l.b16 %v482
          %v931 = vunpack.c.h.b16 %v482
          %v932 = vunpack.c.l.b16 %v483
          %v933 = vunpack.c.h.b16 %v483
          %v934 = vunpack.c.l.b16 %v484
          %v935 = vunpack.c.h.b16 %v484
          %v936 = vunpack.c.l.b16 %v485
          %v937 = vunpack.c.h.b16 %v485
          %v938 = vunpack.c.l.b16 %v486
          %v939 = vunpack.c.h.b16 %v486
          %v940 = vunpack.c.l.b16 %v487
          %v941 = vunpack.c.h.b16 %v487
          %v942 = vunpack.c.l.b16 %v488
          %v943 = vunpack.c.h.b16 %v488
          %v944 = vunpack.c.l.b16 %v489
          %v945 = vunpack.c.h.b16 %v489
          %v946 = vunpack.c.l.b16 %v490
          %v947 = vunpack.c.h.b16 %v490
          %v948 = vunpack.c.l.b16 %v491
          %v949 = vunpack.c.h.b16 %v491
          %v950 = vunpack.c.l.b16 %v492
          %v951 = vunpack.c.h.b16 %v492
          %v952 = vunpack.c.l.b16 %v493
          %v953 = vunpack.c.h.b16 %v493
          %v954 = vunpack.c.l.b16 %v494
          %v955 = vunpack.c.h.b16 %v494
          %v956 = vunpack.c.l.b16 %v495
          %v957 = vunpack.c.h.b16 %v495
          %v958 = vunpack.c.l.b16 %v496
          %v959 = vunpack.c.h.b16 %v496
          %v960 = vunpack.c.l.b16 %v497
          %v961 = vunpack.c.h.b16 %v497
          %v962 = vunpack.c.l.b16 %v498
          %v963 = vunpack.c.h.b16 %v498
          %v964 = vunpack.c.l.b16 %v499
          %v965 = vunpack.c.h.b16 %v499
          %v966 = vunpack.c.l.b16 %v500
          %v967 = vunpack.c.h.b16 %v500
          %v968 = vunpack.c.l.b16 %v501
          %v969 = vunpack.c.h.b16 %v501
          %v970 = vunpack.c.l.b16 %v502
          %v971 = vunpack.c.h.b16 %v502
          %v972 = vpack.c.b16 %v910, %v908
          %v973 = vpack.c.b16 %v911, %v909
          %v974 = vpack.c.b16 %v914, %v912
          %v975 = vpack.c.b16 %v915, %v913
          %v976 = vpack.c.b16 %v918, %v916
          %v977 = vpack.c.b16 %v919, %v917
          %v978 = vpack.c.b16 %v922, %v920
          %v979 = vpack.c.b16 %v923, %v921
          %v980 = vpack.c.b16 %v926, %v924
          %v981 = vpack.c.b16 %v927, %v925
          %v982 = vpack.c.b16 %v930, %v928
          %v983 = vpack.c.b16 %v931, %v929
          %v984 = vpack.c.b16 %v934, %v932
          %v985 = vpack.c.b16 %v935, %v933
          %v986 = vpack.c.b16 %v938, %v936
          %v987 = vpack.c.b16 %v939, %v937
          %v988 = vpack.c.b16 %v942, %v940
          %v989 = vpack.c.b16 %v943, %v941
          %v990 = vpack.c.b16 %v946, %v944
          %v991 = vpack.c.b16 %v947, %v945
          %v992 = vpack.c.b16 %v950, %v948
          %v993 = vpack.c.b16 %v951, %v949
          %v994 = vpack.c.b16 %v954, %v952
          %v995 = vpack.c.b16 %v955, %v953
          %v996 = vpack.c.b16 %v958, %v956
          %v997 = vpack.c.b16 %v959, %v957
          %v998 = vpack.c.b16 %v962, %v960
          %v999 = vpack.c.b16 %v963, %v961
          %v1000 = vpack.c.b16 %v966, %v964
          %v1001 = vpack.c.b16 %v967, %v965
          %v1002 = vpack.c.b16 %v970, %v968
          %v1003 = vpack.c.b16 %v971, %v969
          %1036 = vmatprep.subr.bf16.mxu0 0
          %1037 = vmatpush1.bf16.msra.mxu0 %v860
          %1038 = vmatprep.subr.bf16.mxu0 0
          %1039 = vmatpush1.bf16.msra.mxu0 %v861
          %1040 = vmatprep.subr.bf16.mxu0 0
          %1041 = vmatpush1.bf16.msra.mxu0 %v862
          %1042 = vmatprep.subr.bf16.mxu0 0
          %1043 = vmatpush1.bf16.msra.mxu0 %v863
          %1044 = vmatprep.subr.bf16.mxu0 0
          %1045 = vmatpush1.bf16.msra.mxu0 %v864
          %1046 = vmatprep.subr.bf16.mxu0 0
          %1047 = vmatpush1.bf16.msra.mxu0 %v865
          %1048 = vmatprep.subr.bf16.mxu0 0
          %1049 = vmatpush1.bf16.msra.mxu0 %v866
          %1050 = vmatprep.subr.bf16.mxu0 0
          %1051 = vmatpush1.bf16.msra.mxu0 %v867
          %1052 = vmatprep.subr.bf16.mxu0 0
          %1053 = vmatpush1.bf16.msra.mxu0 %v868
          %1054 = vmatprep.subr.bf16.mxu0 0
          %1055 = vmatpush1.bf16.msra.mxu0 %v869
          %1056 = vmatprep.subr.bf16.mxu0 0
          %1057 = vmatpush1.bf16.msra.mxu0 %v870
          %1058 = vmatprep.subr.bf16.mxu0 0
          %1059 = vmatpush1.bf16.msra.mxu0 %v871
          %1060 = vmatprep.subr.bf16.mxu0 0
          %1061 = vmatpush1.bf16.msra.mxu0 %v872
          %1062 = vmatprep.subr.bf16.mxu0 0
          %1063 = vmatpush1.bf16.msra.mxu0 %v873
          %1064 = vmatprep.subr.bf16.mxu0 0
          %1065 = vmatpush1.bf16.msra.mxu0 %v874
          %1066 = vmatprep.subr.bf16.mxu0 0
          %1067 = vmatpush1.bf16.msra.mxu0 %v875
          %1068 = vmatprep.mubr.bf16.mxu0 %v973
          %1069 = vmatmul.mubr.bf16.gmra.mrb[0].mxu0 %v972
          %v1070 = vpop.f32.mrb[0].mxu0
          %v1071 = vadd.f32 0.0, %v1070
          %v1072 = vpop.f32.mrb[0].mxu0
          %v1073 = vpop.f32.mrb[0].mxu0
          %v1074 = vadd.f32 0.0, %v1073
          %v1075 = vpop.f32.mrb[0].mxu0
          %1076 = vmatprep.mubr.bf16.mxu0 %v975
          %1077 = vmatmul.mubr.bf16.gmra.mrb[0].mxu0 %v974
          %v1078 = vpop.f32.mrb[0].mxu0
          %v1079 = vadd.f32 0.0, %v1078
          %v1080 = vpop.f32.mrb[0].mxu0
          %v1081 = vpop.f32.mrb[0].mxu0
          %v1082 = vadd.f32 0.0, %v1081
          %v1083 = vpop.f32.mrb[0].mxu0
          %1084 = vmatprep.mubr.bf16.mxu0 %v977
          %1085 = vmatmul.mubr.bf16.gmra.mrb[0].mxu0 %v976
          %v1086 = vpop.f32.mrb[0].mxu0
          %v1087 = vadd.f32 0.0, %v1086
          %v1088 = vpop.f32.mrb[0].mxu0
          %v1089 = vpop.f32.mrb[0].mxu0
          %v1090 = vadd.f32 0.0, %v1089
          %v1091 = vpop.f32.mrb[0].mxu0
          %1092 = vmatprep.mubr.bf16.mxu0 %v979
          %1093 = vmatmul.mubr.bf16.gmra.mrb[0].mxu0 %v978
          %v1094 = vpop.f32.mrb[0].mxu0
          %v1095 = vadd.f32 0.0, %v1094
          %v1096 = vpop.f32.mrb[0].mxu0
          %v1097 = vpop.f32.mrb[0].mxu0
          %v1098 = vadd.f32 0.0, %v1097
          %v1099 = vpop.f32.mrb[0].mxu0
          %1100 = vmatprep.mubr.bf16.mxu0 %v981
          %1101 = vmatmul.mubr.bf16.gmra.mrb[0].mxu0 %v980
          %v1102 = vpop.f32.mrb[0].mxu0
          %v1103 = vadd.f32 0.0, %v1102
          %v1104 = vpop.f32.mrb[0].mxu0
          %v1105 = vpop.f32.mrb[0].mxu0
          %v1106 = vadd.f32 0.0, %v1105
          %v1107 = vpop.f32.mrb[0].mxu0
          %1108 = vmatprep.mubr.bf16.mxu0 %v983
          %1109 = vmatmul.mubr.bf16.gmra.mrb[0].mxu0 %v982
          %v1110 = vpop.f32.mrb[0].mxu0
          %v1111 = vadd.f32 0.0, %v1110
          %v1112 = vpop.f32.mrb[0].mxu0
          %v1113 = vpop.f32.mrb[0].mxu0
          %v1114 = vadd.f32 0.0, %v1113
          %v1115 = vpop.f32.mrb[0].mxu0
          %1116 = vmatprep.mubr.bf16.mxu0 %v985
          %1117 = vmatmul.mubr.bf16.gmra.mrb[0].mxu0 %v984
          %v1118 = vpop.f32.mrb[0].mxu0
          %v1119 = vadd.f32 0.0, %v1118
          %v1120 = vpop.f32.mrb[0].mxu0
          %v1121 = vpop.f32.mrb[0].mxu0
          %v1122 = vadd.f32 0.0, %v1121
          %v1123 = vpop.f32.mrb[0].mxu0
          %1124 = vmatprep.mubr.bf16.mxu0 %v987
          %1125 = vmatmul.mubr.bf16.gmra.mrb[0].mxu0 %v986
          %v1126 = vpop.f32.mrb[0].mxu0
          %v1127 = vadd.f32 0.0, %v1126
          %v1128 = vpop.f32.mrb[0].mxu0
          %v1129 = vpop.f32.mrb[0].mxu0
          %v1130 = vadd.f32 0.0, %v1129
          %v1131 = vpop.f32.mrb[0].mxu0
          %1132 = vmatprep.mubr.bf16.mxu0 %v989
          %1133 = vmatmul.mubr.bf16.gmra.mrb[0].mxu0 %v988
          %v1134 = vpop.f32.mrb[0].mxu0
          %v1135 = vadd.f32 0.0, %v1134
          %v1136 = vpop.f32.mrb[0].mxu0
          %v1137 = vpop.f32.mrb[0].mxu0
          %v1138 = vadd.f32 0.0, %v1137
          %v1139 = vpop.f32.mrb[0].mxu0
          %1140 = vmatprep.mubr.bf16.mxu0 %v991
          %1141 = vmatmul.mubr.bf16.gmra.mrb[0].mxu0 %v990
          %v1142 = vpop.f32.mrb[0].mxu0
          %v1143 = vadd.f32 0.0, %v1142
          %v1144 = vpop.f32.mrb[0].mxu0
          %v1145 = vpop.f32.mrb[0].mxu0
          %v1146 = vadd.f32 0.0, %v1145
          %v1147 = vpop.f32.mrb[0].mxu0
          %1148 = vmatprep.mubr.bf16.mxu0 %v993
          %1149 = vmatmul.mubr.bf16.gmra.mrb[0].mxu0 %v992
          %v1150 = vpop.f32.mrb[0].mxu0
          %v1151 = vadd.f32 0.0, %v1150
          %v1152 = vpop.f32.mrb[0].mxu0
          %v1153 = vpop.f32.mrb[0].mxu0
          %v1154 = vadd.f32 0.0, %v1153
          %v1155 = vpop.f32.mrb[0].mxu0
          %1156 = vmatprep.mubr.bf16.mxu0 %v995
          %1157 = vmatmul.mubr.bf16.gmra.mrb[0].mxu0 %v994
          %v1158 = vpop.f32.mrb[0].mxu0
          %v1159 = vadd.f32 0.0, %v1158
          %v1160 = vpop.f32.mrb[0].mxu0
          %v1161 = vpop.f32.mrb[0].mxu0
          %v1162 = vadd.f32 0.0, %v1161
          %v1163 = vpop.f32.mrb[0].mxu0
          %1164 = vmatprep.mubr.bf16.mxu0 %v997
          %1165 = vmatmul.mubr.bf16.gmra.mrb[0].mxu0 %v996
          %v1166 = vpop.f32.mrb[0].mxu0
          %v1167 = vadd.f32 0.0, %v1166
          %v1168 = vpop.f32.mrb[0].mxu0
          %v1169 = vpop.f32.mrb[0].mxu0
          %v1170 = vadd.f32 0.0, %v1169
          %v1171 = vpop.f32.mrb[0].mxu0
          %1172 = vmatprep.mubr.bf16.mxu0 %v999
          %1173 = vmatmul.mubr.bf16.gmra.mrb[0].mxu0 %v998
          %v1174 = vpop.f32.mrb[0].mxu0
          %v1175 = vadd.f32 0.0, %v1174
          %v1176 = vpop.f32.mrb[0].mxu0
          %v1177 = vpop.f32.mrb[0].mxu0
          %v1178 = vadd.f32 0.0, %v1177
          %v1179 = vpop.f32.mrb[0].mxu0
          %1180 = vmatprep.mubr.bf16.mxu0 %v1001
          %1181 = vmatmul.mubr.bf16.gmra.mrb[0].mxu0 %v1000
          %v1182 = vpop.f32.mrb[0].mxu0
          %v1183 = vadd.f32 0.0, %v1182
          %v1184 = vpop.f32.mrb[0].mxu0
          %v1185 = vpop.f32.mrb[0].mxu0
          %v1186 = vadd.f32 0.0, %v1185
          %v1187 = vpop.f32.mrb[0].mxu0
          %1188 = vmatprep.mubr.bf16.mxu0 %v1003
          %1189 = vmatmul.mubr.bf16.gmra.mrb[0].mxu0 %v1002
          %v1190 = vpop.f32.mrb[0].mxu0
          %v1191 = vadd.f32 0.0, %v1190
          %v1192 = vpop.f32.mrb[0].mxu0
          %v1193 = vpop.f32.mrb[0].mxu0
          %v1194 = vadd.f32 0.0, %v1193
          %v1195 = vpop.f32.mrb[0].mxu0
          %1196 = vdwg.mxu0
          %p1197 = scmp.eq.s32.totalorder %s33, 0
          // Predicated region
          $region89: #{tpu_custom_call.1} parent=87 // pred_check
            %p1198 = pneg %p1197
          $region90: #{tpu_custom_call.1} parent=87 // pred_check_branch
            %1200 = sbr.rel (%p1198) target = $region92
          $region91: #{tpu_custom_call.1} parent=87 // pred_region
            %1201 = vst [vmem:[#allocation3] sm:$0xff] %v1071
            %1202 = vst [vmem:[#allocation3 + $0x8] sm:$0xff] %v1074
            %1203 = vst [vmem:[#allocation3 + $0x10] sm:$0xff] %v1079
            %1204 = vst [vmem:[#allocation3 + $0x18] sm:$0xff] %v1082
            %1205 = vst [vmem:[#allocation3 + $0x20] sm:$0xff] %v1087
            %1206 = vst [vmem:[#allocation3 + $0x28] sm:$0xff] %v1090
            %1207 = vst [vmem:[#allocation3 + $0x30] sm:$0xff] %v1095
            %1208 = vst [vmem:[#allocation3 + $0x38] sm:$0xff] %v1098
            %1209 = vst [vmem:[#allocation3 + $0x40] sm:$0xff] %v1103
            %1210 = vst [vmem:[#allocation3 + $0x48] sm:$0xff] %v1106
            %1211 = vst [vmem:[#allocation3 + $0x50] sm:$0xff] %v1111
            %1212 = vst [vmem:[#allocation3 + $0x58] sm:$0xff] %v1114
            %1213 = vst [vmem:[#allocation3 + $0x60] sm:$0xff] %v1119
            %1214 = vst [vmem:[#allocation3 + $0x68] sm:$0xff] %v1122
            %1215 = vst [vmem:[#allocation3 + $0x70] sm:$0xff] %v1127
            %1216 = vst [vmem:[#allocation3 + $0x78] sm:$0xff] %v1130
            %1217 = vst [vmem:[#allocation3 + $0x80] sm:$0xff] %v1135
            %1218 = vst [vmem:[#allocation3 + $0x88] sm:$0xff] %v1138
            %1219 = vst [vmem:[#allocation3 + $0x90] sm:$0xff] %v1143
            %1220 = vst [vmem:[#allocation3 + $0x98] sm:$0xff] %v1146
            %1221 = vst [vmem:[#allocation3 + $0xa0] sm:$0xff] %v1151
            %1222 = vst [vmem:[#allocation3 + $0xa8] sm:$0xff] %v1154
            %1223 = vst [vmem:[#allocation3 + $0xb0] sm:$0xff] %v1159
            %1224 = vst [vmem:[#allocation3 + $0xb8] sm:$0xff] %v1162
            %1225 = vst [vmem:[#allocation3 + $0xc0] sm:$0xff] %v1167
            %1226 = vst [vmem:[#allocation3 + $0xc8] sm:$0xff] %v1170
            %1227 = vst [vmem:[#allocation3 + $0xd0] sm:$0xff] %v1175
            %1228 = vst [vmem:[#allocation3 + $0xd8] sm:$0xff] %v1178
            %1229 = vst [vmem:[#allocation3 + $0xe0] sm:$0xff] %v1183
            %1230 = vst [vmem:[#allocation3 + $0xe8] sm:$0xff] %v1186
            %1231 = vst [vmem:[#allocation3 + $0xf0] sm:$0xff] %v1191
            %1232 = vst [vmem:[#allocation3 + $0xf8] sm:$0xff] %v1194
          $region92: #{tpu_custom_call.1} parent=87 // pred_fallthru
            _
          %p1233 = scmp.gt.s32.totalorder %s33, 0
          // Predicated region
          $region93: #{tpu_custom_call.1} parent=87 // pred_check
            %p1234 = pneg %p1233
          $region94: #{tpu_custom_call.1} parent=87 // pred_check_branch
            %1236 = sbr.rel (%p1234) target = $region96
          $region95: #{tpu_custom_call.1} parent=87 // pred_region
            %v1237 = vld [vmem:[#allocation3] sm:$0xff]
            %v1238 = vld [vmem:[#allocation3 + $0x8] sm:$0xff]
            %v1239 = vld [vmem:[#allocation3 + $0x10] sm:$0xff]
            %v1240 = vld [vmem:[#allocation3 + $0x18] sm:$0xff]
            %v1241 = vld [vmem:[#allocation3 + $0x20] sm:$0xff]
            %v1242 = vld [vmem:[#allocation3 + $0x28] sm:$0xff]
            %v1243 = vld [vmem:[#allocation3 + $0x30] sm:$0xff]
            %v1244 = vld [vmem:[#allocation3 + $0x38] sm:$0xff]
            %v1245 = vld [vmem:[#allocation3 + $0x40] sm:$0xff]
            %v1246 = vld [vmem:[#allocation3 + $0x48] sm:$0xff]
            %v1247 = vld [vmem:[#allocation3 + $0x50] sm:$0xff]
            %v1248 = vld [vmem:[#allocation3 + $0x58] sm:$0xff]
            %v1249 = vld [vmem:[#allocation3 + $0x60] sm:$0xff]
            %v1250 = vld [vmem:[#allocation3 + $0x68] sm:$0xff]
            %v1251 = vld [vmem:[#allocation3 + $0x70] sm:$0xff]
            %v1252 = vld [vmem:[#allocation3 + $0x78] sm:$0xff]
            %v1253 = vld [vmem:[#allocation3 + $0x80] sm:$0xff]
            %v1254 = vld [vmem:[#allocation3 + $0x88] sm:$0xff]
            %v1255 = vld [vmem:[#allocation3 + $0x90] sm:$0xff]
            %v1256 = vld [vmem:[#allocation3 + $0x98] sm:$0xff]
            %v1257 = vld [vmem:[#allocation3 + $0xa0] sm:$0xff]
            %v1258 = vld [vmem:[#allocation3 + $0xa8] sm:$0xff]
            %v1259 = vld [vmem:[#allocation3 + $0xb0] sm:$0xff]
            %v1260 = vld [vmem:[#allocation3 + $0xb8] sm:$0xff]
            %v1261 = vld [vmem:[#allocation3 + $0xc0] sm:$0xff]
            %v1262 = vld [vmem:[#allocation3 + $0xc8] sm:$0xff]
            %v1263 = vld [vmem:[#allocation3 + $0xd0] sm:$0xff]
            %v1264 = vld [vmem:[#allocation3 + $0xd8] sm:$0xff]
            %v1265 = vld [vmem:[#allocation3 + $0xe0] sm:$0xff]
            %v1266 = vld [vmem:[#allocation3 + $0xe8] sm:$0xff]
            %v1267 = vld [vmem:[#allocation3 + $0xf0] sm:$0xff]
            %v1268 = vld [vmem:[#allocation3 + $0xf8] sm:$0xff]
            %v1269 = vadd.f32 %v1237, %v1071
            %v1270 = vadd.f32 %v1238, %v1074
            %v1271 = vadd.f32 %v1239, %v1079
            %v1272 = vadd.f32 %v1240, %v1082
            %v1273 = vadd.f32 %v1241, %v1087
            %v1274 = vadd.f32 %v1242, %v1090
            %v1275 = vadd.f32 %v1243, %v1095
            %v1276 = vadd.f32 %v1244, %v1098
            %v1277 = vadd.f32 %v1245, %v1103
            %v1278 = vadd.f32 %v1246, %v1106
            %v1279 = vadd.f32 %v1247, %v1111
            %v1280 = vadd.f32 %v1248, %v1114
            %v1281 = vadd.f32 %v1249, %v1119
            %v1282 = vadd.f32 %v1250, %v1122
            %v1283 = vadd.f32 %v1251, %v1127
            %v1284 = vadd.f32 %v1252, %v1130
            %v1285 = vadd.f32 %v1253, %v1135
            %v1286 = vadd.f32 %v1254, %v1138
            %v1287 = vadd.f32 %v1255, %v1143
            %v1288 = vadd.f32 %v1256, %v1146
            %v1289 = vadd.f32 %v1257, %v1151
            %v1290 = vadd.f32 %v1258, %v1154
            %v1291 = vadd.f32 %v1259, %v1159
            %v1292 = vadd.f32 %v1260, %v1162
            %v1293 = vadd.f32 %v1261, %v1167
            %v1294 = vadd.f32 %v1262, %v1170
            %v1295 = vadd.f32 %v1263, %v1175
            %v1296 = vadd.f32 %v1264, %v1178
            %v1297 = vadd.f32 %v1265, %v1183
            %v1298 = vadd.f32 %v1266, %v1186
            %v1299 = vadd.f32 %v1267, %v1191
            %v1300 = vadd.f32 %v1268, %v1194
            %1301 = vst [vmem:[#allocation3] sm:$0xff] %v1269
            %1302 = vst [vmem:[#allocation3 + $0x8] sm:$0xff] %v1270
            %1303 = vst [vmem:[#allocation3 + $0x10] sm:$0xff] %v1271
            %1304 = vst [vmem:[#allocation3 + $0x18] sm:$0xff] %v1272
            %1305 = vst [vmem:[#allocation3 + $0x20] sm:$0xff] %v1273
            %1306 = vst [vmem:[#allocation3 + $0x28] sm:$0xff] %v1274
            %1307 = vst [vmem:[#allocation3 + $0x30] sm:$0xff] %v1275
            %1308 = vst [vmem:[#allocation3 + $0x38] sm:$0xff] %v1276
            %1309 = vst [vmem:[#allocation3 + $0x40] sm:$0xff] %v1277
            %1310 = vst [vmem:[#allocation3 + $0x48] sm:$0xff] %v1278
            %1311 = vst [vmem:[#allocation3 + $0x50] sm:$0xff] %v1279
            %1312 = vst [vmem:[#allocation3 + $0x58] sm:$0xff] %v1280
            %1313 = vst [vmem:[#allocation3 + $0x60] sm:$0xff] %v1281
            %1314 = vst [vmem:[#allocation3 + $0x68] sm:$0xff] %v1282
            %1315 = vst [vmem:[#allocation3 + $0x70] sm:$0xff] %v1283
            %1316 = vst [vmem:[#allocation3 + $0x78] sm:$0xff] %v1284
            %1317 = vst [vmem:[#allocation3 + $0x80] sm:$0xff] %v1285
            %1318 = vst [vmem:[#allocation3 + $0x88] sm:$0xff] %v1286
            %1319 = vst [vmem:[#allocation3 + $0x90] sm:$0xff] %v1287
            %1320 = vst [vmem:[#allocation3 + $0x98] sm:$0xff] %v1288
            %1321 = vst [vmem:[#allocation3 + $0xa0] sm:$0xff] %v1289
            %1322 = vst [vmem:[#allocation3 + $0xa8] sm:$0xff] %v1290
            %1323 = vst [vmem:[#allocation3 + $0xb0] sm:$0xff] %v1291
            %1324 = vst [vmem:[#allocation3 + $0xb8] sm:$0xff] %v1292
            %1325 = vst [vmem:[#allocation3 + $0xc0] sm:$0xff] %v1293
            %1326 = vst [vmem:[#allocation3 + $0xc8] sm:$0xff] %v1294
            %1327 = vst [vmem:[#allocation3 + $0xd0] sm:$0xff] %v1295
            %1328 = vst [vmem:[#allocation3 + $0xd8] sm:$0xff] %v1296
            %1329 = vst [vmem:[#allocation3 + $0xe0] sm:$0xff] %v1297
            %1330 = vst [vmem:[#allocation3 + $0xe8] sm:$0xff] %v1298
            %1331 = vst [vmem:[#allocation3 + $0xf0] sm:$0xff] %v1299
            %1332 = vst [vmem:[#allocation3 + $0xf8] sm:$0xff] %v1300
          $region96: #{tpu_custom_call.1} parent=87 // pred_fallthru
            _
        $region88: #{tpu_custom_call.1} parent=59 // pred_fallthru
          _
        %p1333 = scmp.eq.s32.totalorder %s32, 1
        // Predicated region
        $region97: #{tpu_custom_call.1} parent=59 // pred_check
          %p1334 = pneg %p1333
        $region98: #{tpu_custom_call.1} parent=59 // pred_check_branch
          %1336 = sbr.rel (%p1334) target = $region100
        $region99: #{tpu_custom_call.1} parent=59 // pred_region
          %s1337 = sshra.s32 %s470, 4
          %s1338 = sand.u32 %s470, 15
          %s1339 = smul.addr %s1337, 8
          %s1340 = scalar_lea.vmem [#allocation2], %s1339
          %v1341 = vld [vmem:[%s1340] sm:$0xff]
          %v1342 = vld [vmem:[%s1340 + $0x8] sm:$0xff]
          %v1343 = vld [vmem:[%s1340 + $0x10] sm:$0xff]
          %v1344 = vld [vmem:[%s1340 + $0x18] sm:$0xff]
          %v1345 = vld [vmem:[%s1340 + $0x20] sm:$0xff]
          %v1346 = vld [vmem:[%s1340 + $0x28] sm:$0xff]
          %v1347 = vld [vmem:[%s1340 + $0x30] sm:$0xff]
          %v1348 = vld [vmem:[%s1340 + $0x38] sm:$0xff]
          %v1349 = vld [vmem:[%s1340 + $0x40] sm:$0xff]
          %v1350 = vld [vmem:[%s1340 + $0x48] sm:$0xff]
          %v1351 = vld [vmem:[%s1340 + $0x50] sm:$0xff]
          %v1352 = vld [vmem:[%s1340 + $0x58] sm:$0xff]
          %v1353 = vld [vmem:[%s1340 + $0x60] sm:$0xff]
          %v1354 = vld [vmem:[%s1340 + $0x68] sm:$0xff]
          %v1355 = vld [vmem:[%s1340 + $0x70] sm:$0xff]
          %v1356 = vld [vmem:[%s1340 + $0x78] sm:$0xff]
          %v1357 = vld [vmem:[#allocation10] sm:$0xf]
          %v1358 = vld [vmem:[#allocation10 + $0x4] sm:$0xf]
          %v1359 = vld [vmem:[#allocation10 + $0x8] sm:$0xf]
          %v1360 = vld [vmem:[#allocation10 + $0xc] sm:$0xf]
          %v1361 = vld [vmem:[#allocation10 + $0x10] sm:$0xf]
          %v1362 = vld [vmem:[#allocation10 + $0x14] sm:$0xf]
          %v1363 = vld [vmem:[#allocation10 + $0x18] sm:$0xf]
          %v1364 = vld [vmem:[#allocation10 + $0x1c] sm:$0xf]
          %v1365 = vld [vmem:[#allocation10 + $0x20] sm:$0xf]
          %v1366 = vld [vmem:[#allocation10 + $0x24] sm:$0xf]
          %v1367 = vld [vmem:[#allocation10 + $0x28] sm:$0xf]
          %v1368 = vld [vmem:[#allocation10 + $0x2c] sm:$0xf]
          %v1369 = vld [vmem:[#allocation10 + $0x30] sm:$0xf]
          %v1370 = vld [vmem:[#allocation10 + $0x34] sm:$0xf]
          %v1371 = vld [vmem:[#allocation10 + $0x38] sm:$0xf]
          %v1372 = vld [vmem:[#allocation10 + $0x3c] sm:$0xf]
          %v1389 = vunpack.c.l.b16 %v1357
          %v1390 = vunpack.c.l.b16 %v1358
          %v1391 = vunpack.c.l.b16 %v1359
          %v1392 = vunpack.c.l.b16 %v1360
          %v1393 = vunpack.c.l.b16 %v1361
          %v1394 = vunpack.c.l.b16 %v1362
          %v1395 = vunpack.c.l.b16 %v1363
          %v1396 = vunpack.c.l.b16 %v1364
          %v1397 = vunpack.c.l.b16 %v1365
          %v1398 = vunpack.c.l.b16 %v1366
          %v1399 = vunpack.c.l.b16 %v1367
          %v1400 = vunpack.c.l.b16 %v1368
          %v1401 = vunpack.c.l.b16 %v1369
          %v1402 = vunpack.c.l.b16 %v1370
          %v1403 = vunpack.c.l.b16 %v1371
          %v1404 = vunpack.c.l.b16 %v1372
          %v1405 = vpack.c.b16 %v1390, %v1389
          %v1406 = vpack.c.b16 %v1392, %v1391
          %v1407 = vpack.c.b16 %v1394, %v1393
          %v1408 = vpack.c.b16 %v1396, %v1395
          %v1409 = vpack.c.b16 %v1398, %v1397
          %v1410 = vpack.c.b16 %v1400, %v1399
          %v1411 = vpack.c.b16 %v1402, %v1401
          %v1412 = vpack.c.b16 %v1404, %v1403
          %1421 = vmatprep.subr.bf16.mxu0 0
          %1422 = vmatpush1.bf16.msra.mxu0 %v1405
          %1423 = vmatprep.subr.bf16.mxu0 0
          %1424 = vmatpush1.bf16.msra.mxu0 %v1406
          %1425 = vmatprep.subr.bf16.mxu0 0
          %1426 = vmatpush1.bf16.msra.mxu0 %v1407
          %1427 = vmatprep.subr.bf16.mxu0 0
          %1428 = vmatpush1.bf16.msra.mxu0 %v1408
          %1429 = vmatprep.subr.bf16.mxu0 0
          %1430 = vmatpush1.bf16.msra.mxu0 %v1409
          %1431 = vmatprep.subr.bf16.mxu0 0
          %1432 = vmatpush1.bf16.msra.mxu0 %v1410
          %1433 = vmatprep.subr.bf16.mxu0 0
          %1434 = vmatpush1.bf16.msra.mxu0 %v1411
          %1435 = vmatprep.subr.bf16.mxu0 0
          %1436 = vmatpush1.bf16.msra.mxu0 %v1412
          %1437 = vmatprep.subr.bf16.mxu0 0
          %1438 = vmatpush1.bf16.msra.mxu0 0
          %1439 = vmatprep.subr.bf16.mxu0 0
          %1440 = vmatpush1.bf16.msra.mxu0 0
          %1441 = vmatprep.subr.bf16.mxu0 0
          %1442 = vmatpush1.bf16.msra.mxu0 0
          %1443 = vmatprep.subr.bf16.mxu0 0
          %1444 = vmatpush1.bf16.msra.mxu0 0
          %1445 = vmatprep.subr.bf16.mxu0 0
          %1446 = vmatpush1.bf16.msra.mxu0 0
          %1447 = vmatprep.subr.bf16.mxu0 0
          %1448 = vmatpush1.bf16.msra.mxu0 0
          %1449 = vmatprep.subr.bf16.mxu0 0
          %1450 = vmatpush1.bf16.msra.mxu0 0
          %1451 = vmatprep.subr.bf16.mxu0 0
          %1452 = vmatpush1.bf16.msra.mxu0 0
          %1453 = vmatprep.mubr.bf16.mxu0 0
          %1454 = vmatmul.mubr.bf16.gmra.mrb[0].mxu0 %v1341
          %v1455 = vpop.f32.mrb[0].mxu0
          %v1456 = vadd.f32 0.0, %v1455
          %v1457 = vpop.f32.mrb[0].mxu0
          %v1458 = vpop.f32.mrb[0].mxu0
          %v1459 = vadd.f32 0.0, %v1458
          %v1460 = vpop.f32.mrb[0].mxu0
          %1461 = vmatprep.mubr.bf16.mxu0 0
          %1462 = vmatmul.mubr.bf16.gmra.mrb[0].mxu0 %v1342
          %v1463 = vpop.f32.mrb[0].mxu0
          %v1464 = vadd.f32 0.0, %v1463
          %v1465 = vpop.f32.mrb[0].mxu0
          %v1466 = vpop.f32.mrb[0].mxu0
          %v1467 = vadd.f32 0.0, %v1466
          %v1468 = vpop.f32.mrb[0].mxu0
          %1469 = vmatprep.mubr.bf16.mxu0 0
          %1470 = vmatmul.mubr.bf16.gmra.mrb[0].mxu0 %v1343
          %v1471 = vpop.f32.mrb[0].mxu0
          %v1472 = vadd.f32 0.0, %v1471
          %v1473 = vpop.f32.mrb[0].mxu0
          %v1474 = vpop.f32.mrb[0].mxu0
          %v1475 = vadd.f32 0.0, %v1474
          %v1476 = vpop.f32.mrb[0].mxu0
          %1477 = vmatprep.mubr.bf16.mxu0 0
          %1478 = vmatmul.mubr.bf16.gmra.mrb[0].mxu0 %v1344
          %v1479 = vpop.f32.mrb[0].mxu0
          %v1480 = vadd.f32 0.0, %v1479
          %v1481 = vpop.f32.mrb[0].mxu0
          %v1482 = vpop.f32.mrb[0].mxu0
          %v1483 = vadd.f32 0.0, %v1482
          %v1484 = vpop.f32.mrb[0].mxu0
          %1485 = vmatprep.mubr.bf16.mxu0 0
          %1486 = vmatmul.mubr.bf16.gmra.mrb[0].mxu0 %v1345
          %v1487 = vpop.f32.mrb[0].mxu0
          %v1488 = vadd.f32 0.0, %v1487
          %v1489 = vpop.f32.mrb[0].mxu0
          %v1490 = vpop.f32.mrb[0].mxu0
          %v1491 = vadd.f32 0.0, %v1490
          %v1492 = vpop.f32.mrb[0].mxu0
          %1493 = vmatprep.mubr.bf16.mxu0 0
          %1494 = vmatmul.mubr.bf16.gmra.mrb[0].mxu0 %v1346
          %v1495 = vpop.f32.mrb[0].mxu0
          %v1496 = vadd.f32 0.0, %v1495
          %v1497 = vpop.f32.mrb[0].mxu0
          %v1498 = vpop.f32.mrb[0].mxu0
          %v1499 = vadd.f32 0.0, %v1498
          %v1500 = vpop.f32.mrb[0].mxu0
          %1501 = vmatprep.mubr.bf16.mxu0 0
          %1502 = vmatmul.mubr.bf16.gmra.mrb[0].mxu0 %v1347
          %v1503 = vpop.f32.mrb[0].mxu0
          %v1504 = vadd.f32 0.0, %v1503
          %v1505 = vpop.f32.mrb[0].mxu0
          %v1506 = vpop.f32.mrb[0].mxu0
          %v1507 = vadd.f32 0.0, %v1506
          %v1508 = vpop.f32.mrb[0].mxu0
          %1509 = vmatprep.mubr.bf16.mxu0 0
          %1510 = vmatmul.mubr.bf16.gmra.mrb[0].mxu0 %v1348
          %v1511 = vpop.f32.mrb[0].mxu0
          %v1512 = vadd.f32 0.0, %v1511
          %v1513 = vpop.f32.mrb[0].mxu0
          %v1514 = vpop.f32.mrb[0].mxu0
          %v1515 = vadd.f32 0.0, %v1514
          %v1516 = vpop.f32.mrb[0].mxu0
          %1517 = vmatprep.mubr.bf16.mxu0 0
          %1518 = vmatmul.mubr.bf16.gmra.mrb[0].mxu0 %v1349
          %v1519 = vpop.f32.mrb[0].mxu0
          %v1520 = vadd.f32 0.0, %v1519
          %v1521 = vpop.f32.mrb[0].mxu0
          %v1522 = vpop.f32.mrb[0].mxu0
          %v1523 = vadd.f32 0.0, %v1522
          %v1524 = vpop.f32.mrb[0].mxu0
          %1525 = vmatprep.mubr.bf16.mxu0 0
          %1526 = vmatmul.mubr.bf16.gmra.mrb[0].mxu0 %v1350
          %v1527 = vpop.f32.mrb[0].mxu0
          %v1528 = vadd.f32 0.0, %v1527
          %v1529 = vpop.f32.mrb[0].mxu0
          %v1530 = vpop.f32.mrb[0].mxu0
          %v1531 = vadd.f32 0.0, %v1530
          %v1532 = vpop.f32.mrb[0].mxu0
          %1533 = vmatprep.mubr.bf16.mxu0 0
          %1534 = vmatmul.mubr.bf16.gmra.mrb[0].mxu0 %v1351
          %v1535 = vpop.f32.mrb[0].mxu0
          %v1536 = vadd.f32 0.0, %v1535
          %v1537 = vpop.f32.mrb[0].mxu0
          %v1538 = vpop.f32.mrb[0].mxu0
          %v1539 = vadd.f32 0.0, %v1538
          %v1540 = vpop.f32.mrb[0].mxu0
          %1541 = vmatprep.mubr.bf16.mxu0 0
          %1542 = vmatmul.mubr.bf16.gmra.mrb[0].mxu0 %v1352
          %v1543 = vpop.f32.mrb[0].mxu0
          %v1544 = vadd.f32 0.0, %v1543
          %v1545 = vpop.f32.mrb[0].mxu0
          %v1546 = vpop.f32.mrb[0].mxu0
          %v1547 = vadd.f32 0.0, %v1546
          %v1548 = vpop.f32.mrb[0].mxu0
          %1549 = vmatprep.mubr.bf16.mxu0 0
          %1550 = vmatmul.mubr.bf16.gmra.mrb[0].mxu0 %v1353
          %v1551 = vpop.f32.mrb[0].mxu0
          %v1552 = vadd.f32 0.0, %v1551
          %v1553 = vpop.f32.mrb[0].mxu0
          %v1554 = vpop.f32.mrb[0].mxu0
          %v1555 = vadd.f32 0.0, %v1554
          %v1556 = vpop.f32.mrb[0].mxu0
          %1557 = vmatprep.mubr.bf16.mxu0 0
          %1558 = vmatmul.mubr.bf16.gmra.mrb[0].mxu0 %v1354
          %v1559 = vpop.f32.mrb[0].mxu0
          %v1560 = vadd.f32 0.0, %v1559
          %v1561 = vpop.f32.mrb[0].mxu0
          %v1562 = vpop.f32.mrb[0].mxu0
          %v1563 = vadd.f32 0.0, %v1562
          %v1564 = vpop.f32.mrb[0].mxu0
          %1565 = vmatprep.mubr.bf16.mxu0 0
          %1566 = vmatmul.mubr.bf16.gmra.mrb[0].mxu0 %v1355
          %v1567 = vpop.f32.mrb[0].mxu0
          %v1568 = vadd.f32 0.0, %v1567
          %v1569 = vpop.f32.mrb[0].mxu0
          %v1570 = vpop.f32.mrb[0].mxu0
          %v1571 = vadd.f32 0.0, %v1570
          %v1572 = vpop.f32.mrb[0].mxu0
          %1573 = vmatprep.mubr.bf16.mxu0 0
          %1574 = vmatmul.mubr.bf16.gmra.mrb[0].mxu0 %v1356
          %v1575 = vpop.f32.mrb[0].mxu0
          %v1576 = vadd.f32 0.0, %v1575
          %v1577 = vpop.f32.mrb[0].mxu0
          %v1578 = vpop.f32.mrb[0].mxu0
          %v1579 = vadd.f32 0.0, %v1578
          %v1580 = vpop.f32.mrb[0].mxu0
          %1581 = vdwg.mxu0
          %v1582 = vpack.c.bf16 %v1459, %v1456
          %v1583 = vpack.c.bf16 %v1467, %v1464
          %v1584 = vpack.c.bf16 %v1475, %v1472
          %v1585 = vpack.c.bf16 %v1483, %v1480
          %v1586 = vpack.c.bf16 %v1491, %v1488
          %v1587 = vpack.c.bf16 %v1499, %v1496
          %v1588 = vpack.c.bf16 %v1507, %v1504
          %v1589 = vpack.c.bf16 %v1515, %v1512
          %v1590 = vpack.c.bf16 %v1523, %v1520
          %v1591 = vpack.c.bf16 %v1531, %v1528
          %v1592 = vpack.c.bf16 %v1539, %v1536
          %v1593 = vpack.c.bf16 %v1547, %v1544
          %v1594 = vpack.c.bf16 %v1555, %v1552
          %v1595 = vpack.c.bf16 %v1563, %v1560
          %v1596 = vpack.c.bf16 %v1571, %v1568
          %v1597 = vpack.c.bf16 %v1579, %v1576
          %v1630 = vunpack.c.l.b16 %v471
          %v1631 = vunpack.c.h.b16 %v471
          %v1632 = vunpack.c.l.b16 %v472
          %v1633 = vunpack.c.h.b16 %v472
          %v1634 = vunpack.c.l.b16 %v473
          %v1635 = vunpack.c.h.b16 %v473
          %v1636 = vunpack.c.l.b16 %v474
          %v1637 = vunpack.c.h.b16 %v474
          %v1638 = vunpack.c.l.b16 %v475
          %v1639 = vunpack.c.h.b16 %v475
          %v1640 = vunpack.c.l.b16 %v476
          %v1641 = vunpack.c.h.b16 %v476
          %v1642 = vunpack.c.l.b16 %v477
          %v1643 = vunpack.c.h.b16 %v477
          %v1644 = vunpack.c.l.b16 %v478
          %v1645 = vunpack.c.h.b16 %v478
          %v1646 = vunpack.c.l.b16 %v479
          %v1647 = vunpack.c.h.b16 %v479
          %v1648 = vunpack.c.l.b16 %v480
          %v1649 = vunpack.c.h.b16 %v480
          %v1650 = vunpack.c.l.b16 %v481
          %v1651 = vunpack.c.h.b16 %v481
          %v1652 = vunpack.c.l.b16 %v482
          %v1653 = vunpack.c.h.b16 %v482
          %v1654 = vunpack.c.l.b16 %v483
          %v1655 = vunpack.c.h.b16 %v483
          %v1656 = vunpack.c.l.b16 %v484
          %v1657 = vunpack.c.h.b16 %v484
          %v1658 = vunpack.c.l.b16 %v485
          %v1659 = vunpack.c.h.b16 %v485
          %v1660 = vunpack.c.l.b16 %v486
          %v1661 = vunpack.c.h.b16 %v486
          %v1662 = vunpack.c.l.b16 %v487
          %v1663 = vunpack.c.h.b16 %v487
          %v1664 = vunpack.c.l.b16 %v488
          %v1665 = vunpack.c.h.b16 %v488
          %v1666 = vunpack.c.l.b16 %v489
          %v1667 = vunpack.c.h.b16 %v489
          %v1668 = vunpack.c.l.b16 %v490
          %v1669 = vunpack.c.h.b16 %v490
          %v1670 = vunpack.c.l.b16 %v491
          %v1671 = vunpack.c.h.b16 %v491
          %v1672 = vunpack.c.l.b16 %v492
          %v1673 = vunpack.c.h.b16 %v492
          %v1674 = vunpack.c.l.b16 %v493
          %v1675 = vunpack.c.h.b16 %v493
          %v1676 = vunpack.c.l.b16 %v494
          %v1677 = vunpack.c.h.b16 %v494
          %v1678 = vunpack.c.l.b16 %v495
          %v1679 = vunpack.c.h.b16 %v495
          %v1680 = vunpack.c.l.b16 %v496
          %v1681 = vunpack.c.h.b16 %v496
          %v1682 = vunpack.c.l.b16 %v497
          %v1683 = vunpack.c.h.b16 %v497
          %v1684 = vunpack.c.l.b16 %v498
          %v1685 = vunpack.c.h.b16 %v498
          %v1686 = vunpack.c.l.b16 %v499
          %v1687 = vunpack.c.h.b16 %v499
          %v1688 = vunpack.c.l.b16 %v500
          %v1689 = vunpack.c.h.b16 %v500
          %v1690 = vunpack.c.l.b16 %v501
          %v1691 = vunpack.c.h.b16 %v501
          %v1692 = vunpack.c.l.b16 %v502
          %v1693 = vunpack.c.h.b16 %v502
          %v1694 = vpack.c.b16 %v1632, %v1630
          %v1695 = vpack.c.b16 %v1633, %v1631
          %v1696 = vpack.c.b16 %v1636, %v1634
          %v1697 = vpack.c.b16 %v1637, %v1635
          %v1698 = vpack.c.b16 %v1640, %v1638
          %v1699 = vpack.c.b16 %v1641, %v1639
          %v1700 = vpack.c.b16 %v1644, %v1642
          %v1701 = vpack.c.b16 %v1645, %v1643
          %v1702 = vpack.c.b16 %v1648, %v1646
          %v1703 = vpack.c.b16 %v1649, %v1647
          %v1704 = vpack.c.b16 %v1652, %v1650
          %v1705 = vpack.c.b16 %v1653, %v1651
          %v1706 = vpack.c.b16 %v1656, %v1654
          %v1707 = vpack.c.b16 %v1657, %v1655
          %v1708 = vpack.c.b16 %v1660, %v1658
          %v1709 = vpack.c.b16 %v1661, %v1659
          %v1710 = vpack.c.b16 %v1664, %v1662
          %v1711 = vpack.c.b16 %v1665, %v1663
          %v1712 = vpack.c.b16 %v1668, %v1666
          %v1713 = vpack.c.b16 %v1669, %v1667
          %v1714 = vpack.c.b16 %v1672, %v1670
          %v1715 = vpack.c.b16 %v1673, %v1671
          %v1716 = vpack.c.b16 %v1676, %v1674
          %v1717 = vpack.c.b16 %v1677, %v1675
          %v1718 = vpack.c.b16 %v1680, %v1678
          %v1719 = vpack.c.b16 %v1681, %v1679
          %v1720 = vpack.c.b16 %v1684, %v1682
          %v1721 = vpack.c.b16 %v1685, %v1683
          %v1722 = vpack.c.b16 %v1688, %v1686
          %v1723 = vpack.c.b16 %v1689, %v1687
          %v1724 = vpack.c.b16 %v1692, %v1690
          %v1725 = vpack.c.b16 %v1693, %v1691
          %1758 = vmatprep.subr.bf16.mxu0 0
          %1759 = vmatpush1.bf16.msra.mxu0 %v1582
          %1760 = vmatprep.subr.bf16.mxu0 0
          %1761 = vmatpush1.bf16.msra.mxu0 %v1583
          %1762 = vmatprep.subr.bf16.mxu0 0
          %1763 = vmatpush1.bf16.msra.mxu0 %v1584
          %1764 = vmatprep.subr.bf16.mxu0 0
          %1765 = vmatpush1.bf16.msra.mxu0 %v1585
          %1766 = vmatprep.subr.bf16.mxu0 0
          %1767 = vmatpush1.bf16.msra.mxu0 %v1586
          %1768 = vmatprep.subr.bf16.mxu0 0
          %1769 = vmatpush1.bf16.msra.mxu0 %v1587
          %1770 = vmatprep.subr.bf16.mxu0 0
          %1771 = vmatpush1.bf16.msra.mxu0 %v1588
          %1772 = vmatprep.subr.bf16.mxu0 0
          %1773 = vmatpush1.bf16.msra.mxu0 %v1589
          %1774 = vmatprep.subr.bf16.mxu0 0
          %1775 = vmatpush1.bf16.msra.mxu0 %v1590
          %1776 = vmatprep.subr.bf16.mxu0 0
          %1777 = vmatpush1.bf16.msra.mxu0 %v1591
          %1778 = vmatprep.subr.bf16.mxu0 0
          %1779 = vmatpush1.bf16.msra.mxu0 %v1592
          %1780 = vmatprep.subr.bf16.mxu0 0
          %1781 = vmatpush1.bf16.msra.mxu0 %v1593
          %1782 = vmatprep.subr.bf16.mxu0 0
          %1783 = vmatpush1.bf16.msra.mxu0 %v1594
          %1784 = vmatprep.subr.bf16.mxu0 0
          %1785 = vmatpush1.bf16.msra.mxu0 %v1595
          %1786 = vmatprep.subr.bf16.mxu0 0
          %1787 = vmatpush1.bf16.msra.mxu0 %v1596
          %1788 = vmatprep.subr.bf16.mxu0 0
          %1789 = vmatpush1.bf16.msra.mxu0 %v1597
          %1790 = vmatprep.mubr.bf16.mxu0 %v1695
          %1791 = vmatmul.mubr.bf16.gmra.mrb[0].mxu0 %v1694
          %v1792 = vpop.f32.mrb[0].mxu0
          %v1793 = vadd.f32 0.0, %v1792
          %v1794 = vpop.f32.mrb[0].mxu0
          %v1795 = vpop.f32.mrb[0].mxu0
          %v1796 = vadd.f32 0.0, %v1795
          %v1797 = vpop.f32.mrb[0].mxu0
          %1798 = vmatprep.mubr.bf16.mxu0 %v1697
          %1799 = vmatmul.mubr.bf16.gmra.mrb[0].mxu0 %v1696
          %v1800 = vpop.f32.mrb[0].mxu0
          %v1801 = vadd.f32 0.0, %v1800
          %v1802 = vpop.f32.mrb[0].mxu0
          %v1803 = vpop.f32.mrb[0].mxu0
          %v1804 = vadd.f32 0.0, %v1803
          %v1805 = vpop.f32.mrb[0].mxu0
          %1806 = vmatprep.mubr.bf16.mxu0 %v1699
          %1807 = vmatmul.mubr.bf16.gmra.mrb[0].mxu0 %v1698
          %v1808 = vpop.f32.mrb[0].mxu0
          %v1809 = vadd.f32 0.0, %v1808
          %v1810 = vpop.f32.mrb[0].mxu0
          %v1811 = vpop.f32.mrb[0].mxu0
          %v1812 = vadd.f32 0.0, %v1811
          %v1813 = vpop.f32.mrb[0].mxu0
          %1814 = vmatprep.mubr.bf16.mxu0 %v1701
          %1815 = vmatmul.mubr.bf16.gmra.mrb[0].mxu0 %v1700
          %v1816 = vpop.f32.mrb[0].mxu0
          %v1817 = vadd.f32 0.0, %v1816
          %v1818 = vpop.f32.mrb[0].mxu0
          %v1819 = vpop.f32.mrb[0].mxu0
          %v1820 = vadd.f32 0.0, %v1819
          %v1821 = vpop.f32.mrb[0].mxu0
          %1822 = vmatprep.mubr.bf16.mxu0 %v1703
          %1823 = vmatmul.mubr.bf16.gmra.mrb[0].mxu0 %v1702
          %v1824 = vpop.f32.mrb[0].mxu0
          %v1825 = vadd.f32 0.0, %v1824
          %v1826 = vpop.f32.mrb[0].mxu0
          %v1827 = vpop.f32.mrb[0].mxu0
          %v1828 = vadd.f32 0.0, %v1827
          %v1829 = vpop.f32.mrb[0].mxu0
          %1830 = vmatprep.mubr.bf16.mxu0 %v1705
          %1831 = vmatmul.mubr.bf16.gmra.mrb[0].mxu0 %v1704
          %v1832 = vpop.f32.mrb[0].mxu0
          %v1833 = vadd.f32 0.0, %v1832
          %v1834 = vpop.f32.mrb[0].mxu0
          %v1835 = vpop.f32.mrb[0].mxu0
          %v1836 = vadd.f32 0.0, %v1835
          %v1837 = vpop.f32.mrb[0].mxu0
          %1838 = vmatprep.mubr.bf16.mxu0 %v1707
          %1839 = vmatmul.mubr.bf16.gmra.mrb[0].mxu0 %v1706
          %v1840 = vpop.f32.mrb[0].mxu0
          %v1841 = vadd.f32 0.0, %v1840
          %v1842 = vpop.f32.mrb[0].mxu0
          %v1843 = vpop.f32.mrb[0].mxu0
          %v1844 = vadd.f32 0.0, %v1843
          %v1845 = vpop.f32.mrb[0].mxu0
          %1846 = vmatprep.mubr.bf16.mxu0 %v1709
          %1847 = vmatmul.mubr.bf16.gmra.mrb[0].mxu0 %v1708
          %v1848 = vpop.f32.mrb[0].mxu0
          %v1849 = vadd.f32 0.0, %v1848
          %v1850 = vpop.f32.mrb[0].mxu0
          %v1851 = vpop.f32.mrb[0].mxu0
          %v1852 = vadd.f32 0.0, %v1851
          %v1853 = vpop.f32.mrb[0].mxu0
          %1854 = vmatprep.mubr.bf16.mxu0 %v1711
          %1855 = vmatmul.mubr.bf16.gmra.mrb[0].mxu0 %v1710
          %v1856 = vpop.f32.mrb[0].mxu0
          %v1857 = vadd.f32 0.0, %v1856
          %v1858 = vpop.f32.mrb[0].mxu0
          %v1859 = vpop.f32.mrb[0].mxu0
          %v1860 = vadd.f32 0.0, %v1859
          %v1861 = vpop.f32.mrb[0].mxu0
          %1862 = vmatprep.mubr.bf16.mxu0 %v1713
          %1863 = vmatmul.mubr.bf16.gmra.mrb[0].mxu0 %v1712
          %v1864 = vpop.f32.mrb[0].mxu0
          %v1865 = vadd.f32 0.0, %v1864
          %v1866 = vpop.f32.mrb[0].mxu0
          %v1867 = vpop.f32.mrb[0].mxu0
          %v1868 = vadd.f32 0.0, %v1867
          %v1869 = vpop.f32.mrb[0].mxu0
          %1870 = vmatprep.mubr.bf16.mxu0 %v1715
          %1871 = vmatmul.mubr.bf16.gmra.mrb[0].mxu0 %v1714
          %v1872 = vpop.f32.mrb[0].mxu0
          %v1873 = vadd.f32 0.0, %v1872
          %v1874 = vpop.f32.mrb[0].mxu0
          %v1875 = vpop.f32.mrb[0].mxu0
          %v1876 = vadd.f32 0.0, %v1875
          %v1877 = vpop.f32.mrb[0].mxu0
          %1878 = vmatprep.mubr.bf16.mxu0 %v1717
          %1879 = vmatmul.mubr.bf16.gmra.mrb[0].mxu0 %v1716
          %v1880 = vpop.f32.mrb[0].mxu0
          %v1881 = vadd.f32 0.0, %v1880
          %v1882 = vpop.f32.mrb[0].mxu0
          %v1883 = vpop.f32.mrb[0].mxu0
          %v1884 = vadd.f32 0.0, %v1883
          %v1885 = vpop.f32.mrb[0].mxu0
          %1886 = vmatprep.mubr.bf16.mxu0 %v1719
          %1887 = vmatmul.mubr.bf16.gmra.mrb[0].mxu0 %v1718
          %v1888 = vpop.f32.mrb[0].mxu0
          %v1889 = vadd.f32 0.0, %v1888
          %v1890 = vpop.f32.mrb[0].mxu0
          %v1891 = vpop.f32.mrb[0].mxu0
          %v1892 = vadd.f32 0.0, %v1891
          %v1893 = vpop.f32.mrb[0].mxu0
          %1894 = vmatprep.mubr.bf16.mxu0 %v1721
          %1895 = vmatmul.mubr.bf16.gmra.mrb[0].mxu0 %v1720
          %v1896 = vpop.f32.mrb[0].mxu0
          %v1897 = vadd.f32 0.0, %v1896
          %v1898 = vpop.f32.mrb[0].mxu0
          %v1899 = vpop.f32.mrb[0].mxu0
          %v1900 = vadd.f32 0.0, %v1899
          %v1901 = vpop.f32.mrb[0].mxu0
          %1902 = vmatprep.mubr.bf16.mxu0 %v1723
          %1903 = vmatmul.mubr.bf16.gmra.mrb[0].mxu0 %v1722
          %v1904 = vpop.f32.mrb[0].mxu0
          %v1905 = vadd.f32 0.0, %v1904
          %v1906 = vpop.f32.mrb[0].mxu0
          %v1907 = vpop.f32.mrb[0].mxu0
          %v1908 = vadd.f32 0.0, %v1907
          %v1909 = vpop.f32.mrb[0].mxu0
          %1910 = vmatprep.mubr.bf16.mxu0 %v1725
          %1911 = vmatmul.mubr.bf16.gmra.mrb[0].mxu0 %v1724
          %v1912 = vpop.f32.mrb[0].mxu0
          %v1913 = vadd.f32 0.0, %v1912
          %v1914 = vpop.f32.mrb[0].mxu0
          %v1915 = vpop.f32.mrb[0].mxu0
          %v1916 = vadd.f32 0.0, %v1915
          %v1917 = vpop.f32.mrb[0].mxu0
          %1918 = vdwg.mxu0
          %p1919 = scmp.eq.s32.totalorder %s33, 0
          // Predicated region
          $region101: #{tpu_custom_call.1} parent=99 // pred_check
            %p1920 = pneg %p1919
          $region102: #{tpu_custom_call.1} parent=99 // pred_check_branch
            %1922 = sbr.rel (%p1920) target = $region104
          $region103: #{tpu_custom_call.1} parent=99 // pred_region
            %1923 = vst [vmem:[#allocation3] sm:$0xff] %v1793
            %1924 = vst [vmem:[#allocation3 + $0x8] sm:$0xff] %v1796
            %1925 = vst [vmem:[#allocation3 + $0x10] sm:$0xff] %v1801
            %1926 = vst [vmem:[#allocation3 + $0x18] sm:$0xff] %v1804
            %1927 = vst [vmem:[#allocation3 + $0x20] sm:$0xff] %v1809
            %1928 = vst [vmem:[#allocation3 + $0x28] sm:$0xff] %v1812
            %1929 = vst [vmem:[#allocation3 + $0x30] sm:$0xff] %v1817
            %1930 = vst [vmem:[#allocation3 + $0x38] sm:$0xff] %v1820
            %1931 = vst [vmem:[#allocation3 + $0x40] sm:$0xff] %v1825
            %1932 = vst [vmem:[#allocation3 + $0x48] sm:$0xff] %v1828
            %1933 = vst [vmem:[#allocation3 + $0x50] sm:$0xff] %v1833
            %1934 = vst [vmem:[#allocation3 + $0x58] sm:$0xff] %v1836
            %1935 = vst [vmem:[#allocation3 + $0x60] sm:$0xff] %v1841
            %1936 = vst [vmem:[#allocation3 + $0x68] sm:$0xff] %v1844
            %1937 = vst [vmem:[#allocation3 + $0x70] sm:$0xff] %v1849
            %1938 = vst [vmem:[#allocation3 + $0x78] sm:$0xff] %v1852
            %1939 = vst [vmem:[#allocation3 + $0x80] sm:$0xff] %v1857
            %1940 = vst [vmem:[#allocation3 + $0x88] sm:$0xff] %v1860
            %1941 = vst [vmem:[#allocation3 + $0x90] sm:$0xff] %v1865
            %1942 = vst [vmem:[#allocation3 + $0x98] sm:$0xff] %v1868
            %1943 = vst [vmem:[#allocation3 + $0xa0] sm:$0xff] %v1873
            %1944 = vst [vmem:[#allocation3 + $0xa8] sm:$0xff] %v1876
            %1945 = vst [vmem:[#allocation3 + $0xb0] sm:$0xff] %v1881
            %1946 = vst [vmem:[#allocation3 + $0xb8] sm:$0xff] %v1884
            %1947 = vst [vmem:[#allocation3 + $0xc0] sm:$0xff] %v1889
            %1948 = vst [vmem:[#allocation3 + $0xc8] sm:$0xff] %v1892
            %1949 = vst [vmem:[#allocation3 + $0xd0] sm:$0xff] %v1897
            %1950 = vst [vmem:[#allocation3 + $0xd8] sm:$0xff] %v1900
            %1951 = vst [vmem:[#allocation3 + $0xe0] sm:$0xff] %v1905
            %1952 = vst [vmem:[#allocation3 + $0xe8] sm:$0xff] %v1908
            %1953 = vst [vmem:[#allocation3 + $0xf0] sm:$0xff] %v1913
            %1954 = vst [vmem:[#allocation3 + $0xf8] sm:$0xff] %v1916
          $region104: #{tpu_custom_call.1} parent=99 // pred_fallthru
            _
          %p1955 = scmp.gt.s32.totalorder %s33, 0
          // Predicated region
          $region105: #{tpu_custom_call.1} parent=99 // pred_check
            %p1956 = pneg %p1955
          $region106: #{tpu_custom_call.1} parent=99 // pred_check_branch
            %1958 = sbr.rel (%p1956) target = $region108
          $region107: #{tpu_custom_call.1} parent=99 // pred_region
            %v1959 = vld [vmem:[#allocation3] sm:$0xff]
            %v1960 = vld [vmem:[#allocation3 + $0x8] sm:$0xff]
            %v1961 = vld [vmem:[#allocation3 + $0x10] sm:$0xff]
            %v1962 = vld [vmem:[#allocation3 + $0x18] sm:$0xff]
            %v1963 = vld [vmem:[#allocation3 + $0x20] sm:$0xff]
            %v1964 = vld [vmem:[#allocation3 + $0x28] sm:$0xff]
            %v1965 = vld [vmem:[#allocation3 + $0x30] sm:$0xff]
            %v1966 = vld [vmem:[#allocation3 + $0x38] sm:$0xff]
            %v1967 = vld [vmem:[#allocation3 + $0x40] sm:$0xff]
            %v1968 = vld [vmem:[#allocation3 + $0x48] sm:$0xff]
            %v1969 = vld [vmem:[#allocation3 + $0x50] sm:$0xff]
            %v1970 = vld [vmem:[#allocation3 + $0x58] sm:$0xff]
            %v1971 = vld [vmem:[#allocation3 + $0x60] sm:$0xff]
            %v1972 = vld [vmem:[#allocation3 + $0x68] sm:$0xff]
            %v1973 = vld [vmem:[#allocation3 + $0x70] sm:$0xff]
            %v1974 = vld [vmem:[#allocation3 + $0x78] sm:$0xff]
            %v1975 = vld [vmem:[#allocation3 + $0x80] sm:$0xff]
            %v1976 = vld [vmem:[#allocation3 + $0x88] sm:$0xff]
            %v1977 = vld [vmem:[#allocation3 + $0x90] sm:$0xff]
            %v1978 = vld [vmem:[#allocation3 + $0x98] sm:$0xff]
            %v1979 = vld [vmem:[#allocation3 + $0xa0] sm:$0xff]
            %v1980 = vld [vmem:[#allocation3 + $0xa8] sm:$0xff]
            %v1981 = vld [vmem:[#allocation3 + $0xb0] sm:$0xff]
            %v1982 = vld [vmem:[#allocation3 + $0xb8] sm:$0xff]
            %v1983 = vld [vmem:[#allocation3 + $0xc0] sm:$0xff]
            %v1984 = vld [vmem:[#allocation3 + $0xc8] sm:$0xff]
            %v1985 = vld [vmem:[#allocation3 + $0xd0] sm:$0xff]
            %v1986 = vld [vmem:[#allocation3 + $0xd8] sm:$0xff]
            %v1987 = vld [vmem:[#allocation3 + $0xe0] sm:$0xff]
            %v1988 = vld [vmem:[#allocation3 + $0xe8] sm:$0xff]
            %v1989 = vld [vmem:[#allocation3 + $0xf0] sm:$0xff]
            %v1990 = vld [vmem:[#allocation3 + $0xf8] sm:$0xff]
            %v1991 = vadd.f32 %v1959, %v1793
            %v1992 = vadd.f32 %v1960, %v1796
            %v1993 = vadd.f32 %v1961, %v1801
            %v1994 = vadd.f32 %v1962, %v1804
            %v1995 = vadd.f32 %v1963, %v1809
            %v1996 = vadd.f32 %v1964, %v1812
            %v1997 = vadd.f32 %v1965, %v1817
            %v1998 = vadd.f32 %v1966, %v1820
            %v1999 = vadd.f32 %v1967, %v1825
            %v2000 = vadd.f32 %v1968, %v1828
            %v2001 = vadd.f32 %v1969, %v1833
            %v2002 = vadd.f32 %v1970, %v1836
            %v2003 = vadd.f32 %v1971, %v1841
            %v2004 = vadd.f32 %v1972, %v1844
            %v2005 = vadd.f32 %v1973, %v1849
            %v2006 = vadd.f32 %v1974, %v1852
            %v2007 = vadd.f32 %v1975, %v1857
            %v2008 = vadd.f32 %v1976, %v1860
            %v2009 = vadd.f32 %v1977, %v1865
            %v2010 = vadd.f32 %v1978, %v1868
            %v2011 = vadd.f32 %v1979, %v1873
            %v2012 = vadd.f32 %v1980, %v1876
            %v2013 = vadd.f32 %v1981, %v1881
            %v2014 = vadd.f32 %v1982, %v1884
            %v2015 = vadd.f32 %v1983, %v1889
            %v2016 = vadd.f32 %v1984, %v1892
            %v2017 = vadd.f32 %v1985, %v1897
            %v2018 = vadd.f32 %v1986, %v1900
            %v2019 = vadd.f32 %v1987, %v1905
            %v2020 = vadd.f32 %v1988, %v1908
            %v2021 = vadd.f32 %v1989, %v1913
            %v2022 = vadd.f32 %v1990, %v1916
            %2023 = vst [vmem:[#allocation3] sm:$0xff] %v1991
            %2024 = vst [vmem:[#allocation3 + $0x8] sm:$0xff] %v1992
            %2025 = vst [vmem:[#allocation3 + $0x10] sm:$0xff] %v1993
            %2026 = vst [vmem:[#allocation3 + $0x18] sm:$0xff] %v1994
            %2027 = vst [vmem:[#allocation3 + $0x20] sm:$0xff] %v1995
            %2028 = vst [vmem:[#allocation3 + $0x28] sm:$0xff] %v1996
            %2029 = vst [vmem:[#allocation3 + $0x30] sm:$0xff] %v1997
            %2030 = vst [vmem:[#allocation3 + $0x38] sm:$0xff] %v1998
            %2031 = vst [vmem:[#allocation3 + $0x40] sm:$0xff] %v1999
            %2032 = vst [vmem:[#allocation3 + $0x48] sm:$0xff] %v2000
            %2033 = vst [vmem:[#allocation3 + $0x50] sm:$0xff] %v2001
            %2034 = vst [vmem:[#allocation3 + $0x58] sm:$0xff] %v2002
            %2035 = vst [vmem:[#allocation3 + $0x60] sm:$0xff] %v2003
            %2036 = vst [vmem:[#allocation3 + $0x68] sm:$0xff] %v2004
            %2037 = vst [vmem:[#allocation3 + $0x70] sm:$0xff] %v2005
            %2038 = vst [vmem:[#allocation3 + $0x78] sm:$0xff] %v2006
            %2039 = vst [vmem:[#allocation3 + $0x80] sm:$0xff] %v2007
            %2040 = vst [vmem:[#allocation3 + $0x88] sm:$0xff] %v2008
            %2041 = vst [vmem:[#allocation3 + $0x90] sm:$0xff] %v2009
            %2042 = vst [vmem:[#allocation3 + $0x98] sm:$0xff] %v2010
            %2043 = vst [vmem:[#allocation3 + $0xa0] sm:$0xff] %v2011
            %2044 = vst [vmem:[#allocation3 + $0xa8] sm:$0xff] %v2012
            %2045 = vst [vmem:[#allocation3 + $0xb0] sm:$0xff] %v2013
            %2046 = vst [vmem:[#allocation3 + $0xb8] sm:$0xff] %v2014
            %2047 = vst [vmem:[#allocation3 + $0xc0] sm:$0xff] %v2015
            %2048 = vst [vmem:[#allocation3 + $0xc8] sm:$0xff] %v2016
            %2049 = vst [vmem:[#allocation3 + $0xd0] sm:$0xff] %v2017
            %2050 = vst [vmem:[#allocation3 + $0xd8] sm:$0xff] %v2018
            %2051 = vst [vmem:[#allocation3 + $0xe0] sm:$0xff] %v2019
            %2052 = vst [vmem:[#allocation3 + $0xe8] sm:$0xff] %v2020
            %2053 = vst [vmem:[#allocation3 + $0xf0] sm:$0xff] %v2021
            %2054 = vst [vmem:[#allocation3 + $0xf8] sm:$0xff] %v2022
          $region108: #{tpu_custom_call.1} parent=99 // pred_fallthru
            _
        $region100: #{tpu_custom_call.1} parent=59 // pred_fallthru
          _
        %p2055 = scmp.eq.s32.totalorder %s32, 2
        // Predicated region
        $region109: #{tpu_custom_call.1} parent=59 // pred_check
          %p2056 = pneg %p2055
        $region110: #{tpu_custom_call.1} parent=59 // pred_check_branch
          %2058 = sbr.rel (%p2056) target = $region112
        $region111: #{tpu_custom_call.1} parent=59 // pred_region
          %s2059 = sshra.s32 %s470, 4
          %s2060 = sand.u32 %s470, 15
          %s2061 = smul.addr %s2059, 8
          %s2062 = scalar_lea.vmem [#allocation2], %s2061
          %v2063 = vld [vmem:[%s2062] sm:$0xff]
          %v2064 = vld [vmem:[%s2062 + $0x8] sm:$0xff]
          %v2065 = vld [vmem:[%s2062 + $0x10] sm:$0xff]
          %v2066 = vld [vmem:[%s2062 + $0x18] sm:$0xff]
          %v2067 = vld [vmem:[%s2062 + $0x20] sm:$0xff]
          %v2068 = vld [vmem:[%s2062 + $0x28] sm:$0xff]
          %v2069 = vld [vmem:[%s2062 + $0x30] sm:$0xff]
          %v2070 = vld [vmem:[%s2062 + $0x38] sm:$0xff]
          %v2071 = vld [vmem:[%s2062 + $0x40] sm:$0xff]
          %v2072 = vld [vmem:[%s2062 + $0x48] sm:$0xff]
          %v2073 = vld [vmem:[%s2062 + $0x50] sm:$0xff]
          %v2074 = vld [vmem:[%s2062 + $0x58] sm:$0xff]
          %v2075 = vld [vmem:[%s2062 + $0x60] sm:$0xff]
          %v2076 = vld [vmem:[%s2062 + $0x68] sm:$0xff]
          %v2077 = vld [vmem:[%s2062 + $0x70] sm:$0xff]
          %v2078 = vld [vmem:[%s2062 + $0x78] sm:$0xff]
          %v2079 = vld [vmem:[#allocation12] sm:$0xf]
          %v2080 = vld [vmem:[#allocation12 + $0x4] sm:$0xf]
          %v2081 = vld [vmem:[#allocation12 + $0x8] sm:$0xf]
          %v2082 = vld [vmem:[#allocation12 + $0xc] sm:$0xf]
          %v2083 = vld [vmem:[#allocation12 + $0x10] sm:$0xf]
          %v2084 = vld [vmem:[#allocation12 + $0x14] sm:$0xf]
          %v2085 = vld [vmem:[#allocation12 + $0x18] sm:$0xf]
          %v2086 = vld [vmem:[#allocation12 + $0x1c] sm:$0xf]
          %v2087 = vld [vmem:[#allocation12 + $0x20] sm:$0xf]
          %v2088 = vld [vmem:[#allocation12 + $0x24] sm:$0xf]
          %v2089 = vld [vmem:[#allocation12 + $0x28] sm:$0xf]
          %v2090 = vld [vmem:[#allocation12 + $0x2c] sm:$0xf]
          %v2091 = vld [vmem:[#allocation12 + $0x30] sm:$0xf]
          %v2092 = vld [vmem:[#allocation12 + $0x34] sm:$0xf]
          %v2093 = vld [vmem:[#allocation12 + $0x38] sm:$0xf]
          %v2094 = vld [vmem:[#allocation12 + $0x3c] sm:$0xf]
          %v2111 = vunpack.c.l.b16 %v2079
          %v2112 = vunpack.c.l.b16 %v2080
          %v2113 = vunpack.c.l.b16 %v2081
          %v2114 = vunpack.c.l.b16 %v2082
          %v2115 = vunpack.c.l.b16 %v2083
          %v2116 = vunpack.c.l.b16 %v2084
          %v2117 = vunpack.c.l.b16 %v2085
          %v2118 = vunpack.c.l.b16 %v2086
          %v2119 = vunpack.c.l.b16 %v2087
          %v2120 = vunpack.c.l.b16 %v2088
          %v2121 = vunpack.c.l.b16 %v2089
          %v2122 = vunpack.c.l.b16 %v2090
          %v2123 = vunpack.c.l.b16 %v2091
          %v2124 = vunpack.c.l.b16 %v2092
          %v2125 = vunpack.c.l.b16 %v2093
          %v2126 = vunpack.c.l.b16 %v2094
          %v2127 = vpack.c.b16 %v2112, %v2111
          %v2128 = vpack.c.b16 %v2114, %v2113
          %v2129 = vpack.c.b16 %v2116, %v2115
          %v2130 = vpack.c.b16 %v2118, %v2117
          %v2131 = vpack.c.b16 %v2120, %v2119
          %v2132 = vpack.c.b16 %v2122, %v2121
          %v2133 = vpack.c.b16 %v2124, %v2123
          %v2134 = vpack.c.b16 %v2126, %v2125
          %2143 = vmatprep.subr.bf16.mxu0 0
          %2144 = vmatpush1.bf16.msra.mxu0 %v2127
          %2145 = vmatprep.subr.bf16.mxu0 0
          %2146 = vmatpush1.bf16.msra.mxu0 %v2128
          %2147 = vmatprep.subr.bf16.mxu0 0
          %2148 = vmatpush1.bf16.msra.mxu0 %v2129
          %2149 = vmatprep.subr.bf16.mxu0 0
          %2150 = vmatpush1.bf16.msra.mxu0 %v2130
          %2151 = vmatprep.subr.bf16.mxu0 0
          %2152 = vmatpush1.bf16.msra.mxu0 %v2131
          %2153 = vmatprep.subr.bf16.mxu0 0
          %2154 = vmatpush1.bf16.msra.mxu0 %v2132
          %2155 = vmatprep.subr.bf16.mxu0 0
          %2156 = vmatpush1.bf16.msra.mxu0 %v2133
          %2157 = vmatprep.subr.bf16.mxu0 0
          %2158 = vmatpush1.bf16.msra.mxu0 %v2134
          %2159 = vmatprep.subr.bf16.mxu0 0
          %2160 = vmatpush1.bf16.msra.mxu0 0
          %2161 = vmatprep.subr.bf16.mxu0 0
          %2162 = vmatpush1.bf16.msra.mxu0 0
          %2163 = vmatprep.subr.bf16.mxu0 0
          %2164 = vmatpush1.bf16.msra.mxu0 0
          %2165 = vmatprep.subr.bf16.mxu0 0
          %2166 = vmatpush1.bf16.msra.mxu0 0
          %2167 = vmatprep.subr.bf16.mxu0 0
          %2168 = vmatpush1.bf16.msra.mxu0 0
          %2169 = vmatprep.subr.bf16.mxu0 0
          %2170 = vmatpush1.bf16.msra.mxu0 0
          %2171 = vmatprep.subr.bf16.mxu0 0
          %2172 = vmatpush1.bf16.msra.mxu0 0
          %2173 = vmatprep.subr.bf16.mxu0 0
          %2174 = vmatpush1.bf16.msra.mxu0 0
          %2175 = vmatprep.mubr.bf16.mxu0 0
          %2176 = vmatmul.mubr.bf16.gmra.mrb[0].mxu0 %v2063
          %v2177 = vpop.f32.mrb[0].mxu0
          %v2178 = vadd.f32 0.0, %v2177
          %v2179 = vpop.f32.mrb[0].mxu0
          %v2180 = vpop.f32.mrb[0].mxu0
          %v2181 = vadd.f32 0.0, %v2180
          %v2182 = vpop.f32.mrb[0].mxu0
          %2183 = vmatprep.mubr.bf16.mxu0 0
          %2184 = vmatmul.mubr.bf16.gmra.mrb[0].mxu0 %v2064
          %v2185 = vpop.f32.mrb[0].mxu0
          %v2186 = vadd.f32 0.0, %v2185
          %v2187 = vpop.f32.mrb[0].mxu0
          %v2188 = vpop.f32.mrb[0].mxu0
          %v2189 = vadd.f32 0.0, %v2188
          %v2190 = vpop.f32.mrb[0].mxu0
          %2191 = vmatprep.mubr.bf16.mxu0 0
          %2192 = vmatmul.mubr.bf16.gmra.mrb[0].mxu0 %v2065
          %v2193 = vpop.f32.mrb[0].mxu0
          %v2194 = vadd.f32 0.0, %v2193
          %v2195 = vpop.f32.mrb[0].mxu0
          %v2196 = vpop.f32.mrb[0].mxu0
          %v2197 = vadd.f32 0.0, %v2196
          %v2198 = vpop.f32.mrb[0].mxu0
          %2199 = vmatprep.mubr.bf16.mxu0 0
          %2200 = vmatmul.mubr.bf16.gmra.mrb[0].mxu0 %v2066
          %v2201 = vpop.f32.mrb[0].mxu0
          %v2202 = vadd.f32 0.0, %v2201
          %v2203 = vpop.f32.mrb[0].mxu0
          %v2204 = vpop.f32.mrb[0].mxu0
          %v2205 = vadd.f32 0.0, %v2204
          %v2206 = vpop.f32.mrb[0].mxu0
          %2207 = vmatprep.mubr.bf16.mxu0 0
          %2208 = vmatmul.mubr.bf16.gmra.mrb[0].mxu0 %v2067
          %v2209 = vpop.f32.mrb[0].mxu0
          %v2210 = vadd.f32 0.0, %v2209
          %v2211 = vpop.f32.mrb[0].mxu0
          %v2212 = vpop.f32.mrb[0].mxu0
          %v2213 = vadd.f32 0.0, %v2212
          %v2214 = vpop.f32.mrb[0].mxu0
          %2215 = vmatprep.mubr.bf16.mxu0 0
          %2216 = vmatmul.mubr.bf16.gmra.mrb[0].mxu0 %v2068
          %v2217 = vpop.f32.mrb[0].mxu0
          %v2218 = vadd.f32 0.0, %v2217
          %v2219 = vpop.f32.mrb[0].mxu0
          %v2220 = vpop.f32.mrb[0].mxu0
          %v2221 = vadd.f32 0.0, %v2220
          %v2222 = vpop.f32.mrb[0].mxu0
          %2223 = vmatprep.mubr.bf16.mxu0 0
          %2224 = vmatmul.mubr.bf16.gmra.mrb[0].mxu0 %v2069
          %v2225 = vpop.f32.mrb[0].mxu0
          %v2226 = vadd.f32 0.0, %v2225
          %v2227 = vpop.f32.mrb[0].mxu0
          %v2228 = vpop.f32.mrb[0].mxu0
          %v2229 = vadd.f32 0.0, %v2228
          %v2230 = vpop.f32.mrb[0].mxu0
          %2231 = vmatprep.mubr.bf16.mxu0 0
          %2232 = vmatmul.mubr.bf16.gmra.mrb[0].mxu0 %v2070
          %v2233 = vpop.f32.mrb[0].mxu0
          %v2234 = vadd.f32 0.0, %v2233
          %v2235 = vpop.f32.mrb[0].mxu0
          %v2236 = vpop.f32.mrb[0].mxu0
          %v2237 = vadd.f32 0.0, %v2236
          %v2238 = vpop.f32.mrb[0].mxu0
          %2239 = vmatprep.mubr.bf16.mxu0 0
          %2240 = vmatmul.mubr.bf16.gmra.mrb[0].mxu0 %v2071
          %v2241 = vpop.f32.mrb[0].mxu0
          %v2242 = vadd.f32 0.0, %v2241
          %v2243 = vpop.f32.mrb[0].mxu0
          %v2244 = vpop.f32.mrb[0].mxu0
          %v2245 = vadd.f32 0.0, %v2244
          %v2246 = vpop.f32.mrb[0].mxu0
          %2247 = vmatprep.mubr.bf16.mxu0 0
          %2248 = vmatmul.mubr.bf16.gmra.mrb[0].mxu0 %v2072
          %v2249 = vpop.f32.mrb[0].mxu0
          %v2250 = vadd.f32 0.0, %v2249
          %v2251 = vpop.f32.mrb[0].mxu0
          %v2252 = vpop.f32.mrb[0].mxu0
          %v2253 = vadd.f32 0.0, %v2252
          %v2254 = vpop.f32.mrb[0].mxu0
          %2255 = vmatprep.mubr.bf16.mxu0 0
          %2256 = vmatmul.mubr.bf16.gmra.mrb[0].mxu0 %v2073
          %v2257 = vpop.f32.mrb[0].mxu0
          %v2258 = vadd.f32 0.0, %v2257
          %v2259 = vpop.f32.mrb[0].mxu0
          %v2260 = vpop.f32.mrb[0].mxu0
          %v2261 = vadd.f32 0.0, %v2260
          %v2262 = vpop.f32.mrb[0].mxu0
          %2263 = vmatprep.mubr.bf16.mxu0 0
          %2264 = vmatmul.mubr.bf16.gmra.mrb[0].mxu0 %v2074
          %v2265 = vpop.f32.mrb[0].mxu0
          %v2266 = vadd.f32 0.0, %v2265
          %v2267 = vpop.f32.mrb[0].mxu0
          %v2268 = vpop.f32.mrb[0].mxu0
          %v2269 = vadd.f32 0.0, %v2268
          %v2270 = vpop.f32.mrb[0].mxu0
          %2271 = vmatprep.mubr.bf16.mxu0 0
          %2272 = vmatmul.mubr.bf16.gmra.mrb[0].mxu0 %v2075
          %v2273 = vpop.f32.mrb[0].mxu0
          %v2274 = vadd.f32 0.0, %v2273
          %v2275 = vpop.f32.mrb[0].mxu0
          %v2276 = vpop.f32.mrb[0].mxu0
          %v2277 = vadd.f32 0.0, %v2276
          %v2278 = vpop.f32.mrb[0].mxu0
          %2279 = vmatprep.mubr.bf16.mxu0 0
          %2280 = vmatmul.mubr.bf16.gmra.mrb[0].mxu0 %v2076
          %v2281 = vpop.f32.mrb[0].mxu0
          %v2282 = vadd.f32 0.0, %v2281
          %v2283 = vpop.f32.mrb[0].mxu0
          %v2284 = vpop.f32.mrb[0].mxu0
          %v2285 = vadd.f32 0.0, %v2284
          %v2286 = vpop.f32.mrb[0].mxu0
          %2287 = vmatprep.mubr.bf16.mxu0 0
          %2288 = vmatmul.mubr.bf16.gmra.mrb[0].mxu0 %v2077
          %v2289 = vpop.f32.mrb[0].mxu0
          %v2290 = vadd.f32 0.0, %v2289
          %v2291 = vpop.f32.mrb[0].mxu0
          %v2292 = vpop.f32.mrb[0].mxu0
          %v2293 = vadd.f32 0.0, %v2292
          %v2294 = vpop.f32.mrb[0].mxu0
          %2295 = vmatprep.mubr.bf16.mxu0 0
          %2296 = vmatmul.mubr.bf16.gmra.mrb[0].mxu0 %v2078
          %v2297 = vpop.f32.mrb[0].mxu0
          %v2298 = vadd.f32 0.0, %v2297
          %v2299 = vpop.f32.mrb[0].mxu0
          %v2300 = vpop.f32.mrb[0].mxu0
          %v2301 = vadd.f32 0.0, %v2300
          %v2302 = vpop.f32.mrb[0].mxu0
          %2303 = vdwg.mxu0
          %v2304 = vpack.c.bf16 %v2181, %v2178
          %v2305 = vpack.c.bf16 %v2189, %v2186
          %v2306 = vpack.c.bf16 %v2197, %v2194
          %v2307 = vpack.c.bf16 %v2205, %v2202
          %v2308 = vpack.c.bf16 %v2213, %v2210
          %v2309 = vpack.c.bf16 %v2221, %v2218
          %v2310 = vpack.c.bf16 %v2229, %v2226
          %v2311 = vpack.c.bf16 %v2237, %v2234
          %v2312 = vpack.c.bf16 %v2245, %v2242
          %v2313 = vpack.c.bf16 %v2253, %v2250
          %v2314 = vpack.c.bf16 %v2261, %v2258
          %v2315 = vpack.c.bf16 %v2269, %v2266
          %v2316 = vpack.c.bf16 %v2277, %v2274
          %v2317 = vpack.c.bf16 %v2285, %v2282
          %v2318 = vpack.c.bf16 %v2293, %v2290
          %v2319 = vpack.c.bf16 %v2301, %v2298
          %v2352 = vunpack.c.l.b16 %v471
          %v2353 = vunpack.c.h.b16 %v471
          %v2354 = vunpack.c.l.b16 %v472
          %v2355 = vunpack.c.h.b16 %v472
          %v2356 = vunpack.c.l.b16 %v473
          %v2357 = vunpack.c.h.b16 %v473
          %v2358 = vunpack.c.l.b16 %v474
          %v2359 = vunpack.c.h.b16 %v474
          %v2360 = vunpack.c.l.b16 %v475
          %v2361 = vunpack.c.h.b16 %v475
          %v2362 = vunpack.c.l.b16 %v476
          %v2363 = vunpack.c.h.b16 %v476
          %v2364 = vunpack.c.l.b16 %v477
          %v2365 = vunpack.c.h.b16 %v477
          %v2366 = vunpack.c.l.b16 %v478
          %v2367 = vunpack.c.h.b16 %v478
          %v2368 = vunpack.c.l.b16 %v479
          %v2369 = vunpack.c.h.b16 %v479
          %v2370 = vunpack.c.l.b16 %v480
          %v2371 = vunpack.c.h.b16 %v480
          %v2372 = vunpack.c.l.b16 %v481
          %v2373 = vunpack.c.h.b16 %v481
          %v2374 = vunpack.c.l.b16 %v482
          %v2375 = vunpack.c.h.b16 %v482
          %v2376 = vunpack.c.l.b16 %v483
          %v2377 = vunpack.c.h.b16 %v483
          %v2378 = vunpack.c.l.b16 %v484
          %v2379 = vunpack.c.h.b16 %v484
          %v2380 = vunpack.c.l.b16 %v485
          %v2381 = vunpack.c.h.b16 %v485
          %v2382 = vunpack.c.l.b16 %v486
          %v2383 = vunpack.c.h.b16 %v486
          %v2384 = vunpack.c.l.b16 %v487
          %v2385 = vunpack.c.h.b16 %v487
          %v2386 = vunpack.c.l.b16 %v488
          %v2387 = vunpack.c.h.b16 %v488
          %v2388 = vunpack.c.l.b16 %v489
          %v2389 = vunpack.c.h.b16 %v489
          %v2390 = vunpack.c.l.b16 %v490
          %v2391 = vunpack.c.h.b16 %v490
          %v2392 = vunpack.c.l.b16 %v491
          %v2393 = vunpack.c.h.b16 %v491
          %v2394 = vunpack.c.l.b16 %v492
          %v2395 = vunpack.c.h.b16 %v492
          %v2396 = vunpack.c.l.b16 %v493
          %v2397 = vunpack.c.h.b16 %v493
          %v2398 = vunpack.c.l.b16 %v494
          %v2399 = vunpack.c.h.b16 %v494
          %v2400 = vunpack.c.l.b16 %v495
          %v2401 = vunpack.c.h.b16 %v495
          %v2402 = vunpack.c.l.b16 %v496
          %v2403 = vunpack.c.h.b16 %v496
          %v2404 = vunpack.c.l.b16 %v497
          %v2405 = vunpack.c.h.b16 %v497
          %v2406 = vunpack.c.l.b16 %v498
          %v2407 = vunpack.c.h.b16 %v498
          %v2408 = vunpack.c.l.b16 %v499
          %v2409 = vunpack.c.h.b16 %v499
          %v2410 = vunpack.c.l.b16 %v500
          %v2411 = vunpack.c.h.b16 %v500
          %v2412 = vunpack.c.l.b16 %v501
          %v2413 = vunpack.c.h.b16 %v501
          %v2414 = vunpack.c.l.b16 %v502
          %v2415 = vunpack.c.h.b16 %v502
          %v2416 = vpack.c.b16 %v2354, %v2352
          %v2417 = vpack.c.b16 %v2355, %v2353
          %v2418 = vpack.c.b16 %v2358, %v2356
          %v2419 = vpack.c.b16 %v2359, %v2357
          %v2420 = vpack.c.b16 %v2362, %v2360
          %v2421 = vpack.c.b16 %v2363, %v2361
          %v2422 = vpack.c.b16 %v2366, %v2364
          %v2423 = vpack.c.b16 %v2367, %v2365
          %v2424 = vpack.c.b16 %v2370, %v2368
          %v2425 = vpack.c.b16 %v2371, %v2369
          %v2426 = vpack.c.b16 %v2374, %v2372
          %v2427 = vpack.c.b16 %v2375, %v2373
          %v2428 = vpack.c.b16 %v2378, %v2376
          %v2429 = vpack.c.b16 %v2379, %v2377
          %v2430 = vpack.c.b16 %v2382, %v2380
          %v2431 = vpack.c.b16 %v2383, %v2381
          %v2432 = vpack.c.b16 %v2386, %v2384
          %v2433 = vpack.c.b16 %v2387, %v2385
          %v2434 = vpack.c.b16 %v2390, %v2388
          %v2435 = vpack.c.b16 %v2391, %v2389
          %v2436 = vpack.c.b16 %v2394, %v2392
          %v2437 = vpack.c.b16 %v2395, %v2393
          %v2438 = vpack.c.b16 %v2398, %v2396
          %v2439 = vpack.c.b16 %v2399, %v2397
          %v2440 = vpack.c.b16 %v2402, %v2400
          %v2441 = vpack.c.b16 %v2403, %v2401
          %v2442 = vpack.c.b16 %v2406, %v2404
          %v2443 = vpack.c.b16 %v2407, %v2405
          %v2444 = vpack.c.b16 %v2410, %v2408
          %v2445 = vpack.c.b16 %v2411, %v2409
          %v2446 = vpack.c.b16 %v2414, %v2412
          %v2447 = vpack.c.b16 %v2415, %v2413
          %2480 = vmatprep.subr.bf16.mxu0 0
          %2481 = vmatpush1.bf16.msra.mxu0 %v2304
          %2482 = vmatprep.subr.bf16.mxu0 0
          %2483 = vmatpush1.bf16.msra.mxu0 %v2305
          %2484 = vmatprep.subr.bf16.mxu0 0
          %2485 = vmatpush1.bf16.msra.mxu0 %v2306
          %2486 = vmatprep.subr.bf16.mxu0 0
          %2487 = vmatpush1.bf16.msra.mxu0 %v2307
          %2488 = vmatprep.subr.bf16.mxu0 0
          %2489 = vmatpush1.bf16.msra.mxu0 %v2308
          %2490 = vmatprep.subr.bf16.mxu0 0
          %2491 = vmatpush1.bf16.msra.mxu0 %v2309
          %2492 = vmatprep.subr.bf16.mxu0 0
          %2493 = vmatpush1.bf16.msra.mxu0 %v2310
          %2494 = vmatprep.subr.bf16.mxu0 0
          %2495 = vmatpush1.bf16.msra.mxu0 %v2311
          %2496 = vmatprep.subr.bf16.mxu0 0
          %2497 = vmatpush1.bf16.msra.mxu0 %v2312
          %2498 = vmatprep.subr.bf16.mxu0 0
          %2499 = vmatpush1.bf16.msra.mxu0 %v2313
          %2500 = vmatprep.subr.bf16.mxu0 0
          %2501 = vmatpush1.bf16.msra.mxu0 %v2314
          %2502 = vmatprep.subr.bf16.mxu0 0
          %2503 = vmatpush1.bf16.msra.mxu0 %v2315
          %2504 = vmatprep.subr.bf16.mxu0 0
          %2505 = vmatpush1.bf16.msra.mxu0 %v2316
          %2506 = vmatprep.subr.bf16.mxu0 0
          %2507 = vmatpush1.bf16.msra.mxu0 %v2317
          %2508 = vmatprep.subr.bf16.mxu0 0
          %2509 = vmatpush1.bf16.msra.mxu0 %v2318
          %2510 = vmatprep.subr.bf16.mxu0 0
          %2511 = vmatpush1.bf16.msra.mxu0 %v2319
          %2512 = vmatprep.mubr.bf16.mxu0 %v2417
          %2513 = vmatmul.mubr.bf16.gmra.mrb[0].mxu0 %v2416
          %v2514 = vpop.f32.mrb[0].mxu0
          %v2515 = vadd.f32 0.0, %v2514
          %v2516 = vpop.f32.mrb[0].mxu0
          %v2517 = vpop.f32.mrb[0].mxu0
          %v2518 = vadd.f32 0.0, %v2517
          %v2519 = vpop.f32.mrb[0].mxu0
          %2520 = vmatprep.mubr.bf16.mxu0 %v2419
          %2521 = vmatmul.mubr.bf16.gmra.mrb[0].mxu0 %v2418
          %v2522 = vpop.f32.mrb[0].mxu0
          %v2523 = vadd.f32 0.0, %v2522
          %v2524 = vpop.f32.mrb[0].mxu0
          %v2525 = vpop.f32.mrb[0].mxu0
          %v2526 = vadd.f32 0.0, %v2525
          %v2527 = vpop.f32.mrb[0].mxu0
          %2528 = vmatprep.mubr.bf16.mxu0 %v2421
          %2529 = vmatmul.mubr.bf16.gmra.mrb[0].mxu0 %v2420
          %v2530 = vpop.f32.mrb[0].mxu0
          %v2531 = vadd.f32 0.0, %v2530
          %v2532 = vpop.f32.mrb[0].mxu0
          %v2533 = vpop.f32.mrb[0].mxu0
          %v2534 = vadd.f32 0.0, %v2533
          %v2535 = vpop.f32.mrb[0].mxu0
          %2536 = vmatprep.mubr.bf16.mxu0 %v2423
          %2537 = vmatmul.mubr.bf16.gmra.mrb[0].mxu0 %v2422
          %v2538 = vpop.f32.mrb[0].mxu0
          %v2539 = vadd.f32 0.0, %v2538
          %v2540 = vpop.f32.mrb[0].mxu0
          %v2541 = vpop.f32.mrb[0].mxu0
          %v2542 = vadd.f32 0.0, %v2541
          %v2543 = vpop.f32.mrb[0].mxu0
          %2544 = vmatprep.mubr.bf16.mxu0 %v2425
          %2545 = vmatmul.mubr.bf16.gmra.mrb[0].mxu0 %v2424
          %v2546 = vpop.f32.mrb[0].mxu0
          %v2547 = vadd.f32 0.0, %v2546
          %v2548 = vpop.f32.mrb[0].mxu0
          %v2549 = vpop.f32.mrb[0].mxu0
          %v2550 = vadd.f32 0.0, %v2549
          %v2551 = vpop.f32.mrb[0].mxu0
          %2552 = vmatprep.mubr.bf16.mxu0 %v2427
          %2553 = vmatmul.mubr.bf16.gmra.mrb[0].mxu0 %v2426
          %v2554 = vpop.f32.mrb[0].mxu0
          %v2555 = vadd.f32 0.0, %v2554
          %v2556 = vpop.f32.mrb[0].mxu0
          %v2557 = vpop.f32.mrb[0].mxu0
          %v2558 = vadd.f32 0.0, %v2557
          %v2559 = vpop.f32.mrb[0].mxu0
          %2560 = vmatprep.mubr.bf16.mxu0 %v2429
          %2561 = vmatmul.mubr.bf16.gmra.mrb[0].mxu0 %v2428
          %v2562 = vpop.f32.mrb[0].mxu0
          %v2563 = vadd.f32 0.0, %v2562
          %v2564 = vpop.f32.mrb[0].mxu0
          %v2565 = vpop.f32.mrb[0].mxu0
          %v2566 = vadd.f32 0.0, %v2565
          %v2567 = vpop.f32.mrb[0].mxu0
          %2568 = vmatprep.mubr.bf16.mxu0 %v2431
          %2569 = vmatmul.mubr.bf16.gmra.mrb[0].mxu0 %v2430
          %v2570 = vpop.f32.mrb[0].mxu0
          %v2571 = vadd.f32 0.0, %v2570
          %v2572 = vpop.f32.mrb[0].mxu0
          %v2573 = vpop.f32.mrb[0].mxu0
          %v2574 = vadd.f32 0.0, %v2573
          %v2575 = vpop.f32.mrb[0].mxu0
          %2576 = vmatprep.mubr.bf16.mxu0 %v2433
          %2577 = vmatmul.mubr.bf16.gmra.mrb[0].mxu0 %v2432
          %v2578 = vpop.f32.mrb[0].mxu0
          %v2579 = vadd.f32 0.0, %v2578
          %v2580 = vpop.f32.mrb[0].mxu0
          %v2581 = vpop.f32.mrb[0].mxu0
          %v2582 = vadd.f32 0.0, %v2581
          %v2583 = vpop.f32.mrb[0].mxu0
          %2584 = vmatprep.mubr.bf16.mxu0 %v2435
          %2585 = vmatmul.mubr.bf16.gmra.mrb[0].mxu0 %v2434
          %v2586 = vpop.f32.mrb[0].mxu0
          %v2587 = vadd.f32 0.0, %v2586
          %v2588 = vpop.f32.mrb[0].mxu0
          %v2589 = vpop.f32.mrb[0].mxu0
          %v2590 = vadd.f32 0.0, %v2589
          %v2591 = vpop.f32.mrb[0].mxu0
          %2592 = vmatprep.mubr.bf16.mxu0 %v2437
          %2593 = vmatmul.mubr.bf16.gmra.mrb[0].mxu0 %v2436
          %v2594 = vpop.f32.mrb[0].mxu0
          %v2595 = vadd.f32 0.0, %v2594
          %v2596 = vpop.f32.mrb[0].mxu0
          %v2597 = vpop.f32.mrb[0].mxu0
          %v2598 = vadd.f32 0.0, %v2597
          %v2599 = vpop.f32.mrb[0].mxu0
          %2600 = vmatprep.mubr.bf16.mxu0 %v2439
          %2601 = vmatmul.mubr.bf16.gmra.mrb[0].mxu0 %v2438
          %v2602 = vpop.f32.mrb[0].mxu0
          %v2603 = vadd.f32 0.0, %v2602
          %v2604 = vpop.f32.mrb[0].mxu0
          %v2605 = vpop.f32.mrb[0].mxu0
          %v2606 = vadd.f32 0.0, %v2605
          %v2607 = vpop.f32.mrb[0].mxu0
          %2608 = vmatprep.mubr.bf16.mxu0 %v2441
          %2609 = vmatmul.mubr.bf16.gmra.mrb[0].mxu0 %v2440
          %v2610 = vpop.f32.mrb[0].mxu0
          %v2611 = vadd.f32 0.0, %v2610
          %v2612 = vpop.f32.mrb[0].mxu0
          %v2613 = vpop.f32.mrb[0].mxu0
          %v2614 = vadd.f32 0.0, %v2613
          %v2615 = vpop.f32.mrb[0].mxu0
          %2616 = vmatprep.mubr.bf16.mxu0 %v2443
          %2617 = vmatmul.mubr.bf16.gmra.mrb[0].mxu0 %v2442
          %v2618 = vpop.f32.mrb[0].mxu0
          %v2619 = vadd.f32 0.0, %v2618
          %v2620 = vpop.f32.mrb[0].mxu0
          %v2621 = vpop.f32.mrb[0].mxu0
          %v2622 = vadd.f32 0.0, %v2621
          %v2623 = vpop.f32.mrb[0].mxu0
          %2624 = vmatprep.mubr.bf16.mxu0 %v2445
          %2625 = vmatmul.mubr.bf16.gmra.mrb[0].mxu0 %v2444
          %v2626 = vpop.f32.mrb[0].mxu0
          %v2627 = vadd.f32 0.0, %v2626
          %v2628 = vpop.f32.mrb[0].mxu0
          %v2629 = vpop.f32.mrb[0].mxu0
          %v2630 = vadd.f32 0.0, %v2629
          %v2631 = vpop.f32.mrb[0].mxu0
          %2632 = vmatprep.mubr.bf16.mxu0 %v2447
          %2633 = vmatmul.mubr.bf16.gmra.mrb[0].mxu0 %v2446
          %v2634 = vpop.f32.mrb[0].mxu0
          %v2635 = vadd.f32 0.0, %v2634
          %v2636 = vpop.f32.mrb[0].mxu0
          %v2637 = vpop.f32.mrb[0].mxu0
          %v2638 = vadd.f32 0.0, %v2637
          %v2639 = vpop.f32.mrb[0].mxu0
          %2640 = vdwg.mxu0
          %p2641 = scmp.eq.s32.totalorder %s33, 0
          // Predicated region
          $region113: #{tpu_custom_call.1} parent=111 // pred_check
            %p2642 = pneg %p2641
          $region114: #{tpu_custom_call.1} parent=111 // pred_check_branch
            %2644 = sbr.rel (%p2642) target = $region116
          $region115: #{tpu_custom_call.1} parent=111 // pred_region
            %2645 = vst [vmem:[#allocation3] sm:$0xff] %v2515
            %2646 = vst [vmem:[#allocation3 + $0x8] sm:$0xff] %v2518
            %2647 = vst [vmem:[#allocation3 + $0x10] sm:$0xff] %v2523
            %2648 = vst [vmem:[#allocation3 + $0x18] sm:$0xff] %v2526
            %2649 = vst [vmem:[#allocation3 + $0x20] sm:$0xff] %v2531
            %2650 = vst [vmem:[#allocation3 + $0x28] sm:$0xff] %v2534
            %2651 = vst [vmem:[#allocation3 + $0x30] sm:$0xff] %v2539
            %2652 = vst [vmem:[#allocation3 + $0x38] sm:$0xff] %v2542
            %2653 = vst [vmem:[#allocation3 + $0x40] sm:$0xff] %v2547
            %2654 = vst [vmem:[#allocation3 + $0x48] sm:$0xff] %v2550
            %2655 = vst [vmem:[#allocation3 + $0x50] sm:$0xff] %v2555
            %2656 = vst [vmem:[#allocation3 + $0x58] sm:$0xff] %v2558
            %2657 = vst [vmem:[#allocation3 + $0x60] sm:$0xff] %v2563
            %2658 = vst [vmem:[#allocation3 + $0x68] sm:$0xff] %v2566
            %2659 = vst [vmem:[#allocation3 + $0x70] sm:$0xff] %v2571
            %2660 = vst [vmem:[#allocation3 + $0x78] sm:$0xff] %v2574
            %2661 = vst [vmem:[#allocation3 + $0x80] sm:$0xff] %v2579
            %2662 = vst [vmem:[#allocation3 + $0x88] sm:$0xff] %v2582
            %2663 = vst [vmem:[#allocation3 + $0x90] sm:$0xff] %v2587
            %2664 = vst [vmem:[#allocation3 + $0x98] sm:$0xff] %v2590
            %2665 = vst [vmem:[#allocation3 + $0xa0] sm:$0xff] %v2595
            %2666 = vst [vmem:[#allocation3 + $0xa8] sm:$0xff] %v2598
            %2667 = vst [vmem:[#allocation3 + $0xb0] sm:$0xff] %v2603
            %2668 = vst [vmem:[#allocation3 + $0xb8] sm:$0xff] %v2606
            %2669 = vst [vmem:[#allocation3 + $0xc0] sm:$0xff] %v2611
            %2670 = vst [vmem:[#allocation3 + $0xc8] sm:$0xff] %v2614
            %2671 = vst [vmem:[#allocation3 + $0xd0] sm:$0xff] %v2619
            %2672 = vst [vmem:[#allocation3 + $0xd8] sm:$0xff] %v2622
            %2673 = vst [vmem:[#allocation3 + $0xe0] sm:$0xff] %v2627
            %2674 = vst [vmem:[#allocation3 + $0xe8] sm:$0xff] %v2630
            %2675 = vst [vmem:[#allocation3 + $0xf0] sm:$0xff] %v2635
            %2676 = vst [vmem:[#allocation3 + $0xf8] sm:$0xff] %v2638
          $region116: #{tpu_custom_call.1} parent=111 // pred_fallthru
            _
          %p2677 = scmp.gt.s32.totalorder %s33, 0
          // Predicated region
          $region117: #{tpu_custom_call.1} parent=111 // pred_check
            %p2678 = pneg %p2677
          $region118: #{tpu_custom_call.1} parent=111 // pred_check_branch
            %2680 = sbr.rel (%p2678) target = $region120
          $region119: #{tpu_custom_call.1} parent=111 // pred_region
            %v2681 = vld [vmem:[#allocation3] sm:$0xff]
            %v2682 = vld [vmem:[#allocation3 + $0x8] sm:$0xff]
            %v2683 = vld [vmem:[#allocation3 + $0x10] sm:$0xff]
            %v2684 = vld [vmem:[#allocation3 + $0x18] sm:$0xff]
            %v2685 = vld [vmem:[#allocation3 + $0x20] sm:$0xff]
            %v2686 = vld [vmem:[#allocation3 + $0x28] sm:$0xff]
            %v2687 = vld [vmem:[#allocation3 + $0x30] sm:$0xff]
            %v2688 = vld [vmem:[#allocation3 + $0x38] sm:$0xff]
            %v2689 = vld [vmem:[#allocation3 + $0x40] sm:$0xff]
            %v2690 = vld [vmem:[#allocation3 + $0x48] sm:$0xff]
            %v2691 = vld [vmem:[#allocation3 + $0x50] sm:$0xff]
            %v2692 = vld [vmem:[#allocation3 + $0x58] sm:$0xff]
            %v2693 = vld [vmem:[#allocation3 + $0x60] sm:$0xff]
            %v2694 = vld [vmem:[#allocation3 + $0x68] sm:$0xff]
            %v2695 = vld [vmem:[#allocation3 + $0x70] sm:$0xff]
            %v2696 = vld [vmem:[#allocation3 + $0x78] sm:$0xff]
            %v2697 = vld [vmem:[#allocation3 + $0x80] sm:$0xff]
            %v2698 = vld [vmem:[#allocation3 + $0x88] sm:$0xff]
            %v2699 = vld [vmem:[#allocation3 + $0x90] sm:$0xff]
            %v2700 = vld [vmem:[#allocation3 + $0x98] sm:$0xff]
            %v2701 = vld [vmem:[#allocation3 + $0xa0] sm:$0xff]
            %v2702 = vld [vmem:[#allocation3 + $0xa8] sm:$0xff]
            %v2703 = vld [vmem:[#allocation3 + $0xb0] sm:$0xff]
            %v2704 = vld [vmem:[#allocation3 + $0xb8] sm:$0xff]
            %v2705 = vld [vmem:[#allocation3 + $0xc0] sm:$0xff]
            %v2706 = vld [vmem:[#allocation3 + $0xc8] sm:$0xff]
            %v2707 = vld [vmem:[#allocation3 + $0xd0] sm:$0xff]
            %v2708 = vld [vmem:[#allocation3 + $0xd8] sm:$0xff]
            %v2709 = vld [vmem:[#allocation3 + $0xe0] sm:$0xff]
            %v2710 = vld [vmem:[#allocation3 + $0xe8] sm:$0xff]
            %v2711 = vld [vmem:[#allocation3 + $0xf0] sm:$0xff]
            %v2712 = vld [vmem:[#allocation3 + $0xf8] sm:$0xff]
            %v2713 = vadd.f32 %v2681, %v2515
            %v2714 = vadd.f32 %v2682, %v2518
            %v2715 = vadd.f32 %v2683, %v2523
            %v2716 = vadd.f32 %v2684, %v2526
            %v2717 = vadd.f32 %v2685, %v2531
            %v2718 = vadd.f32 %v2686, %v2534
            %v2719 = vadd.f32 %v2687, %v2539
            %v2720 = vadd.f32 %v2688, %v2542
            %v2721 = vadd.f32 %v2689, %v2547
            %v2722 = vadd.f32 %v2690, %v2550
            %v2723 = vadd.f32 %v2691, %v2555
            %v2724 = vadd.f32 %v2692, %v2558
            %v2725 = vadd.f32 %v2693, %v2563
            %v2726 = vadd.f32 %v2694, %v2566
            %v2727 = vadd.f32 %v2695, %v2571
            %v2728 = vadd.f32 %v2696, %v2574
            %v2729 = vadd.f32 %v2697, %v2579
            %v2730 = vadd.f32 %v2698, %v2582
            %v2731 = vadd.f32 %v2699, %v2587
            %v2732 = vadd.f32 %v2700, %v2590
            %v2733 = vadd.f32 %v2701, %v2595
            %v2734 = vadd.f32 %v2702, %v2598
            %v2735 = vadd.f32 %v2703, %v2603
            %v2736 = vadd.f32 %v2704, %v2606
            %v2737 = vadd.f32 %v2705, %v2611
            %v2738 = vadd.f32 %v2706, %v2614
            %v2739 = vadd.f32 %v2707, %v2619
            %v2740 = vadd.f32 %v2708, %v2622
            %v2741 = vadd.f32 %v2709, %v2627
            %v2742 = vadd.f32 %v2710, %v2630
            %v2743 = vadd.f32 %v2711, %v2635
            %v2744 = vadd.f32 %v2712, %v2638
            %2745 = vst [vmem:[#allocation3] sm:$0xff] %v2713
            %2746 = vst [vmem:[#allocation3 + $0x8] sm:$0xff] %v2714
            %2747 = vst [vmem:[#allocation3 + $0x10] sm:$0xff] %v2715
            %2748 = vst [vmem:[#allocation3 + $0x18] sm:$0xff] %v2716
            %2749 = vst [vmem:[#allocation3 + $0x20] sm:$0xff] %v2717
            %2750 = vst [vmem:[#allocation3 + $0x28] sm:$0xff] %v2718
            %2751 = vst [vmem:[#allocation3 + $0x30] sm:$0xff] %v2719
            %2752 = vst [vmem:[#allocation3 + $0x38] sm:$0xff] %v2720
            %2753 = vst [vmem:[#allocation3 + $0x40] sm:$0xff] %v2721
            %2754 = vst [vmem:[#allocation3 + $0x48] sm:$0xff] %v2722
            %2755 = vst [vmem:[#allocation3 + $0x50] sm:$0xff] %v2723
            %2756 = vst [vmem:[#allocation3 + $0x58] sm:$0xff] %v2724
            %2757 = vst [vmem:[#allocation3 + $0x60] sm:$0xff] %v2725
            %2758 = vst [vmem:[#allocation3 + $0x68] sm:$0xff] %v2726
            %2759 = vst [vmem:[#allocation3 + $0x70] sm:$0xff] %v2727
            %2760 = vst [vmem:[#allocation3 + $0x78] sm:$0xff] %v2728
            %2761 = vst [vmem:[#allocation3 + $0x80] sm:$0xff] %v2729
            %2762 = vst [vmem:[#allocation3 + $0x88] sm:$0xff] %v2730
            %2763 = vst [vmem:[#allocation3 + $0x90] sm:$0xff] %v2731
            %2764 = vst [vmem:[#allocation3 + $0x98] sm:$0xff] %v2732
            %2765 = vst [vmem:[#allocation3 + $0xa0] sm:$0xff] %v2733
            %2766 = vst [vmem:[#allocation3 + $0xa8] sm:$0xff] %v2734
            %2767 = vst [vmem:[#allocation3 + $0xb0] sm:$0xff] %v2735
            %2768 = vst [vmem:[#allocation3 + $0xb8] sm:$0xff] %v2736
            %2769 = vst [vmem:[#allocation3 + $0xc0] sm:$0xff] %v2737
            %2770 = vst [vmem:[#allocation3 + $0xc8] sm:$0xff] %v2738
            %2771 = vst [vmem:[#allocation3 + $0xd0] sm:$0xff] %v2739
            %2772 = vst [vmem:[#allocation3 + $0xd8] sm:$0xff] %v2740
            %2773 = vst [vmem:[#allocation3 + $0xe0] sm:$0xff] %v2741
            %2774 = vst [vmem:[#allocation3 + $0xe8] sm:$0xff] %v2742
            %2775 = vst [vmem:[#allocation3 + $0xf0] sm:$0xff] %v2743
            %2776 = vst [vmem:[#allocation3 + $0xf8] sm:$0xff] %v2744
          $region120: #{tpu_custom_call.1} parent=111 // pred_fallthru
            _
        $region112: #{tpu_custom_call.1} parent=59 // pred_fallthru
          _
        %p2777 = scmp.eq.s32.totalorder %s33, 0
        // Predicated region
        $region121: #{tpu_custom_call.1} parent=59 // pred_check
          %p2778 = pneg %p2777
        $region122: #{tpu_custom_call.1} parent=59 // pred_check_branch
          %2780 = sbr.rel (%p2778) target = $region124
        $region123: #{tpu_custom_call.1} parent=59 // pred_region
          // Predicated region
          $region125: #{tpu_custom_call.1} parent=123 // pred_check
            %p2781 = pneg %p503
          $region126: #{tpu_custom_call.1} parent=123 // pred_check_branch
            %2783 = sbr.rel (%p2781) target = $region128
          $region127: #{tpu_custom_call.1} parent=123 // pred_region
            %v2784 = vld [vmem:[#allocation3] sm:$0xff]
            %v2785 = vld [vmem:[#allocation3 + $0x8] sm:$0xff]
            %v2786 = vld [vmem:[#allocation3 + $0x10] sm:$0xff]
            %v2787 = vld [vmem:[#allocation3 + $0x18] sm:$0xff]
            %v2788 = vld [vmem:[#allocation3 + $0x20] sm:$0xff]
            %v2789 = vld [vmem:[#allocation3 + $0x28] sm:$0xff]
            %v2790 = vld [vmem:[#allocation3 + $0x30] sm:$0xff]
            %v2791 = vld [vmem:[#allocation3 + $0x38] sm:$0xff]
            %v2792 = vld [vmem:[#allocation3 + $0x40] sm:$0xff]
            %v2793 = vld [vmem:[#allocation3 + $0x48] sm:$0xff]
            %v2794 = vld [vmem:[#allocation3 + $0x50] sm:$0xff]
            %v2795 = vld [vmem:[#allocation3 + $0x58] sm:$0xff]
            %v2796 = vld [vmem:[#allocation3 + $0x60] sm:$0xff]
            %v2797 = vld [vmem:[#allocation3 + $0x68] sm:$0xff]
            %v2798 = vld [vmem:[#allocation3 + $0x70] sm:$0xff]
            %v2799 = vld [vmem:[#allocation3 + $0x78] sm:$0xff]
            %v2800 = vld [vmem:[#allocation3 + $0x80] sm:$0xff]
            %v2801 = vld [vmem:[#allocation3 + $0x88] sm:$0xff]
            %v2802 = vld [vmem:[#allocation3 + $0x90] sm:$0xff]
            %v2803 = vld [vmem:[#allocation3 + $0x98] sm:$0xff]
            %v2804 = vld [vmem:[#allocation3 + $0xa0] sm:$0xff]
            %v2805 = vld [vmem:[#allocation3 + $0xa8] sm:$0xff]
            %v2806 = vld [vmem:[#allocation3 + $0xb0] sm:$0xff]
            %v2807 = vld [vmem:[#allocation3 + $0xb8] sm:$0xff]
            %v2808 = vld [vmem:[#allocation3 + $0xc0] sm:$0xff]
            %v2809 = vld [vmem:[#allocation3 + $0xc8] sm:$0xff]
            %v2810 = vld [vmem:[#allocation3 + $0xd0] sm:$0xff]
            %v2811 = vld [vmem:[#allocation3 + $0xd8] sm:$0xff]
            %v2812 = vld [vmem:[#allocation3 + $0xe0] sm:$0xff]
            %v2813 = vld [vmem:[#allocation3 + $0xe8] sm:$0xff]
            %v2814 = vld [vmem:[#allocation3 + $0xf0] sm:$0xff]
            %v2815 = vld [vmem:[#allocation3 + $0xf8] sm:$0xff]
            %v2816 = vld [vmem:[%s3] sm:$0x1]
            %v2818 = vlaneseq
            %v2819 = vshrl.u32 %v2818, 7
            %v2820 = vsub.s32 0, %v2819
            %v2821 = vrot.slane %v2816, %v2820
            %v2823 = vadd.f32 %v2784, %v2821
            %v2824 = vadd.f32 %v2785, %v2821
            %v2825 = vadd.f32 %v2786, %v2821
            %v2826 = vadd.f32 %v2787, %v2821
            %v2827 = vadd.f32 %v2788, %v2821
            %v2828 = vadd.f32 %v2789, %v2821
            %v2829 = vadd.f32 %v2790, %v2821
            %v2830 = vadd.f32 %v2791, %v2821
            %v2831 = vadd.f32 %v2792, %v2821
            %v2832 = vadd.f32 %v2793, %v2821
            %v2833 = vadd.f32 %v2794, %v2821
            %v2834 = vadd.f32 %v2795, %v2821
            %v2835 = vadd.f32 %v2796, %v2821
            %v2836 = vadd.f32 %v2797, %v2821
            %v2837 = vadd.f32 %v2798, %v2821
            %v2838 = vadd.f32 %v2799, %v2821
            %v2839 = vadd.f32 %v2800, %v2821
            %v2840 = vadd.f32 %v2801, %v2821
            %v2841 = vadd.f32 %v2802, %v2821
            %v2842 = vadd.f32 %v2803, %v2821
            %v2843 = vadd.f32 %v2804, %v2821
            %v2844 = vadd.f32 %v2805, %v2821
            %v2845 = vadd.f32 %v2806, %v2821
            %v2846 = vadd.f32 %v2807, %v2821
            %v2847 = vadd.f32 %v2808, %v2821
            %v2848 = vadd.f32 %v2809, %v2821
            %v2849 = vadd.f32 %v2810, %v2821
            %v2850 = vadd.f32 %v2811, %v2821
            %v2851 = vadd.f32 %v2812, %v2821
            %v2852 = vadd.f32 %v2813, %v2821
            %v2853 = vadd.f32 %v2814, %v2821
            %v2854 = vadd.f32 %v2815, %v2821
            %v2855 = vmax.f32 %v2823, 0.0
            %v2856 = vmax.f32 %v2824, 0.0
            %v2857 = vmax.f32 %v2825, 0.0
            %v2858 = vmax.f32 %v2826, 0.0
            %v2859 = vmax.f32 %v2827, 0.0
            %v2860 = vmax.f32 %v2828, 0.0
            %v2861 = vmax.f32 %v2829, 0.0
            %v2862 = vmax.f32 %v2830, 0.0
            %v2863 = vmax.f32 %v2831, 0.0
            %v2864 = vmax.f32 %v2832, 0.0
            %v2865 = vmax.f32 %v2833, 0.0
            %v2866 = vmax.f32 %v2834, 0.0
            %v2867 = vmax.f32 %v2835, 0.0
            %v2868 = vmax.f32 %v2836, 0.0
            %v2869 = vmax.f32 %v2837, 0.0
            %v2870 = vmax.f32 %v2838, 0.0
            %v2871 = vmax.f32 %v2839, 0.0
            %v2872 = vmax.f32 %v2840, 0.0
            %v2873 = vmax.f32 %v2841, 0.0
            %v2874 = vmax.f32 %v2842, 0.0
            %v2875 = vmax.f32 %v2843, 0.0
            %v2876 = vmax.f32 %v2844, 0.0
            %v2877 = vmax.f32 %v2845, 0.0
            %v2878 = vmax.f32 %v2846, 0.0
            %v2879 = vmax.f32 %v2847, 0.0
            %v2880 = vmax.f32 %v2848, 0.0
            %v2881 = vmax.f32 %v2849, 0.0
            %v2882 = vmax.f32 %v2850, 0.0
            %v2883 = vmax.f32 %v2851, 0.0
            %v2884 = vmax.f32 %v2852, 0.0
            %v2885 = vmax.f32 %v2853, 0.0
            %v2886 = vmax.f32 %v2854, 0.0
            %v2887 = vpack.c.bf16 %v2856, %v2855
            %v2888 = vpack.c.bf16 %v2858, %v2857
            %v2889 = vpack.c.bf16 %v2860, %v2859
            %v2890 = vpack.c.bf16 %v2862, %v2861
            %v2891 = vpack.c.bf16 %v2864, %v2863
            %v2892 = vpack.c.bf16 %v2866, %v2865
            %v2893 = vpack.c.bf16 %v2868, %v2867
            %v2894 = vpack.c.bf16 %v2870, %v2869
            %v2895 = vpack.c.bf16 %v2872, %v2871
            %v2896 = vpack.c.bf16 %v2874, %v2873
            %v2897 = vpack.c.bf16 %v2876, %v2875
            %v2898 = vpack.c.bf16 %v2878, %v2877
            %v2899 = vpack.c.bf16 %v2880, %v2879
            %v2900 = vpack.c.bf16 %v2882, %v2881
            %v2901 = vpack.c.bf16 %v2884, %v2883
            %v2902 = vpack.c.bf16 %v2886, %v2885
            %2903 = vst [vmem:[#allocation2] sm:$0xff] %v2887
            %2904 = vst [vmem:[#allocation2 + $0x8] sm:$0xff] %v2888
            %2905 = vst [vmem:[#allocation2 + $0x10] sm:$0xff] %v2889
            %2906 = vst [vmem:[#allocation2 + $0x18] sm:$0xff] %v2890
            %2907 = vst [vmem:[#allocation2 + $0x20] sm:$0xff] %v2891
            %2908 = vst [vmem:[#allocation2 + $0x28] sm:$0xff] %v2892
            %2909 = vst [vmem:[#allocation2 + $0x30] sm:$0xff] %v2893
            %2910 = vst [vmem:[#allocation2 + $0x38] sm:$0xff] %v2894
            %2911 = vst [vmem:[#allocation2 + $0x40] sm:$0xff] %v2895
            %2912 = vst [vmem:[#allocation2 + $0x48] sm:$0xff] %v2896
            %2913 = vst [vmem:[#allocation2 + $0x50] sm:$0xff] %v2897
            %2914 = vst [vmem:[#allocation2 + $0x58] sm:$0xff] %v2898
            %2915 = vst [vmem:[#allocation2 + $0x60] sm:$0xff] %v2899
            %2916 = vst [vmem:[#allocation2 + $0x68] sm:$0xff] %v2900
            %2917 = vst [vmem:[#allocation2 + $0x70] sm:$0xff] %v2901
            %2918 = vst [vmem:[#allocation2 + $0x78] sm:$0xff] %v2902
          $region128: #{tpu_custom_call.1} parent=123 // pred_fallthru
            _
          // Predicated region
          $region129: #{tpu_custom_call.1} parent=123 // pred_check
            %p2919 = pneg %p1333
          $region130: #{tpu_custom_call.1} parent=123 // pred_check_branch
            %2921 = sbr.rel (%p2919) target = $region132
          $region131: #{tpu_custom_call.1} parent=123 // pred_region
            %v2922 = vld [vmem:[#allocation3] sm:$0xff]
            %v2923 = vld [vmem:[#allocation3 + $0x8] sm:$0xff]
            %v2924 = vld [vmem:[#allocation3 + $0x10] sm:$0xff]
            %v2925 = vld [vmem:[#allocation3 + $0x18] sm:$0xff]
            %v2926 = vld [vmem:[#allocation3 + $0x20] sm:$0xff]
            %v2927 = vld [vmem:[#allocation3 + $0x28] sm:$0xff]
            %v2928 = vld [vmem:[#allocation3 + $0x30] sm:$0xff]
            %v2929 = vld [vmem:[#allocation3 + $0x38] sm:$0xff]
            %v2930 = vld [vmem:[#allocation3 + $0x40] sm:$0xff]
            %v2931 = vld [vmem:[#allocation3 + $0x48] sm:$0xff]
            %v2932 = vld [vmem:[#allocation3 + $0x50] sm:$0xff]
            %v2933 = vld [vmem:[#allocation3 + $0x58] sm:$0xff]
            %v2934 = vld [vmem:[#allocation3 + $0x60] sm:$0xff]
            %v2935 = vld [vmem:[#allocation3 + $0x68] sm:$0xff]
            %v2936 = vld [vmem:[#allocation3 + $0x70] sm:$0xff]
            %v2937 = vld [vmem:[#allocation3 + $0x78] sm:$0xff]
            %v2938 = vld [vmem:[#allocation3 + $0x80] sm:$0xff]
            %v2939 = vld [vmem:[#allocation3 + $0x88] sm:$0xff]
            %v2940 = vld [vmem:[#allocation3 + $0x90] sm:$0xff]
            %v2941 = vld [vmem:[#allocation3 + $0x98] sm:$0xff]
            %v2942 = vld [vmem:[#allocation3 + $0xa0] sm:$0xff]
            %v2943 = vld [vmem:[#allocation3 + $0xa8] sm:$0xff]
            %v2944 = vld [vmem:[#allocation3 + $0xb0] sm:$0xff]
            %v2945 = vld [vmem:[#allocation3 + $0xb8] sm:$0xff]
            %v2946 = vld [vmem:[#allocation3 + $0xc0] sm:$0xff]
            %v2947 = vld [vmem:[#allocation3 + $0xc8] sm:$0xff]
            %v2948 = vld [vmem:[#allocation3 + $0xd0] sm:$0xff]
            %v2949 = vld [vmem:[#allocation3 + $0xd8] sm:$0xff]
            %v2950 = vld [vmem:[#allocation3 + $0xe0] sm:$0xff]
            %v2951 = vld [vmem:[#allocation3 + $0xe8] sm:$0xff]
            %v2952 = vld [vmem:[#allocation3 + $0xf0] sm:$0xff]
            %v2953 = vld [vmem:[#allocation3 + $0xf8] sm:$0xff]
            %v2954 = vld [vmem:[%s5] sm:$0x1]
            %v2956 = vlaneseq
            %v2957 = vshrl.u32 %v2956, 7
            %v2958 = vsub.s32 0, %v2957
            %v2959 = vrot.slane %v2954, %v2958
            %v2961 = vadd.f32 %v2922, %v2959
            %v2962 = vadd.f32 %v2923, %v2959
            %v2963 = vadd.f32 %v2924, %v2959
            %v2964 = vadd.f32 %v2925, %v2959
            %v2965 = vadd.f32 %v2926, %v2959
            %v2966 = vadd.f32 %v2927, %v2959
            %v2967 = vadd.f32 %v2928, %v2959
            %v2968 = vadd.f32 %v2929, %v2959
            %v2969 = vadd.f32 %v2930, %v2959
            %v2970 = vadd.f32 %v2931, %v2959
            %v2971 = vadd.f32 %v2932, %v2959
            %v2972 = vadd.f32 %v2933, %v2959
            %v2973 = vadd.f32 %v2934, %v2959
            %v2974 = vadd.f32 %v2935, %v2959
            %v2975 = vadd.f32 %v2936, %v2959
            %v2976 = vadd.f32 %v2937, %v2959
            %v2977 = vadd.f32 %v2938, %v2959
            %v2978 = vadd.f32 %v2939, %v2959
            %v2979 = vadd.f32 %v2940, %v2959
            %v2980 = vadd.f32 %v2941, %v2959
            %v2981 = vadd.f32 %v2942, %v2959
            %v2982 = vadd.f32 %v2943, %v2959
            %v2983 = vadd.f32 %v2944, %v2959
            %v2984 = vadd.f32 %v2945, %v2959
            %v2985 = vadd.f32 %v2946, %v2959
            %v2986 = vadd.f32 %v2947, %v2959
            %v2987 = vadd.f32 %v2948, %v2959
            %v2988 = vadd.f32 %v2949, %v2959
            %v2989 = vadd.f32 %v2950, %v2959
            %v2990 = vadd.f32 %v2951, %v2959
            %v2991 = vadd.f32 %v2952, %v2959
            %v2992 = vadd.f32 %v2953, %v2959
            %v2993 = vmax.f32 %v2961, 0.0
            %v2994 = vmax.f32 %v2962, 0.0
            %v2995 = vmax.f32 %v2963, 0.0
            %v2996 = vmax.f32 %v2964, 0.0
            %v2997 = vmax.f32 %v2965, 0.0
            %v2998 = vmax.f32 %v2966, 0.0
            %v2999 = vmax.f32 %v2967, 0.0
            %v3000 = vmax.f32 %v2968, 0.0
            %v3001 = vmax.f32 %v2969, 0.0
            %v3002 = vmax.f32 %v2970, 0.0
            %v3003 = vmax.f32 %v2971, 0.0
            %v3004 = vmax.f32 %v2972, 0.0
            %v3005 = vmax.f32 %v2973, 0.0
            %v3006 = vmax.f32 %v2974, 0.0
            %v3007 = vmax.f32 %v2975, 0.0
            %v3008 = vmax.f32 %v2976, 0.0
            %v3009 = vmax.f32 %v2977, 0.0
            %v3010 = vmax.f32 %v2978, 0.0
            %v3011 = vmax.f32 %v2979, 0.0
            %v3012 = vmax.f32 %v2980, 0.0
            %v3013 = vmax.f32 %v2981, 0.0
            %v3014 = vmax.f32 %v2982, 0.0
            %v3015 = vmax.f32 %v2983, 0.0
            %v3016 = vmax.f32 %v2984, 0.0
            %v3017 = vmax.f32 %v2985, 0.0
            %v3018 = vmax.f32 %v2986, 0.0
            %v3019 = vmax.f32 %v2987, 0.0
            %v3020 = vmax.f32 %v2988, 0.0
            %v3021 = vmax.f32 %v2989, 0.0
            %v3022 = vmax.f32 %v2990, 0.0
            %v3023 = vmax.f32 %v2991, 0.0
            %v3024 = vmax.f32 %v2992, 0.0
            %v3025 = vpack.c.bf16 %v2994, %v2993
            %v3026 = vpack.c.bf16 %v2996, %v2995
            %v3027 = vpack.c.bf16 %v2998, %v2997
            %v3028 = vpack.c.bf16 %v3000, %v2999
            %v3029 = vpack.c.bf16 %v3002, %v3001
            %v3030 = vpack.c.bf16 %v3004, %v3003
            %v3031 = vpack.c.bf16 %v3006, %v3005
            %v3032 = vpack.c.bf16 %v3008, %v3007
            %v3033 = vpack.c.bf16 %v3010, %v3009
            %v3034 = vpack.c.bf16 %v3012, %v3011
            %v3035 = vpack.c.bf16 %v3014, %v3013
            %v3036 = vpack.c.bf16 %v3016, %v3015
            %v3037 = vpack.c.bf16 %v3018, %v3017
            %v3038 = vpack.c.bf16 %v3020, %v3019
            %v3039 = vpack.c.bf16 %v3022, %v3021
            %v3040 = vpack.c.bf16 %v3024, %v3023
            %3041 = vst [vmem:[#allocation2] sm:$0xff] %v3025
            %3042 = vst [vmem:[#allocation2 + $0x8] sm:$0xff] %v3026
            %3043 = vst [vmem:[#allocation2 + $0x10] sm:$0xff] %v3027
            %3044 = vst [vmem:[#allocation2 + $0x18] sm:$0xff] %v3028
            %3045 = vst [vmem:[#allocation2 + $0x20] sm:$0xff] %v3029
            %3046 = vst [vmem:[#allocation2 + $0x28] sm:$0xff] %v3030
            %3047 = vst [vmem:[#allocation2 + $0x30] sm:$0xff] %v3031
            %3048 = vst [vmem:[#allocation2 + $0x38] sm:$0xff] %v3032
            %3049 = vst [vmem:[#allocation2 + $0x40] sm:$0xff] %v3033
            %3050 = vst [vmem:[#allocation2 + $0x48] sm:$0xff] %v3034
            %3051 = vst [vmem:[#allocation2 + $0x50] sm:$0xff] %v3035
            %3052 = vst [vmem:[#allocation2 + $0x58] sm:$0xff] %v3036
            %3053 = vst [vmem:[#allocation2 + $0x60] sm:$0xff] %v3037
            %3054 = vst [vmem:[#allocation2 + $0x68] sm:$0xff] %v3038
            %3055 = vst [vmem:[#allocation2 + $0x70] sm:$0xff] %v3039
            %3056 = vst [vmem:[#allocation2 + $0x78] sm:$0xff] %v3040
          $region132: #{tpu_custom_call.1} parent=123 // pred_fallthru
            _
          // Predicated region
          $region133: #{tpu_custom_call.1} parent=123 // pred_check
            %p3057 = pneg %p2055
          $region134: #{tpu_custom_call.1} parent=123 // pred_check_branch
            %3059 = sbr.rel (%p3057) target = $region136
          $region135: #{tpu_custom_call.1} parent=123 // pred_region
            %v3060 = vld [vmem:[#allocation3] sm:$0xff]
            %v3061 = vld [vmem:[#allocation3 + $0x8] sm:$0xff]
            %v3062 = vld [vmem:[#allocation3 + $0x10] sm:$0xff]
            %v3063 = vld [vmem:[#allocation3 + $0x18] sm:$0xff]
            %v3064 = vld [vmem:[#allocation3 + $0x20] sm:$0xff]
            %v3065 = vld [vmem:[#allocation3 + $0x28] sm:$0xff]
            %v3066 = vld [vmem:[#allocation3 + $0x30] sm:$0xff]
            %v3067 = vld [vmem:[#allocation3 + $0x38] sm:$0xff]
            %v3068 = vld [vmem:[#allocation3 + $0x40] sm:$0xff]
            %v3069 = vld [vmem:[#allocation3 + $0x48] sm:$0xff]
            %v3070 = vld [vmem:[#allocation3 + $0x50] sm:$0xff]
            %v3071 = vld [vmem:[#allocation3 + $0x58] sm:$0xff]
            %v3072 = vld [vmem:[#allocation3 + $0x60] sm:$0xff]
            %v3073 = vld [vmem:[#allocation3 + $0x68] sm:$0xff]
            %v3074 = vld [vmem:[#allocation3 + $0x70] sm:$0xff]
            %v3075 = vld [vmem:[#allocation3 + $0x78] sm:$0xff]
            %v3076 = vld [vmem:[#allocation3 + $0x80] sm:$0xff]
            %v3077 = vld [vmem:[#allocation3 + $0x88] sm:$0xff]
            %v3078 = vld [vmem:[#allocation3 + $0x90] sm:$0xff]
            %v3079 = vld [vmem:[#allocation3 + $0x98] sm:$0xff]
            %v3080 = vld [vmem:[#allocation3 + $0xa0] sm:$0xff]
            %v3081 = vld [vmem:[#allocation3 + $0xa8] sm:$0xff]
            %v3082 = vld [vmem:[#allocation3 + $0xb0] sm:$0xff]
            %v3083 = vld [vmem:[#allocation3 + $0xb8] sm:$0xff]
            %v3084 = vld [vmem:[#allocation3 + $0xc0] sm:$0xff]
            %v3085 = vld [vmem:[#allocation3 + $0xc8] sm:$0xff]
            %v3086 = vld [vmem:[#allocation3 + $0xd0] sm:$0xff]
            %v3087 = vld [vmem:[#allocation3 + $0xd8] sm:$0xff]
            %v3088 = vld [vmem:[#allocation3 + $0xe0] sm:$0xff]
            %v3089 = vld [vmem:[#allocation3 + $0xe8] sm:$0xff]
            %v3090 = vld [vmem:[#allocation3 + $0xf0] sm:$0xff]
            %v3091 = vld [vmem:[#allocation3 + $0xf8] sm:$0xff]
            %v3092 = vld [vmem:[%s7] sm:$0x1]
            %v3094 = vlaneseq
            %v3095 = vshrl.u32 %v3094, 7
            %v3096 = vsub.s32 0, %v3095
            %v3097 = vrot.slane %v3092, %v3096
            %v3099 = vadd.f32 %v3060, %v3097
            %v3100 = vadd.f32 %v3061, %v3097
            %v3101 = vadd.f32 %v3062, %v3097
            %v3102 = vadd.f32 %v3063, %v3097
            %v3103 = vadd.f32 %v3064, %v3097
            %v3104 = vadd.f32 %v3065, %v3097
            %v3105 = vadd.f32 %v3066, %v3097
            %v3106 = vadd.f32 %v3067, %v3097
            %v3107 = vadd.f32 %v3068, %v3097
            %v3108 = vadd.f32 %v3069, %v3097
            %v3109 = vadd.f32 %v3070, %v3097
            %v3110 = vadd.f32 %v3071, %v3097
            %v3111 = vadd.f32 %v3072, %v3097
            %v3112 = vadd.f32 %v3073, %v3097
            %v3113 = vadd.f32 %v3074, %v3097
            %v3114 = vadd.f32 %v3075, %v3097
            %v3115 = vadd.f32 %v3076, %v3097
            %v3116 = vadd.f32 %v3077, %v3097
            %v3117 = vadd.f32 %v3078, %v3097
            %v3118 = vadd.f32 %v3079, %v3097
            %v3119 = vadd.f32 %v3080, %v3097
            %v3120 = vadd.f32 %v3081, %v3097
            %v3121 = vadd.f32 %v3082, %v3097
            %v3122 = vadd.f32 %v3083, %v3097
            %v3123 = vadd.f32 %v3084, %v3097
            %v3124 = vadd.f32 %v3085, %v3097
            %v3125 = vadd.f32 %v3086, %v3097
            %v3126 = vadd.f32 %v3087, %v3097
            %v3127 = vadd.f32 %v3088, %v3097
            %v3128 = vadd.f32 %v3089, %v3097
            %v3129 = vadd.f32 %v3090, %v3097
            %v3130 = vadd.f32 %v3091, %v3097
            %v3131 = vmax.f32 %v3099, 0.0
            %v3132 = vmax.f32 %v3100, 0.0
            %v3133 = vmax.f32 %v3101, 0.0
            %v3134 = vmax.f32 %v3102, 0.0
            %v3135 = vmax.f32 %v3103, 0.0
            %v3136 = vmax.f32 %v3104, 0.0
            %v3137 = vmax.f32 %v3105, 0.0
            %v3138 = vmax.f32 %v3106, 0.0
            %v3139 = vmax.f32 %v3107, 0.0
            %v3140 = vmax.f32 %v3108, 0.0
            %v3141 = vmax.f32 %v3109, 0.0
            %v3142 = vmax.f32 %v3110, 0.0
            %v3143 = vmax.f32 %v3111, 0.0
            %v3144 = vmax.f32 %v3112, 0.0
            %v3145 = vmax.f32 %v3113, 0.0
            %v3146 = vmax.f32 %v3114, 0.0
            %v3147 = vmax.f32 %v3115, 0.0
            %v3148 = vmax.f32 %v3116, 0.0
            %v3149 = vmax.f32 %v3117, 0.0
            %v3150 = vmax.f32 %v3118, 0.0
            %v3151 = vmax.f32 %v3119, 0.0
            %v3152 = vmax.f32 %v3120, 0.0
            %v3153 = vmax.f32 %v3121, 0.0
            %v3154 = vmax.f32 %v3122, 0.0
            %v3155 = vmax.f32 %v3123, 0.0
            %v3156 = vmax.f32 %v3124, 0.0
            %v3157 = vmax.f32 %v3125, 0.0
            %v3158 = vmax.f32 %v3126, 0.0
            %v3159 = vmax.f32 %v3127, 0.0
            %v3160 = vmax.f32 %v3128, 0.0
            %v3161 = vmax.f32 %v3129, 0.0
            %v3162 = vmax.f32 %v3130, 0.0
            %v3163 = vpack.c.bf16 %v3132, %v3131
            %v3164 = vpack.c.bf16 %v3134, %v3133
            %v3165 = vpack.c.bf16 %v3136, %v3135
            %v3166 = vpack.c.bf16 %v3138, %v3137
            %v3167 = vpack.c.bf16 %v3140, %v3139
            %v3168 = vpack.c.bf16 %v3142, %v3141
            %v3169 = vpack.c.bf16 %v3144, %v3143
            %v3170 = vpack.c.bf16 %v3146, %v3145
            %v3171 = vpack.c.bf16 %v3148, %v3147
            %v3172 = vpack.c.bf16 %v3150, %v3149
            %v3173 = vpack.c.bf16 %v3152, %v3151
            %v3174 = vpack.c.bf16 %v3154, %v3153
            %v3175 = vpack.c.bf16 %v3156, %v3155
            %v3176 = vpack.c.bf16 %v3158, %v3157
            %v3177 = vpack.c.bf16 %v3160, %v3159
            %v3178 = vpack.c.bf16 %v3162, %v3161
            %v3179 = vld [vmem:[#allocation13] sm:$0xf]
            %v3180 = vld [vmem:[#allocation13 + $0x4] sm:$0xf]
            %v3181 = vld [vmem:[#allocation13 + $0x8] sm:$0xf]
            %v3182 = vld [vmem:[#allocation13 + $0xc] sm:$0xf]
            %v3183 = vld [vmem:[#allocation13 + $0x10] sm:$0xf]
            %v3184 = vld [vmem:[#allocation13 + $0x14] sm:$0xf]
            %v3185 = vld [vmem:[#allocation13 + $0x18] sm:$0xf]
            %v3186 = vld [vmem:[#allocation13 + $0x1c] sm:$0xf]
            %v3187 = vld [vmem:[#allocation13 + $0x20] sm:$0xf]
            %v3188 = vld [vmem:[#allocation13 + $0x24] sm:$0xf]
            %v3189 = vld [vmem:[#allocation13 + $0x28] sm:$0xf]
            %v3190 = vld [vmem:[#allocation13 + $0x2c] sm:$0xf]
            %v3191 = vld [vmem:[#allocation13 + $0x30] sm:$0xf]
            %v3192 = vld [vmem:[#allocation13 + $0x34] sm:$0xf]
            %v3193 = vld [vmem:[#allocation13 + $0x38] sm:$0xf]
            %v3194 = vld [vmem:[#allocation13 + $0x3c] sm:$0xf]
            %v3195 = vld [vmem:[%s9] sm:$0x1]
            %v3197 = vlaneseq
            %v3198 = vshrl.u32 %v3197, 7
            %v3199 = vsub.s32 0, %v3198
            %v3200 = vrot.slane %v3195, %v3199
            %v3218 = vunpack.c.l.b16 %v3179
            %v3219 = vunpack.c.l.b16 %v3180
            %v3220 = vunpack.c.l.b16 %v3181
            %v3221 = vunpack.c.l.b16 %v3182
            %v3222 = vunpack.c.l.b16 %v3183
            %v3223 = vunpack.c.l.b16 %v3184
            %v3224 = vunpack.c.l.b16 %v3185
            %v3225 = vunpack.c.l.b16 %v3186
            %v3226 = vunpack.c.l.b16 %v3187
            %v3227 = vunpack.c.l.b16 %v3188
            %v3228 = vunpack.c.l.b16 %v3189
            %v3229 = vunpack.c.l.b16 %v3190
            %v3230 = vunpack.c.l.b16 %v3191
            %v3231 = vunpack.c.l.b16 %v3192
            %v3232 = vunpack.c.l.b16 %v3193
            %v3233 = vunpack.c.l.b16 %v3194
            %v3234 = vpack.c.b16 %v3219, %v3218
            %v3235 = vpack.c.b16 %v3221, %v3220
            %v3236 = vpack.c.b16 %v3223, %v3222
            %v3237 = vpack.c.b16 %v3225, %v3224
            %v3238 = vpack.c.b16 %v3227, %v3226
            %v3239 = vpack.c.b16 %v3229, %v3228
            %v3240 = vpack.c.b16 %v3231, %v3230
            %v3241 = vpack.c.b16 %v3233, %v3232
            %3250 = vmatprep.subr.bf16.mxu0 0
            %3251 = vmatpush1.bf16.msra.mxu0 %v3234
            %3252 = vmatprep.subr.bf16.mxu0 0
            %3253 = vmatpush1.bf16.msra.mxu0 %v3235
            %3254 = vmatprep.subr.bf16.mxu0 0
            %3255 = vmatpush1.bf16.msra.mxu0 %v3236
            %3256 = vmatprep.subr.bf16.mxu0 0
            %3257 = vmatpush1.bf16.msra.mxu0 %v3237
            %3258 = vmatprep.subr.bf16.mxu0 0
            %3259 = vmatpush1.bf16.msra.mxu0 %v3238
            %3260 = vmatprep.subr.bf16.mxu0 0
            %3261 = vmatpush1.bf16.msra.mxu0 %v3239
            %3262 = vmatprep.subr.bf16.mxu0 0
            %3263 = vmatpush1.bf16.msra.mxu0 %v3240
            %3264 = vmatprep.subr.bf16.mxu0 0
            %3265 = vmatpush1.bf16.msra.mxu0 %v3241
            %3266 = vmatprep.subr.bf16.mxu0 0
            %3267 = vmatpush1.bf16.msra.mxu0 0
            %3268 = vmatprep.subr.bf16.mxu0 0
            %3269 = vmatpush1.bf16.msra.mxu0 0
            %3270 = vmatprep.subr.bf16.mxu0 0
            %3271 = vmatpush1.bf16.msra.mxu0 0
            %3272 = vmatprep.subr.bf16.mxu0 0
            %3273 = vmatpush1.bf16.msra.mxu0 0
            %3274 = vmatprep.subr.bf16.mxu0 0
            %3275 = vmatpush1.bf16.msra.mxu0 0
            %3276 = vmatprep.subr.bf16.mxu0 0
            %3277 = vmatpush1.bf16.msra.mxu0 0
            %3278 = vmatprep.subr.bf16.mxu0 0
            %3279 = vmatpush1.bf16.msra.mxu0 0
            %3280 = vmatprep.subr.bf16.mxu0 0
            %3281 = vmatpush1.bf16.msra.mxu0 0
            %3282 = vmatprep.mubr.bf16.mxu0 0
            %3283 = vmatmul.mubr.bf16.gmra.mrb[0].mxu0 %v3163
            %v3284 = vpop.f32.mrb[0].mxu0
            %v3285 = vadd.f32 %v3200, %v3284
            %v3286 = vpop.f32.mrb[0].mxu0
            %v3287 = vpop.f32.mrb[0].mxu0
            %v3288 = vadd.f32 %v3200, %v3287
            %v3289 = vpop.f32.mrb[0].mxu0
            %3290 = vmatprep.mubr.bf16.mxu0 0
            %3291 = vmatmul.mubr.bf16.gmra.mrb[0].mxu0 %v3164
            %v3292 = vpop.f32.mrb[0].mxu0
            %v3293 = vadd.f32 %v3200, %v3292
            %v3294 = vpop.f32.mrb[0].mxu0
            %v3295 = vpop.f32.mrb[0].mxu0
            %v3296 = vadd.f32 %v3200, %v3295
            %v3297 = vpop.f32.mrb[0].mxu0
            %3298 = vmatprep.mubr.bf16.mxu0 0
            %3299 = vmatmul.mubr.bf16.gmra.mrb[0].mxu0 %v3165
            %v3300 = vpop.f32.mrb[0].mxu0
            %v3301 = vadd.f32 %v3200, %v3300
            %v3302 = vpop.f32.mrb[0].mxu0
            %v3303 = vpop.f32.mrb[0].mxu0
            %v3304 = vadd.f32 %v3200, %v3303
            %v3305 = vpop.f32.mrb[0].mxu0
            %3306 = vmatprep.mubr.bf16.mxu0 0
            %3307 = vmatmul.mubr.bf16.gmra.mrb[0].mxu0 %v3166
            %v3308 = vpop.f32.mrb[0].mxu0
            %v3309 = vadd.f32 %v3200, %v3308
            %v3310 = vpop.f32.mrb[0].mxu0
            %v3311 = vpop.f32.mrb[0].mxu0
            %v3312 = vadd.f32 %v3200, %v3311
            %v3313 = vpop.f32.mrb[0].mxu0
            %3314 = vmatprep.mubr.bf16.mxu0 0
            %3315 = vmatmul.mubr.bf16.gmra.mrb[0].mxu0 %v3167
            %v3316 = vpop.f32.mrb[0].mxu0
            %v3317 = vadd.f32 %v3200, %v3316
            %v3318 = vpop.f32.mrb[0].mxu0
            %v3319 = vpop.f32.mrb[0].mxu0
            %v3320 = vadd.f32 %v3200, %v3319
            %v3321 = vpop.f32.mrb[0].mxu0
            %3322 = vmatprep.mubr.bf16.mxu0 0
            %3323 = vmatmul.mubr.bf16.gmra.mrb[0].mxu0 %v3168
            %v3324 = vpop.f32.mrb[0].mxu0
            %v3325 = vadd.f32 %v3200, %v3324
            %v3326 = vpop.f32.mrb[0].mxu0
            %v3327 = vpop.f32.mrb[0].mxu0
            %v3328 = vadd.f32 %v3200, %v3327
            %v3329 = vpop.f32.mrb[0].mxu0
            %3330 = vmatprep.mubr.bf16.mxu0 0
            %3331 = vmatmul.mubr.bf16.gmra.mrb[0].mxu0 %v3169
            %v3332 = vpop.f32.mrb[0].mxu0
            %v3333 = vadd.f32 %v3200, %v3332
            %v3334 = vpop.f32.mrb[0].mxu0
            %v3335 = vpop.f32.mrb[0].mxu0
            %v3336 = vadd.f32 %v3200, %v3335
            %v3337 = vpop.f32.mrb[0].mxu0
            %3338 = vmatprep.mubr.bf16.mxu0 0
            %3339 = vmatmul.mubr.bf16.gmra.mrb[0].mxu0 %v3170
            %v3340 = vpop.f32.mrb[0].mxu0
            %v3341 = vadd.f32 %v3200, %v3340
            %v3342 = vpop.f32.mrb[0].mxu0
            %v3343 = vpop.f32.mrb[0].mxu0
            %v3344 = vadd.f32 %v3200, %v3343
            %v3345 = vpop.f32.mrb[0].mxu0
            %3346 = vmatprep.mubr.bf16.mxu0 0
            %3347 = vmatmul.mubr.bf16.gmra.mrb[0].mxu0 %v3171
            %v3348 = vpop.f32.mrb[0].mxu0
            %v3349 = vadd.f32 %v3200, %v3348
            %v3350 = vpop.f32.mrb[0].mxu0
            %v3351 = vpop.f32.mrb[0].mxu0
            %v3352 = vadd.f32 %v3200, %v3351
            %v3353 = vpop.f32.mrb[0].mxu0
            %3354 = vmatprep.mubr.bf16.mxu0 0
            %3355 = vmatmul.mubr.bf16.gmra.mrb[0].mxu0 %v3172
            %v3356 = vpop.f32.mrb[0].mxu0
            %v3357 = vadd.f32 %v3200, %v3356
            %v3358 = vpop.f32.mrb[0].mxu0
            %v3359 = vpop.f32.mrb[0].mxu0
            %v3360 = vadd.f32 %v3200, %v3359
            %v3361 = vpop.f32.mrb[0].mxu0
            %3362 = vmatprep.mubr.bf16.mxu0 0
            %3363 = vmatmul.mubr.bf16.gmra.mrb[0].mxu0 %v3173
            %v3364 = vpop.f32.mrb[0].mxu0
            %v3365 = vadd.f32 %v3200, %v3364
            %v3366 = vpop.f32.mrb[0].mxu0
            %v3367 = vpop.f32.mrb[0].mxu0
            %v3368 = vadd.f32 %v3200, %v3367
            %v3369 = vpop.f32.mrb[0].mxu0
            %3370 = vmatprep.mubr.bf16.mxu0 0
            %3371 = vmatmul.mubr.bf16.gmra.mrb[0].mxu0 %v3174
            %v3372 = vpop.f32.mrb[0].mxu0
            %v3373 = vadd.f32 %v3200, %v3372
            %v3374 = vpop.f32.mrb[0].mxu0
            %v3375 = vpop.f32.mrb[0].mxu0
            %v3376 = vadd.f32 %v3200, %v3375
            %v3377 = vpop.f32.mrb[0].mxu0
            %3378 = vmatprep.mubr.bf16.mxu0 0
            %3379 = vmatmul.mubr.bf16.gmra.mrb[0].mxu0 %v3175
            %v3380 = vpop.f32.mrb[0].mxu0
            %v3381 = vadd.f32 %v3200, %v3380
            %v3382 = vpop.f32.mrb[0].mxu0
            %v3383 = vpop.f32.mrb[0].mxu0
            %v3384 = vadd.f32 %v3200, %v3383
            %v3385 = vpop.f32.mrb[0].mxu0
            %3386 = vmatprep.mubr.bf16.mxu0 0
            %3387 = vmatmul.mubr.bf16.gmra.mrb[0].mxu0 %v3176
            %v3388 = vpop.f32.mrb[0].mxu0
            %v3389 = vadd.f32 %v3200, %v3388
            %v3390 = vpop.f32.mrb[0].mxu0
            %v3391 = vpop.f32.mrb[0].mxu0
            %v3392 = vadd.f32 %v3200, %v3391
            %v3393 = vpop.f32.mrb[0].mxu0
            %3394 = vmatprep.mubr.bf16.mxu0 0
            %3395 = vmatmul.mubr.bf16.gmra.mrb[0].mxu0 %v3177
            %v3396 = vpop.f32.mrb[0].mxu0
            %v3397 = vadd.f32 %v3200, %v3396
            %v3398 = vpop.f32.mrb[0].mxu0
            %v3399 = vpop.f32.mrb[0].mxu0
            %v3400 = vadd.f32 %v3200, %v3399
            %v3401 = vpop.f32.mrb[0].mxu0
            %3402 = vmatprep.mubr.bf16.mxu0 0
            %3403 = vmatmul.mubr.bf16.gmra.mrb[0].mxu0 %v3178
            %v3404 = vpop.f32.mrb[0].mxu0
            %v3405 = vadd.f32 %v3200, %v3404
            %v3406 = vpop.f32.mrb[0].mxu0
            %v3407 = vpop.f32.mrb[0].mxu0
            %v3408 = vadd.f32 %v3200, %v3407
            %v3409 = vpop.f32.mrb[0].mxu0
            %3410 = vdwg.mxu0
            %3411 = vst [vmem:[#allocation15] sm:$0xff] %v3285
            %3412 = vst [vmem:[#allocation15 + $0x8] sm:$0xff] %v3288
            %3413 = vst [vmem:[#allocation15 + $0x10] sm:$0xff] %v3293
            %3414 = vst [vmem:[#allocation15 + $0x18] sm:$0xff] %v3296
            %3415 = vst [vmem:[#allocation15 + $0x20] sm:$0xff] %v3301
            %3416 = vst [vmem:[#allocation15 + $0x28] sm:$0xff] %v3304
            %3417 = vst [vmem:[#allocation15 + $0x30] sm:$0xff] %v3309
            %3418 = vst [vmem:[#allocation15 + $0x38] sm:$0xff] %v3312
            %3419 = vst [vmem:[#allocation15 + $0x40] sm:$0xff] %v3317
            %3420 = vst [vmem:[#allocation15 + $0x48] sm:$0xff] %v3320
            %3421 = vst [vmem:[#allocation15 + $0x50] sm:$0xff] %v3325
            %3422 = vst [vmem:[#allocation15 + $0x58] sm:$0xff] %v3328
            %3423 = vst [vmem:[#allocation15 + $0x60] sm:$0xff] %v3333
            %3424 = vst [vmem:[#allocation15 + $0x68] sm:$0xff] %v3336
            %3425 = vst [vmem:[#allocation15 + $0x70] sm:$0xff] %v3341
            %3426 = vst [vmem:[#allocation15 + $0x78] sm:$0xff] %v3344
            %3427 = vst [vmem:[#allocation15 + $0x80] sm:$0xff] %v3349
            %3428 = vst [vmem:[#allocation15 + $0x88] sm:$0xff] %v3352
            %3429 = vst [vmem:[#allocation15 + $0x90] sm:$0xff] %v3357
            %3430 = vst [vmem:[#allocation15 + $0x98] sm:$0xff] %v3360
            %3431 = vst [vmem:[#allocation15 + $0xa0] sm:$0xff] %v3365
            %3432 = vst [vmem:[#allocation15 + $0xa8] sm:$0xff] %v3368
            %3433 = vst [vmem:[#allocation15 + $0xb0] sm:$0xff] %v3373
            %3434 = vst [vmem:[#allocation15 + $0xb8] sm:$0xff] %v3376
            %3435 = vst [vmem:[#allocation15 + $0xc0] sm:$0xff] %v3381
            %3436 = vst [vmem:[#allocation15 + $0xc8] sm:$0xff] %v3384
            %3437 = vst [vmem:[#allocation15 + $0xd0] sm:$0xff] %v3389
            %3438 = vst [vmem:[#allocation15 + $0xd8] sm:$0xff] %v3392
            %3439 = vst [vmem:[#allocation15 + $0xe0] sm:$0xff] %v3397
            %3440 = vst [vmem:[#allocation15 + $0xe8] sm:$0xff] %v3400
            %3441 = vst [vmem:[#allocation15 + $0xf0] sm:$0xff] %v3405
            %3442 = vst [vmem:[#allocation15 + $0xf8] sm:$0xff] %v3408
          $region136: #{tpu_custom_call.1} parent=123 // pred_fallthru
            _
        $region124: #{tpu_custom_call.1} parent=59 // pred_fallthru
          _
        // Predicated region
        $region137: #{tpu_custom_call.1} parent=59 // pred_check
          %p3443 = pneg %p277
        $region138: #{tpu_custom_call.1} parent=59 // pred_check_branch
          %3445 = sbr.rel (%p3443) target = $region140
        $region139: #{tpu_custom_call.1} parent=59 // pred_region
          %s3447 = ssub.s32 4096, 4096
          %3448 = vsyncadd [#allocation6], %s3447
          %s3449 = sshll.u32 [#allocation15], 4
          %s3450 = int_to_ptr.vmem [resolvable:$true] %s3449
          %3455 = dma.vmem_to_hbm [thread:$0]  %s3450, 4096, %s10, [#allocation6], 128, 128, 8
        $region140: #{tpu_custom_call.1} parent=59 // pred_fallthru
          _
        // Predicated region
        $region141: #{tpu_custom_call.1} parent=59 // pred_check
          %p3456 = pneg %p277
        $region142: #{tpu_custom_call.1} parent=59 // pred_check_branch
          %3458 = sbr.rel (%p3456) target = $region144
        $region143: #{tpu_custom_call.1} parent=59 // pred_region
          %3459 = dma.done [#allocation6], 4096
        $region144: #{tpu_custom_call.1} parent=59 // pred_fallthru
          _
      $region60: #{tpu_custom_call.1} parent=5 // pred_fallthru
        _
      %p3460 = scmp.le.s32.totalorder 2, %s23
      // Predicated region
      $region145: #{tpu_custom_call.1} parent=5 // pred_check
        %p3461 = pneg %p3460
      $region146: #{tpu_custom_call.1} parent=5 // pred_check_branch
        %3463 = sbr.rel (%p3461) target = $region148
      $region147: #{tpu_custom_call.1} parent=5 // pred_region
        %s3464 = ssub.s32 %s23, 2
      $region148: #{tpu_custom_call.1} parent=5 // pred_fallthru
        _
    $region6: #{tpu_custom_call.1} parent=1 // loop_footer
      %s27 = sadd.s32 1, %s23
    $region7: #{tpu_custom_call.1} parent=1 // loop_footer_branch
      %22 = sbr.rel target = $region3
    $region8: #{tpu_custom_call.1} parent=1 // loop_exit
      _
    %3465 = vsyncpa [#allocation5], 1
    %s3466 = scalar_lea.sflag [#allocation5], 1
    %3467 = vsyncpa %s3466, 1
    %3468 = vsyncpa [#allocation8], 1
    %3469 = vsyncpa [#allocation11], 1
    %3470 = vsyncpa [#allocation14], 1
    %3471 = vsyncpa [#allocation6], 1
    %s3472 = scalar_lea.sflag [#allocation6], 1
    %3473 = vsyncpa %s3472, 1

</llo_original>
